<compile_context>
chip_gen: v5e
topology: v5e:2x2
jax: 0.10.0
libtpu: 0.0.40
codegen_flags: <defaults>
</compile_context>

<pallas_src>
import functools

import jax
import jax.numpy as jnp
from jax.experimental import pallas as pl
from jax.experimental.pallas import tpu as pltpu

KH = 7
KW = 7
PAD = 3
N_ACC = 4  # independent partial accumulators (breaks the dependent add chain)


def _spatial_attention_kernel(x_ref, sp_ref, wm_ref, o_ref, *, img_w, img_hw):
    # x_ref, sp_ref, o_ref: (B_TILE, C, H*W) blocks, lane-dense flattened spatial axis.
    # wm_ref:               (KH*KW, C, H*W) per-tap weight*validity planes (VMEM resident).
    y = x_ref[...].astype(jnp.float32) + sp_ref[...].astype(jnp.float32)  # (B, C, HW)

    accs = [jnp.zeros(y.shape, jnp.float32) for _ in range(N_ACC)]
    t = 0
    for dh in range(KH):
        for dw in range(KW):
            # Source offset of this tap in the flattened spatial axis (static int).
            s = (dh - PAD) * img_w + (dw - PAD)
            shift = (-s) % img_hw
            shifted = y if shift == 0 else jnp.roll(y, shift, axis=-1)
            # Lanes whose source pixel is outside the image (the conv's zero padding,
            # including row wrap-around of the flattened shift) have weight 0 in wm.
            accs[t % N_ACC] = accs[t % N_ACC] + shifted * wm_ref[t]
            t += 1

    # Pairwise-reduce the independent partial accumulators.
    while len(accs) > 1:
        nxt = [accs[i] + accs[i + 1] for i in range(0, len(accs) - 1, 2)]
        if len(accs) % 2:
            nxt.append(accs[-1])
        accs = nxt

    conv = jnp.sum(accs[0], axis=1, keepdims=True)   # (B, 1, HW) cross-sublane reduce (XLU)
    attn = jax.nn.sigmoid(conv)                      # EUP
    # Gate the ORIGINAL x; attn broadcast over the channel sublanes is free.
    o_ref[...] = (x_ref[...].astype(jnp.float32) * attn).astype(o_ref.dtype)


def spatial_attention(x_nchw, spacing_nchw, w_oihw, *, batch_tile=None):
    """Pallas forward of SpatialAttention. Inputs NCHW, weight OIHW = (1, C, 7, 7)."""
    N, C, H, W = x_nchw.shape
    assert w_oihw.shape == (1, C, KH, KW)
    L = H * W

    # --- layout plumbing only (contiguous reshapes, no data movement) ---
    x_flat = x_nchw.reshape(N, C, L)
    sp_flat = spacing_nchw.reshape(N, C, L)

    # --- fold conv weight + zero-padding validity into 49 lane-dense planes ---
    dh = jnp.arange(KH).reshape(KH, 1, 1, 1)
    dw = jnp.arange(KW).reshape(1, KW, 1, 1)
    hh = jnp.arange(H).reshape(1, 1, H, 1)
    ww = jnp.arange(W).reshape(1, 1, 1, W)
    src_h = hh + dh - PAD
    src_w = ww + dw - PAD
    valid = ((src_h >= 0) & (src_h < H) & (src_w >= 0) & (src_w < W)).astype(jnp.float32)
    wm = jnp.einsum("ckl,klhw->klchw", w_oihw[0].astype(jnp.float32), valid)
    wm = wm.reshape(KH * KW, C, L)                 # (49, C, H*W) ~ 784 KiB for 16x16

    if batch_tile is None:
        batch_tile = 2 if N % 2 == 0 else 1       # amortize per-grid-step overhead
    assert N % batch_tile == 0

    kernel = functools.partial(_spatial_attention_kernel, img_w=W, img_hw=L)

    out_flat = pl.pallas_call(
        kernel,
        out_shape=jax.ShapeDtypeStruct((N, C, L), x_nchw.dtype),
        grid=(N // batch_tile,),
        in_specs=[
            pl.BlockSpec((batch_tile, C, L), lambda b: (b, 0, 0)),
            pl.BlockSpec((batch_tile, C, L), lambda b: (b, 0, 0)),
            # Constant index_map -> weight planes are DMA'd once and stay VMEM-resident.
            pl.BlockSpec((KH * KW, C, L), lambda b: (0, 0, 0)),
        ],
        out_specs=pl.BlockSpec((batch_tile, C, L), lambda b: (b, 0, 0)),
        compiler_params=pltpu.CompilerParams(
            dimension_semantics=("parallel",)),
    )(x_flat, sp_flat, wm)

    # TODO(synk): for very large H*W (v7x: 64 MiB VMEM) add a spatially tiled grid axis
    # with 3-row halos fetched from neighboring rows; the weight-plane masking here is
    # only valid for full-extent spatial blocks.
    return out_flat.reshape(N, C, H, W)


def reference_forward(x_nchw, spacing_nchw, w_oihw):
    """Pure-JAX reference matching the PyTorch module exactly."""
    y = x_nchw + spacing_nchw
    conv = jax.lax.conv_general_dilated(
        y, w_oihw, window_strides=(1, 1), padding=((PAD, PAD), (PAD, PAD)),
        dimension_numbers=("NCHW", "OIHW", "NCHW"))
    attn = jax.nn.sigmoid(conv)
    return x_nchw * attn


if __name__ == "__main__":
    key = jax.random.PRNGKey(0)
    kx, ks, kw = jax.random.split(key, 3)

    N, C, H, W = 2, 16, 16, 16          # the conv fixes C = 16
    x = jax.random.normal(kx, (N, C, H, W), dtype=jnp.float32)
    spacing_position = jax.random.normal(ks, (N, C, H, W), dtype=jnp.float32)
    # deterministic synthetic conv weight, shape (out=1, in=16, 7, 7), no bias
    w = jax.random.normal(kw, (1, C, KH, KW), dtype=jnp.float32) * 0.05

    out = spatial_attention(x, spacing_position, w)
    out = jax.block_until_ready(out)

    ref = reference_forward(x, spacing_position, w)
    assert out.shape == (N, C, H, W)
    assert jnp.allclose(out, ref, atol=1e-4, rtol=1e-4), "mismatch vs reference"

    print("KERNEL_OK")
</pallas_src>

<mosaic_0001>
module attributes {stable_mosaic.version = 11 : i64} {
  func.func @_spatial_attention_kernel(%arg0: i32, %arg1: memref<2x16x256xf32, #tpu.memory_space<vmem>>, %arg2: memref<2x16x256xf32, #tpu.memory_space<vmem>>, %arg3: memref<49x16x256xf32, #tpu.memory_space<vmem>>, %arg4: memref<2x16x256xf32, #tpu.memory_space<vmem>>) attributes {dimension_semantics = [#tpu.dimension_semantics<parallel>], iteration_bounds = array<i64: 1>, scalar_prefetch = 0 : i64, scratch_operands = 0 : i64, tpu.core_type = #tpu.core_type<tc>, window_params = [{transform_indices = @transform_0, window_bounds = array<i64: 2, 16, 256>}, {transform_indices = @transform_1, window_bounds = array<i64: 2, 16, 256>}, {pipeline_mode = #tpu.pipeline_mode<synchronous>, transform_indices = @transform_2, window_bounds = array<i64: 49, 16, 256>}, {transform_indices = @transform_3, window_bounds = array<i64: 2, 16, 256>}]} {
    %c0 = arith.constant 0 : index
    %c0_0 = arith.constant 0 : index
    %c0_1 = arith.constant 0 : index
    %0 = vector.load %arg1[%c0, %c0_0, %c0_1] : memref<2x16x256xf32, #tpu.memory_space<vmem>>, vector<2x16x256xf32>
    %c0_2 = arith.constant 0 : index
    %c0_3 = arith.constant 0 : index
    %c0_4 = arith.constant 0 : index
    %1 = vector.load %arg2[%c0_2, %c0_3, %c0_4] : memref<2x16x256xf32, #tpu.memory_space<vmem>>, vector<2x16x256xf32>
    %2 = arith.addf %0, %1 : vector<2x16x256xf32>
    %cst = arith.constant 0.000000e+00 : f32
    %3 = vector.broadcast %cst : f32 to vector<2x16x256xf32>
    %cst_5 = arith.constant 0.000000e+00 : f32
    %4 = vector.broadcast %cst_5 : f32 to vector<2x16x256xf32>
    %cst_6 = arith.constant 0.000000e+00 : f32
    %5 = vector.broadcast %cst_6 : f32 to vector<2x16x256xf32>
    %cst_7 = arith.constant 0.000000e+00 : f32
    %6 = vector.broadcast %cst_7 : f32 to vector<2x16x256xf32>
    %7 = vector.extract_strided_slice %2 {offsets = [0, 0, 205], sizes = [2, 16, 51], strides = [1, 1, 1]} : vector<2x16x256xf32> to vector<2x16x51xf32>
    %8 = vector.extract_strided_slice %2 {offsets = [0, 0, 0], sizes = [2, 16, 205], strides = [1, 1, 1]} : vector<2x16x256xf32> to vector<2x16x205xf32>
    %9 = tpu.concatenate %7, %8 in 2 : vector<2x16x51xf32>, vector<2x16x205xf32> -> vector<2x16x256xf32>
    %c0_8 = arith.constant 0 : index
    %c0_9 = arith.constant 0 : index
    %c0_10 = arith.constant 0 : index
    %10 = vector.load %arg3[%c0_8, %c0_9, %c0_10] : memref<49x16x256xf32, #tpu.memory_space<vmem>>, vector<1x16x256xf32>
    %11 = vector.shape_cast %10 : vector<1x16x256xf32> to vector<16x256xf32>
    %12 = vector.shape_cast %11 : vector<16x256xf32> to vector<1x16x256xf32>
    %13 = vector.broadcast %12 : vector<1x16x256xf32> to vector<2x16x256xf32>
    %14 = arith.mulf %9, %13 : vector<2x16x256xf32>
    %15 = arith.addf %3, %14 : vector<2x16x256xf32>
    %16 = vector.extract_strided_slice %2 {offsets = [0, 0, 206], sizes = [2, 16, 50], strides = [1, 1, 1]} : vector<2x16x256xf32> to vector<2x16x50xf32>
    %17 = vector.extract_strided_slice %2 {offsets = [0, 0, 0], sizes = [2, 16, 206], strides = [1, 1, 1]} : vector<2x16x256xf32> to vector<2x16x206xf32>
    %18 = tpu.concatenate %16, %17 in 2 : vector<2x16x50xf32>, vector<2x16x206xf32> -> vector<2x16x256xf32>
    %c1 = arith.constant 1 : index
    %c0_11 = arith.constant 0 : index
    %c0_12 = arith.constant 0 : index
    %19 = vector.load %arg3[%c1, %c0_11, %c0_12] : memref<49x16x256xf32, #tpu.memory_space<vmem>>, vector<1x16x256xf32>
    %20 = vector.shape_cast %19 : vector<1x16x256xf32> to vector<16x256xf32>
    %21 = vector.shape_cast %20 : vector<16x256xf32> to vector<1x16x256xf32>
    %22 = vector.broadcast %21 : vector<1x16x256xf32> to vector<2x16x256xf32>
    %23 = arith.mulf %18, %22 : vector<2x16x256xf32>
    %24 = arith.addf %4, %23 : vector<2x16x256xf32>
    %25 = vector.extract_strided_slice %2 {offsets = [0, 0, 207], sizes = [2, 16, 49], strides = [1, 1, 1]} : vector<2x16x256xf32> to vector<2x16x49xf32>
    %26 = vector.extract_strided_slice %2 {offsets = [0, 0, 0], sizes = [2, 16, 207], strides = [1, 1, 1]} : vector<2x16x256xf32> to vector<2x16x207xf32>
    %27 = tpu.concatenate %25, %26 in 2 : vector<2x16x49xf32>, vector<2x16x207xf32> -> vector<2x16x256xf32>
    %c2 = arith.constant 2 : index
    %c0_13 = arith.constant 0 : index
    %c0_14 = arith.constant 0 : index
    %28 = vector.load %arg3[%c2, %c0_13, %c0_14] : memref<49x16x256xf32, #tpu.memory_space<vmem>>, vector<1x16x256xf32>
    %29 = vector.shape_cast %28 : vector<1x16x256xf32> to vector<16x256xf32>
    %30 = vector.shape_cast %29 : vector<16x256xf32> to vector<1x16x256xf32>
    %31 = vector.broadcast %30 : vector<1x16x256xf32> to vector<2x16x256xf32>
    %32 = arith.mulf %27, %31 : vector<2x16x256xf32>
    %33 = arith.addf %5, %32 : vector<2x16x256xf32>
    %34 = vector.extract_strided_slice %2 {offsets = [0, 0, 208], sizes = [2, 16, 48], strides = [1, 1, 1]} : vector<2x16x256xf32> to vector<2x16x48xf32>
    %35 = vector.extract_strided_slice %2 {offsets = [0, 0, 0], sizes = [2, 16, 208], strides = [1, 1, 1]} : vector<2x16x256xf32> to vector<2x16x208xf32>
    %36 = tpu.concatenate %34, %35 in 2 : vector<2x16x48xf32>, vector<2x16x208xf32> -> vector<2x16x256xf32>
    %c3 = arith.constant 3 : index
    %c0_15 = arith.constant 0 : index
    %c0_16 = arith.constant 0 : index
    %37 = vector.load %arg3[%c3, %c0_15, %c0_16] : memref<49x16x256xf32, #tpu.memory_space<vmem>>, vector<1x16x256xf32>
    %38 = vector.shape_cast %37 : vector<1x16x256xf32> to vector<16x256xf32>
    %39 = vector.shape_cast %38 : vector<16x256xf32> to vector<1x16x256xf32>
    %40 = vector.broadcast %39 : vector<1x16x256xf32> to vector<2x16x256xf32>
    %41 = arith.mulf %36, %40 : vector<2x16x256xf32>
    %42 = arith.addf %6, %41 : vector<2x16x256xf32>
    %43 = vector.extract_strided_slice %2 {offsets = [0, 0, 209], sizes = [2, 16, 47], strides = [1, 1, 1]} : vector<2x16x256xf32> to vector<2x16x47xf32>
    %44 = vector.extract_strided_slice %2 {offsets = [0, 0, 0], sizes = [2, 16, 209], strides = [1, 1, 1]} : vector<2x16x256xf32> to vector<2x16x209xf32>
    %45 = tpu.concatenate %43, %44 in 2 : vector<2x16x47xf32>, vector<2x16x209xf32> -> vector<2x16x256xf32>
    %c4 = arith.constant 4 : index
    %c0_17 = arith.constant 0 : index
    %c0_18 = arith.constant 0 : index
    %46 = vector.load %arg3[%c4, %c0_17, %c0_18] : memref<49x16x256xf32, #tpu.memory_space<vmem>>, vector<1x16x256xf32>
    %47 = vector.shape_cast %46 : vector<1x16x256xf32> to vector<16x256xf32>
    %48 = vector.shape_cast %47 : vector<16x256xf32> to vector<1x16x256xf32>
    %49 = vector.broadcast %48 : vector<1x16x256xf32> to vector<2x16x256xf32>
    %50 = arith.mulf %45, %49 : vector<2x16x256xf32>
    %51 = arith.addf %15, %50 : vector<2x16x256xf32>
    %52 = vector.extract_strided_slice %2 {offsets = [0, 0, 210], sizes = [2, 16, 46], strides = [1, 1, 1]} : vector<2x16x256xf32> to vector<2x16x46xf32>
    %53 = vector.extract_strided_slice %2 {offsets = [0, 0, 0], sizes = [2, 16, 210], strides = [1, 1, 1]} : vector<2x16x256xf32> to vector<2x16x210xf32>
    %54 = tpu.concatenate %52, %53 in 2 : vector<2x16x46xf32>, vector<2x16x210xf32> -> vector<2x16x256xf32>
    %c5 = arith.constant 5 : index
    %c0_19 = arith.constant 0 : index
    %c0_20 = arith.constant 0 : index
    %55 = vector.load %arg3[%c5, %c0_19, %c0_20] : memref<49x16x256xf32, #tpu.memory_space<vmem>>, vector<1x16x256xf32>
    %56 = vector.shape_cast %55 : vector<1x16x256xf32> to vector<16x256xf32>
    %57 = vector.shape_cast %56 : vector<16x256xf32> to vector<1x16x256xf32>
    %58 = vector.broadcast %57 : vector<1x16x256xf32> to vector<2x16x256xf32>
    %59 = arith.mulf %54, %58 : vector<2x16x256xf32>
    %60 = arith.addf %24, %59 : vector<2x16x256xf32>
    %61 = vector.extract_strided_slice %2 {offsets = [0, 0, 211], sizes = [2, 16, 45], strides = [1, 1, 1]} : vector<2x16x256xf32> to vector<2x16x45xf32>
    %62 = vector.extract_strided_slice %2 {offsets = [0, 0, 0], sizes = [2, 16, 211], strides = [1, 1, 1]} : vector<2x16x256xf32> to vector<2x16x211xf32>
    %63 = tpu.concatenate %61, %62 in 2 : vector<2x16x45xf32>, vector<2x16x211xf32> -> vector<2x16x256xf32>
    %c6 = arith.constant 6 : index
    %c0_21 = arith.constant 0 : index
    %c0_22 = arith.constant 0 : index
    %64 = vector.load %arg3[%c6, %c0_21, %c0_22] : memref<49x16x256xf32, #tpu.memory_space<vmem>>, vector<1x16x256xf32>
    %65 = vector.shape_cast %64 : vector<1x16x256xf32> to vector<16x256xf32>
    %66 = vector.shape_cast %65 : vector<16x256xf32> to vector<1x16x256xf32>
    %67 = vector.broadcast %66 : vector<1x16x256xf32> to vector<2x16x256xf32>
    %68 = arith.mulf %63, %67 : vector<2x16x256xf32>
    %69 = arith.addf %33, %68 : vector<2x16x256xf32>
    %70 = vector.extract_strided_slice %2 {offsets = [0, 0, 221], sizes = [2, 16, 35], strides = [1, 1, 1]} : vector<2x16x256xf32> to vector<2x16x35xf32>
    %71 = vector.extract_strided_slice %2 {offsets = [0, 0, 0], sizes = [2, 16, 221], strides = [1, 1, 1]} : vector<2x16x256xf32> to vector<2x16x221xf32>
    %72 = tpu.concatenate %70, %71 in 2 : vector<2x16x35xf32>, vector<2x16x221xf32> -> vector<2x16x256xf32>
    %c7 = arith.constant 7 : index
    %c0_23 = arith.constant 0 : index
    %c0_24 = arith.constant 0 : index
    %73 = vector.load %arg3[%c7, %c0_23, %c0_24] : memref<49x16x256xf32, #tpu.memory_space<vmem>>, vector<1x16x256xf32>
    %74 = vector.shape_cast %73 : vector<1x16x256xf32> to vector<16x256xf32>
    %75 = vector.shape_cast %74 : vector<16x256xf32> to vector<1x16x256xf32>
    %76 = vector.broadcast %75 : vector<1x16x256xf32> to vector<2x16x256xf32>
    %77 = arith.mulf %72, %76 : vector<2x16x256xf32>
    %78 = arith.addf %42, %77 : vector<2x16x256xf32>
    %79 = vector.extract_strided_slice %2 {offsets = [0, 0, 222], sizes = [2, 16, 34], strides = [1, 1, 1]} : vector<2x16x256xf32> to vector<2x16x34xf32>
    %80 = vector.extract_strided_slice %2 {offsets = [0, 0, 0], sizes = [2, 16, 222], strides = [1, 1, 1]} : vector<2x16x256xf32> to vector<2x16x222xf32>
    %81 = tpu.concatenate %79, %80 in 2 : vector<2x16x34xf32>, vector<2x16x222xf32> -> vector<2x16x256xf32>
    %c8 = arith.constant 8 : index
    %c0_25 = arith.constant 0 : index
    %c0_26 = arith.constant 0 : index
    %82 = vector.load %arg3[%c8, %c0_25, %c0_26] : memref<49x16x256xf32, #tpu.memory_space<vmem>>, vector<1x16x256xf32>
    %83 = vector.shape_cast %82 : vector<1x16x256xf32> to vector<16x256xf32>
    %84 = vector.shape_cast %83 : vector<16x256xf32> to vector<1x16x256xf32>
    %85 = vector.broadcast %84 : vector<1x16x256xf32> to vector<2x16x256xf32>
    %86 = arith.mulf %81, %85 : vector<2x16x256xf32>
    %87 = arith.addf %51, %86 : vector<2x16x256xf32>
    %88 = vector.extract_strided_slice %2 {offsets = [0, 0, 223], sizes = [2, 16, 33], strides = [1, 1, 1]} : vector<2x16x256xf32> to vector<2x16x33xf32>
    %89 = vector.extract_strided_slice %2 {offsets = [0, 0, 0], sizes = [2, 16, 223], strides = [1, 1, 1]} : vector<2x16x256xf32> to vector<2x16x223xf32>
    %90 = tpu.concatenate %88, %89 in 2 : vector<2x16x33xf32>, vector<2x16x223xf32> -> vector<2x16x256xf32>
    %c9 = arith.constant 9 : index
    %c0_27 = arith.constant 0 : index
    %c0_28 = arith.constant 0 : index
    %91 = vector.load %arg3[%c9, %c0_27, %c0_28] : memref<49x16x256xf32, #tpu.memory_space<vmem>>, vector<1x16x256xf32>
    %92 = vector.shape_cast %91 : vector<1x16x256xf32> to vector<16x256xf32>
    %93 = vector.shape_cast %92 : vector<16x256xf32> to vector<1x16x256xf32>
    %94 = vector.broadcast %93 : vector<1x16x256xf32> to vector<2x16x256xf32>
    %95 = arith.mulf %90, %94 : vector<2x16x256xf32>
    %96 = arith.addf %60, %95 : vector<2x16x256xf32>
    %97 = vector.extract_strided_slice %2 {offsets = [0, 0, 224], sizes = [2, 16, 32], strides = [1, 1, 1]} : vector<2x16x256xf32> to vector<2x16x32xf32>
    %98 = vector.extract_strided_slice %2 {offsets = [0, 0, 0], sizes = [2, 16, 224], strides = [1, 1, 1]} : vector<2x16x256xf32> to vector<2x16x224xf32>
    %99 = tpu.concatenate %97, %98 in 2 : vector<2x16x32xf32>, vector<2x16x224xf32> -> vector<2x16x256xf32>
    %c10 = arith.constant 10 : index
    %c0_29 = arith.constant 0 : index
    %c0_30 = arith.constant 0 : index
    %100 = vector.load %arg3[%c10, %c0_29, %c0_30] : memref<49x16x256xf32, #tpu.memory_space<vmem>>, vector<1x16x256xf32>
    %101 = vector.shape_cast %100 : vector<1x16x256xf32> to vector<16x256xf32>
    %102 = vector.shape_cast %101 : vector<16x256xf32> to vector<1x16x256xf32>
    %103 = vector.broadcast %102 : vector<1x16x256xf32> to vector<2x16x256xf32>
    %104 = arith.mulf %99, %103 : vector<2x16x256xf32>
    %105 = arith.addf %69, %104 : vector<2x16x256xf32>
    %106 = vector.extract_strided_slice %2 {offsets = [0, 0, 225], sizes = [2, 16, 31], strides = [1, 1, 1]} : vector<2x16x256xf32> to vector<2x16x31xf32>
    %107 = vector.extract_strided_slice %2 {offsets = [0, 0, 0], sizes = [2, 16, 225], strides = [1, 1, 1]} : vector<2x16x256xf32> to vector<2x16x225xf32>
    %108 = tpu.concatenate %106, %107 in 2 : vector<2x16x31xf32>, vector<2x16x225xf32> -> vector<2x16x256xf32>
    %c11 = arith.constant 11 : index
    %c0_31 = arith.constant 0 : index
    %c0_32 = arith.constant 0 : index
    %109 = vector.load %arg3[%c11, %c0_31, %c0_32] : memref<49x16x256xf32, #tpu.memory_space<vmem>>, vector<1x16x256xf32>
    %110 = vector.shape_cast %109 : vector<1x16x256xf32> to vector<16x256xf32>
    %111 = vector.shape_cast %110 : vector<16x256xf32> to vector<1x16x256xf32>
    %112 = vector.broadcast %111 : vector<1x16x256xf32> to vector<2x16x256xf32>
    %113 = arith.mulf %108, %112 : vector<2x16x256xf32>
    %114 = arith.addf %78, %113 : vector<2x16x256xf32>
    %115 = vector.extract_strided_slice %2 {offsets = [0, 0, 226], sizes = [2, 16, 30], strides = [1, 1, 1]} : vector<2x16x256xf32> to vector<2x16x30xf32>
    %116 = vector.extract_strided_slice %2 {offsets = [0, 0, 0], sizes = [2, 16, 226], strides = [1, 1, 1]} : vector<2x16x256xf32> to vector<2x16x226xf32>
    %117 = tpu.concatenate %115, %116 in 2 : vector<2x16x30xf32>, vector<2x16x226xf32> -> vector<2x16x256xf32>
    %c12 = arith.constant 12 : index
    %c0_33 = arith.constant 0 : index
    %c0_34 = arith.constant 0 : index
    %118 = vector.load %arg3[%c12, %c0_33, %c0_34] : memref<49x16x256xf32, #tpu.memory_space<vmem>>, vector<1x16x256xf32>
    %119 = vector.shape_cast %118 : vector<1x16x256xf32> to vector<16x256xf32>
    %120 = vector.shape_cast %119 : vector<16x256xf32> to vector<1x16x256xf32>
    %121 = vector.broadcast %120 : vector<1x16x256xf32> to vector<2x16x256xf32>
    %122 = arith.mulf %117, %121 : vector<2x16x256xf32>
    %123 = arith.addf %87, %122 : vector<2x16x256xf32>
    %124 = vector.extract_strided_slice %2 {offsets = [0, 0, 227], sizes = [2, 16, 29], strides = [1, 1, 1]} : vector<2x16x256xf32> to vector<2x16x29xf32>
    %125 = vector.extract_strided_slice %2 {offsets = [0, 0, 0], sizes = [2, 16, 227], strides = [1, 1, 1]} : vector<2x16x256xf32> to vector<2x16x227xf32>
    %126 = tpu.concatenate %124, %125 in 2 : vector<2x16x29xf32>, vector<2x16x227xf32> -> vector<2x16x256xf32>
    %c13 = arith.constant 13 : index
    %c0_35 = arith.constant 0 : index
    %c0_36 = arith.constant 0 : index
    %127 = vector.load %arg3[%c13, %c0_35, %c0_36] : memref<49x16x256xf32, #tpu.memory_space<vmem>>, vector<1x16x256xf32>
    %128 = vector.shape_cast %127 : vector<1x16x256xf32> to vector<16x256xf32>
    %129 = vector.shape_cast %128 : vector<16x256xf32> to vector<1x16x256xf32>
    %130 = vector.broadcast %129 : vector<1x16x256xf32> to vector<2x16x256xf32>
    %131 = arith.mulf %126, %130 : vector<2x16x256xf32>
    %132 = arith.addf %96, %131 : vector<2x16x256xf32>
    %133 = vector.extract_strided_slice %2 {offsets = [0, 0, 237], sizes = [2, 16, 19], strides = [1, 1, 1]} : vector<2x16x256xf32> to vector<2x16x19xf32>
    %134 = vector.extract_strided_slice %2 {offsets = [0, 0, 0], sizes = [2, 16, 237], strides = [1, 1, 1]} : vector<2x16x256xf32> to vector<2x16x237xf32>
    %135 = tpu.concatenate %133, %134 in 2 : vector<2x16x19xf32>, vector<2x16x237xf32> -> vector<2x16x256xf32>
    %c14 = arith.constant 14 : index
    %c0_37 = arith.constant 0 : index
    %c0_38 = arith.constant 0 : index
    %136 = vector.load %arg3[%c14, %c0_37, %c0_38] : memref<49x16x256xf32, #tpu.memory_space<vmem>>, vector<1x16x256xf32>
    %137 = vector.shape_cast %136 : vector<1x16x256xf32> to vector<16x256xf32>
    %138 = vector.shape_cast %137 : vector<16x256xf32> to vector<1x16x256xf32>
    %139 = vector.broadcast %138 : vector<1x16x256xf32> to vector<2x16x256xf32>
    %140 = arith.mulf %135, %139 : vector<2x16x256xf32>
    %141 = arith.addf %105, %140 : vector<2x16x256xf32>
    %142 = vector.extract_strided_slice %2 {offsets = [0, 0, 238], sizes = [2, 16, 18], strides = [1, 1, 1]} : vector<2x16x256xf32> to vector<2x16x18xf32>
    %143 = vector.extract_strided_slice %2 {offsets = [0, 0, 0], sizes = [2, 16, 238], strides = [1, 1, 1]} : vector<2x16x256xf32> to vector<2x16x238xf32>
    %144 = tpu.concatenate %142, %143 in 2 : vector<2x16x18xf32>, vector<2x16x238xf32> -> vector<2x16x256xf32>
    %c15 = arith.constant 15 : index
    %c0_39 = arith.constant 0 : index
    %c0_40 = arith.constant 0 : index
    %145 = vector.load %arg3[%c15, %c0_39, %c0_40] : memref<49x16x256xf32, #tpu.memory_space<vmem>>, vector<1x16x256xf32>
    %146 = vector.shape_cast %145 : vector<1x16x256xf32> to vector<16x256xf32>
    %147 = vector.shape_cast %146 : vector<16x256xf32> to vector<1x16x256xf32>
    %148 = vector.broadcast %147 : vector<1x16x256xf32> to vector<2x16x256xf32>
    %149 = arith.mulf %144, %148 : vector<2x16x256xf32>
    %150 = arith.addf %114, %149 : vector<2x16x256xf32>
    %151 = vector.extract_strided_slice %2 {offsets = [0, 0, 239], sizes = [2, 16, 17], strides = [1, 1, 1]} : vector<2x16x256xf32> to vector<2x16x17xf32>
    %152 = vector.extract_strided_slice %2 {offsets = [0, 0, 0], sizes = [2, 16, 239], strides = [1, 1, 1]} : vector<2x16x256xf32> to vector<2x16x239xf32>
    %153 = tpu.concatenate %151, %152 in 2 : vector<2x16x17xf32>, vector<2x16x239xf32> -> vector<2x16x256xf32>
    %c16 = arith.constant 16 : index
    %c0_41 = arith.constant 0 : index
    %c0_42 = arith.constant 0 : index
    %154 = vector.load %arg3[%c16, %c0_41, %c0_42] : memref<49x16x256xf32, #tpu.memory_space<vmem>>, vector<1x16x256xf32>
    %155 = vector.shape_cast %154 : vector<1x16x256xf32> to vector<16x256xf32>
    %156 = vector.shape_cast %155 : vector<16x256xf32> to vector<1x16x256xf32>
    %157 = vector.broadcast %156 : vector<1x16x256xf32> to vector<2x16x256xf32>
    %158 = arith.mulf %153, %157 : vector<2x16x256xf32>
    %159 = arith.addf %123, %158 : vector<2x16x256xf32>
    %160 = vector.extract_strided_slice %2 {offsets = [0, 0, 240], sizes = [2, 16, 16], strides = [1, 1, 1]} : vector<2x16x256xf32> to vector<2x16x16xf32>
    %161 = vector.extract_strided_slice %2 {offsets = [0, 0, 0], sizes = [2, 16, 240], strides = [1, 1, 1]} : vector<2x16x256xf32> to vector<2x16x240xf32>
    %162 = tpu.concatenate %160, %161 in 2 : vector<2x16x16xf32>, vector<2x16x240xf32> -> vector<2x16x256xf32>
    %c17 = arith.constant 17 : index
    %c0_43 = arith.constant 0 : index
    %c0_44 = arith.constant 0 : index
    %163 = vector.load %arg3[%c17, %c0_43, %c0_44] : memref<49x16x256xf32, #tpu.memory_space<vmem>>, vector<1x16x256xf32>
    %164 = vector.shape_cast %163 : vector<1x16x256xf32> to vector<16x256xf32>
    %165 = vector.shape_cast %164 : vector<16x256xf32> to vector<1x16x256xf32>
    %166 = vector.broadcast %165 : vector<1x16x256xf32> to vector<2x16x256xf32>
    %167 = arith.mulf %162, %166 : vector<2x16x256xf32>
    %168 = arith.addf %132, %167 : vector<2x16x256xf32>
    %169 = vector.extract_strided_slice %2 {offsets = [0, 0, 241], sizes = [2, 16, 15], strides = [1, 1, 1]} : vector<2x16x256xf32> to vector<2x16x15xf32>
    %170 = vector.extract_strided_slice %2 {offsets = [0, 0, 0], sizes = [2, 16, 241], strides = [1, 1, 1]} : vector<2x16x256xf32> to vector<2x16x241xf32>
    %171 = tpu.concatenate %169, %170 in 2 : vector<2x16x15xf32>, vector<2x16x241xf32> -> vector<2x16x256xf32>
    %c18 = arith.constant 18 : index
    %c0_45 = arith.constant 0 : index
    %c0_46 = arith.constant 0 : index
    %172 = vector.load %arg3[%c18, %c0_45, %c0_46] : memref<49x16x256xf32, #tpu.memory_space<vmem>>, vector<1x16x256xf32>
    %173 = vector.shape_cast %172 : vector<1x16x256xf32> to vector<16x256xf32>
    %174 = vector.shape_cast %173 : vector<16x256xf32> to vector<1x16x256xf32>
    %175 = vector.broadcast %174 : vector<1x16x256xf32> to vector<2x16x256xf32>
    %176 = arith.mulf %171, %175 : vector<2x16x256xf32>
    %177 = arith.addf %141, %176 : vector<2x16x256xf32>
    %178 = vector.extract_strided_slice %2 {offsets = [0, 0, 242], sizes = [2, 16, 14], strides = [1, 1, 1]} : vector<2x16x256xf32> to vector<2x16x14xf32>
    %179 = vector.extract_strided_slice %2 {offsets = [0, 0, 0], sizes = [2, 16, 242], strides = [1, 1, 1]} : vector<2x16x256xf32> to vector<2x16x242xf32>
    %180 = tpu.concatenate %178, %179 in 2 : vector<2x16x14xf32>, vector<2x16x242xf32> -> vector<2x16x256xf32>
    %c19 = arith.constant 19 : index
    %c0_47 = arith.constant 0 : index
    %c0_48 = arith.constant 0 : index
    %181 = vector.load %arg3[%c19, %c0_47, %c0_48] : memref<49x16x256xf32, #tpu.memory_space<vmem>>, vector<1x16x256xf32>
    %182 = vector.shape_cast %181 : vector<1x16x256xf32> to vector<16x256xf32>
    %183 = vector.shape_cast %182 : vector<16x256xf32> to vector<1x16x256xf32>
    %184 = vector.broadcast %183 : vector<1x16x256xf32> to vector<2x16x256xf32>
    %185 = arith.mulf %180, %184 : vector<2x16x256xf32>
    %186 = arith.addf %150, %185 : vector<2x16x256xf32>
    %187 = vector.extract_strided_slice %2 {offsets = [0, 0, 243], sizes = [2, 16, 13], strides = [1, 1, 1]} : vector<2x16x256xf32> to vector<2x16x13xf32>
    %188 = vector.extract_strided_slice %2 {offsets = [0, 0, 0], sizes = [2, 16, 243], strides = [1, 1, 1]} : vector<2x16x256xf32> to vector<2x16x243xf32>
    %189 = tpu.concatenate %187, %188 in 2 : vector<2x16x13xf32>, vector<2x16x243xf32> -> vector<2x16x256xf32>
    %c20 = arith.constant 20 : index
    %c0_49 = arith.constant 0 : index
    %c0_50 = arith.constant 0 : index
    %190 = vector.load %arg3[%c20, %c0_49, %c0_50] : memref<49x16x256xf32, #tpu.memory_space<vmem>>, vector<1x16x256xf32>
    %191 = vector.shape_cast %190 : vector<1x16x256xf32> to vector<16x256xf32>
    %192 = vector.shape_cast %191 : vector<16x256xf32> to vector<1x16x256xf32>
    %193 = vector.broadcast %192 : vector<1x16x256xf32> to vector<2x16x256xf32>
    %194 = arith.mulf %189, %193 : vector<2x16x256xf32>
    %195 = arith.addf %159, %194 : vector<2x16x256xf32>
    %196 = vector.extract_strided_slice %2 {offsets = [0, 0, 253], sizes = [2, 16, 3], strides = [1, 1, 1]} : vector<2x16x256xf32> to vector<2x16x3xf32>
    %197 = vector.extract_strided_slice %2 {offsets = [0, 0, 0], sizes = [2, 16, 253], strides = [1, 1, 1]} : vector<2x16x256xf32> to vector<2x16x253xf32>
    %198 = tpu.concatenate %196, %197 in 2 : vector<2x16x3xf32>, vector<2x16x253xf32> -> vector<2x16x256xf32>
    %c21 = arith.constant 21 : index
    %c0_51 = arith.constant 0 : index
    %c0_52 = arith.constant 0 : index
    %199 = vector.load %arg3[%c21, %c0_51, %c0_52] : memref<49x16x256xf32, #tpu.memory_space<vmem>>, vector<1x16x256xf32>
    %200 = vector.shape_cast %199 : vector<1x16x256xf32> to vector<16x256xf32>
    %201 = vector.shape_cast %200 : vector<16x256xf32> to vector<1x16x256xf32>
    %202 = vector.broadcast %201 : vector<1x16x256xf32> to vector<2x16x256xf32>
    %203 = arith.mulf %198, %202 : vector<2x16x256xf32>
    %204 = arith.addf %168, %203 : vector<2x16x256xf32>
    %205 = vector.extract_strided_slice %2 {offsets = [0, 0, 254], sizes = [2, 16, 2], strides = [1, 1, 1]} : vector<2x16x256xf32> to vector<2x16x2xf32>
    %206 = vector.extract_strided_slice %2 {offsets = [0, 0, 0], sizes = [2, 16, 254], strides = [1, 1, 1]} : vector<2x16x256xf32> to vector<2x16x254xf32>
    %207 = tpu.concatenate %205, %206 in 2 : vector<2x16x2xf32>, vector<2x16x254xf32> -> vector<2x16x256xf32>
    %c22 = arith.constant 22 : index
    %c0_53 = arith.constant 0 : index
    %c0_54 = arith.constant 0 : index
    %208 = vector.load %arg3[%c22, %c0_53, %c0_54] : memref<49x16x256xf32, #tpu.memory_space<vmem>>, vector<1x16x256xf32>
    %209 = vector.shape_cast %208 : vector<1x16x256xf32> to vector<16x256xf32>
    %210 = vector.shape_cast %209 : vector<16x256xf32> to vector<1x16x256xf32>
    %211 = vector.broadcast %210 : vector<1x16x256xf32> to vector<2x16x256xf32>
    %212 = arith.mulf %207, %211 : vector<2x16x256xf32>
    %213 = arith.addf %177, %212 : vector<2x16x256xf32>
    %214 = vector.extract_strided_slice %2 {offsets = [0, 0, 255], sizes = [2, 16, 1], strides = [1, 1, 1]} : vector<2x16x256xf32> to vector<2x16x1xf32>
    %215 = vector.extract_strided_slice %2 {offsets = [0, 0, 0], sizes = [2, 16, 255], strides = [1, 1, 1]} : vector<2x16x256xf32> to vector<2x16x255xf32>
    %216 = tpu.concatenate %214, %215 in 2 : vector<2x16x1xf32>, vector<2x16x255xf32> -> vector<2x16x256xf32>
    %c23 = arith.constant 23 : index
    %c0_55 = arith.constant 0 : index
    %c0_56 = arith.constant 0 : index
    %217 = vector.load %arg3[%c23, %c0_55, %c0_56] : memref<49x16x256xf32, #tpu.memory_space<vmem>>, vector<1x16x256xf32>
    %218 = vector.shape_cast %217 : vector<1x16x256xf32> to vector<16x256xf32>
    %219 = vector.shape_cast %218 : vector<16x256xf32> to vector<1x16x256xf32>
    %220 = vector.broadcast %219 : vector<1x16x256xf32> to vector<2x16x256xf32>
    %221 = arith.mulf %216, %220 : vector<2x16x256xf32>
    %222 = arith.addf %186, %221 : vector<2x16x256xf32>
    %c24 = arith.constant 24 : index
    %c0_57 = arith.constant 0 : index
    %c0_58 = arith.constant 0 : index
    %223 = vector.load %arg3[%c24, %c0_57, %c0_58] : memref<49x16x256xf32, #tpu.memory_space<vmem>>, vector<1x16x256xf32>
    %224 = vector.shape_cast %223 : vector<1x16x256xf32> to vector<16x256xf32>
    %225 = vector.shape_cast %224 : vector<16x256xf32> to vector<1x16x256xf32>
    %226 = vector.broadcast %225 : vector<1x16x256xf32> to vector<2x16x256xf32>
    %227 = arith.mulf %2, %226 : vector<2x16x256xf32>
    %228 = arith.addf %195, %227 : vector<2x16x256xf32>
    %229 = vector.extract_strided_slice %2 {offsets = [0, 0, 1], sizes = [2, 16, 255], strides = [1, 1, 1]} : vector<2x16x256xf32> to vector<2x16x255xf32>
    %230 = vector.extract_strided_slice %2 {offsets = [0, 0, 0], sizes = [2, 16, 1], strides = [1, 1, 1]} : vector<2x16x256xf32> to vector<2x16x1xf32>
    %231 = tpu.concatenate %229, %230 in 2 : vector<2x16x255xf32>, vector<2x16x1xf32> -> vector<2x16x256xf32>
    %c25 = arith.constant 25 : index
    %c0_59 = arith.constant 0 : index
    %c0_60 = arith.constant 0 : index
    %232 = vector.load %arg3[%c25, %c0_59, %c0_60] : memref<49x16x256xf32, #tpu.memory_space<vmem>>, vector<1x16x256xf32>
    %233 = vector.shape_cast %232 : vector<1x16x256xf32> to vector<16x256xf32>
    %234 = vector.shape_cast %233 : vector<16x256xf32> to vector<1x16x256xf32>
    %235 = vector.broadcast %234 : vector<1x16x256xf32> to vector<2x16x256xf32>
    %236 = arith.mulf %231, %235 : vector<2x16x256xf32>
    %237 = arith.addf %204, %236 : vector<2x16x256xf32>
    %238 = vector.extract_strided_slice %2 {offsets = [0, 0, 2], sizes = [2, 16, 254], strides = [1, 1, 1]} : vector<2x16x256xf32> to vector<2x16x254xf32>
    %239 = vector.extract_strided_slice %2 {offsets = [0, 0, 0], sizes = [2, 16, 2], strides = [1, 1, 1]} : vector<2x16x256xf32> to vector<2x16x2xf32>
    %240 = tpu.concatenate %238, %239 in 2 : vector<2x16x254xf32>, vector<2x16x2xf32> -> vector<2x16x256xf32>
    %c26 = arith.constant 26 : index
    %c0_61 = arith.constant 0 : index
    %c0_62 = arith.constant 0 : index
    %241 = vector.load %arg3[%c26, %c0_61, %c0_62] : memref<49x16x256xf32, #tpu.memory_space<vmem>>, vector<1x16x256xf32>
    %242 = vector.shape_cast %241 : vector<1x16x256xf32> to vector<16x256xf32>
    %243 = vector.shape_cast %242 : vector<16x256xf32> to vector<1x16x256xf32>
    %244 = vector.broadcast %243 : vector<1x16x256xf32> to vector<2x16x256xf32>
    %245 = arith.mulf %240, %244 : vector<2x16x256xf32>
    %246 = arith.addf %213, %245 : vector<2x16x256xf32>
    %247 = vector.extract_strided_slice %2 {offsets = [0, 0, 3], sizes = [2, 16, 253], strides = [1, 1, 1]} : vector<2x16x256xf32> to vector<2x16x253xf32>
    %248 = vector.extract_strided_slice %2 {offsets = [0, 0, 0], sizes = [2, 16, 3], strides = [1, 1, 1]} : vector<2x16x256xf32> to vector<2x16x3xf32>
    %249 = tpu.concatenate %247, %248 in 2 : vector<2x16x253xf32>, vector<2x16x3xf32> -> vector<2x16x256xf32>
    %c27 = arith.constant 27 : index
    %c0_63 = arith.constant 0 : index
    %c0_64 = arith.constant 0 : index
    %250 = vector.load %arg3[%c27, %c0_63, %c0_64] : memref<49x16x256xf32, #tpu.memory_space<vmem>>, vector<1x16x256xf32>
    %251 = vector.shape_cast %250 : vector<1x16x256xf32> to vector<16x256xf32>
    %252 = vector.shape_cast %251 : vector<16x256xf32> to vector<1x16x256xf32>
    %253 = vector.broadcast %252 : vector<1x16x256xf32> to vector<2x16x256xf32>
    %254 = arith.mulf %249, %253 : vector<2x16x256xf32>
    %255 = arith.addf %222, %254 : vector<2x16x256xf32>
    %256 = vector.extract_strided_slice %2 {offsets = [0, 0, 13], sizes = [2, 16, 243], strides = [1, 1, 1]} : vector<2x16x256xf32> to vector<2x16x243xf32>
    %257 = vector.extract_strided_slice %2 {offsets = [0, 0, 0], sizes = [2, 16, 13], strides = [1, 1, 1]} : vector<2x16x256xf32> to vector<2x16x13xf32>
    %258 = tpu.concatenate %256, %257 in 2 : vector<2x16x243xf32>, vector<2x16x13xf32> -> vector<2x16x256xf32>
    %c28 = arith.constant 28 : index
    %c0_65 = arith.constant 0 : index
    %c0_66 = arith.constant 0 : index
    %259 = vector.load %arg3[%c28, %c0_65, %c0_66] : memref<49x16x256xf32, #tpu.memory_space<vmem>>, vector<1x16x256xf32>
    %260 = vector.shape_cast %259 : vector<1x16x256xf32> to vector<16x256xf32>
    %261 = vector.shape_cast %260 : vector<16x256xf32> to vector<1x16x256xf32>
    %262 = vector.broadcast %261 : vector<1x16x256xf32> to vector<2x16x256xf32>
    %263 = arith.mulf %258, %262 : vector<2x16x256xf32>
    %264 = arith.addf %228, %263 : vector<2x16x256xf32>
    %265 = vector.extract_strided_slice %2 {offsets = [0, 0, 14], sizes = [2, 16, 242], strides = [1, 1, 1]} : vector<2x16x256xf32> to vector<2x16x242xf32>
    %266 = vector.extract_strided_slice %2 {offsets = [0, 0, 0], sizes = [2, 16, 14], strides = [1, 1, 1]} : vector<2x16x256xf32> to vector<2x16x14xf32>
    %267 = tpu.concatenate %265, %266 in 2 : vector<2x16x242xf32>, vector<2x16x14xf32> -> vector<2x16x256xf32>
    %c29 = arith.constant 29 : index
    %c0_67 = arith.constant 0 : index
    %c0_68 = arith.constant 0 : index
    %268 = vector.load %arg3[%c29, %c0_67, %c0_68] : memref<49x16x256xf32, #tpu.memory_space<vmem>>, vector<1x16x256xf32>
    %269 = vector.shape_cast %268 : vector<1x16x256xf32> to vector<16x256xf32>
    %270 = vector.shape_cast %269 : vector<16x256xf32> to vector<1x16x256xf32>
    %271 = vector.broadcast %270 : vector<1x16x256xf32> to vector<2x16x256xf32>
    %272 = arith.mulf %267, %271 : vector<2x16x256xf32>
    %273 = arith.addf %237, %272 : vector<2x16x256xf32>
    %274 = vector.extract_strided_slice %2 {offsets = [0, 0, 15], sizes = [2, 16, 241], strides = [1, 1, 1]} : vector<2x16x256xf32> to vector<2x16x241xf32>
    %275 = vector.extract_strided_slice %2 {offsets = [0, 0, 0], sizes = [2, 16, 15], strides = [1, 1, 1]} : vector<2x16x256xf32> to vector<2x16x15xf32>
    %276 = tpu.concatenate %274, %275 in 2 : vector<2x16x241xf32>, vector<2x16x15xf32> -> vector<2x16x256xf32>
    %c30 = arith.constant 30 : index
    %c0_69 = arith.constant 0 : index
    %c0_70 = arith.constant 0 : index
    %277 = vector.load %arg3[%c30, %c0_69, %c0_70] : memref<49x16x256xf32, #tpu.memory_space<vmem>>, vector<1x16x256xf32>
    %278 = vector.shape_cast %277 : vector<1x16x256xf32> to vector<16x256xf32>
    %279 = vector.shape_cast %278 : vector<16x256xf32> to vector<1x16x256xf32>
    %280 = vector.broadcast %279 : vector<1x16x256xf32> to vector<2x16x256xf32>
    %281 = arith.mulf %276, %280 : vector<2x16x256xf32>
    %282 = arith.addf %246, %281 : vector<2x16x256xf32>
    %283 = vector.extract_strided_slice %2 {offsets = [0, 0, 16], sizes = [2, 16, 240], strides = [1, 1, 1]} : vector<2x16x256xf32> to vector<2x16x240xf32>
    %284 = vector.extract_strided_slice %2 {offsets = [0, 0, 0], sizes = [2, 16, 16], strides = [1, 1, 1]} : vector<2x16x256xf32> to vector<2x16x16xf32>
    %285 = tpu.concatenate %283, %284 in 2 : vector<2x16x240xf32>, vector<2x16x16xf32> -> vector<2x16x256xf32>
    %c31 = arith.constant 31 : index
    %c0_71 = arith.constant 0 : index
    %c0_72 = arith.constant 0 : index
    %286 = vector.load %arg3[%c31, %c0_71, %c0_72] : memref<49x16x256xf32, #tpu.memory_space<vmem>>, vector<1x16x256xf32>
    %287 = vector.shape_cast %286 : vector<1x16x256xf32> to vector<16x256xf32>
    %288 = vector.shape_cast %287 : vector<16x256xf32> to vector<1x16x256xf32>
    %289 = vector.broadcast %288 : vector<1x16x256xf32> to vector<2x16x256xf32>
    %290 = arith.mulf %285, %289 : vector<2x16x256xf32>
    %291 = arith.addf %255, %290 : vector<2x16x256xf32>
    %292 = vector.extract_strided_slice %2 {offsets = [0, 0, 17], sizes = [2, 16, 239], strides = [1, 1, 1]} : vector<2x16x256xf32> to vector<2x16x239xf32>
    %293 = vector.extract_strided_slice %2 {offsets = [0, 0, 0], sizes = [2, 16, 17], strides = [1, 1, 1]} : vector<2x16x256xf32> to vector<2x16x17xf32>
    %294 = tpu.concatenate %292, %293 in 2 : vector<2x16x239xf32>, vector<2x16x17xf32> -> vector<2x16x256xf32>
    %c32 = arith.constant 32 : index
    %c0_73 = arith.constant 0 : index
    %c0_74 = arith.constant 0 : index
    %295 = vector.load %arg3[%c32, %c0_73, %c0_74] : memref<49x16x256xf32, #tpu.memory_space<vmem>>, vector<1x16x256xf32>
    %296 = vector.shape_cast %295 : vector<1x16x256xf32> to vector<16x256xf32>
    %297 = vector.shape_cast %296 : vector<16x256xf32> to vector<1x16x256xf32>
    %298 = vector.broadcast %297 : vector<1x16x256xf32> to vector<2x16x256xf32>
    %299 = arith.mulf %294, %298 : vector<2x16x256xf32>
    %300 = arith.addf %264, %299 : vector<2x16x256xf32>
    %301 = vector.extract_strided_slice %2 {offsets = [0, 0, 18], sizes = [2, 16, 238], strides = [1, 1, 1]} : vector<2x16x256xf32> to vector<2x16x238xf32>
    %302 = vector.extract_strided_slice %2 {offsets = [0, 0, 0], sizes = [2, 16, 18], strides = [1, 1, 1]} : vector<2x16x256xf32> to vector<2x16x18xf32>
    %303 = tpu.concatenate %301, %302 in 2 : vector<2x16x238xf32>, vector<2x16x18xf32> -> vector<2x16x256xf32>
    %c33 = arith.constant 33 : index
    %c0_75 = arith.constant 0 : index
    %c0_76 = arith.constant 0 : index
    %304 = vector.load %arg3[%c33, %c0_75, %c0_76] : memref<49x16x256xf32, #tpu.memory_space<vmem>>, vector<1x16x256xf32>
    %305 = vector.shape_cast %304 : vector<1x16x256xf32> to vector<16x256xf32>
    %306 = vector.shape_cast %305 : vector<16x256xf32> to vector<1x16x256xf32>
    %307 = vector.broadcast %306 : vector<1x16x256xf32> to vector<2x16x256xf32>
    %308 = arith.mulf %303, %307 : vector<2x16x256xf32>
    %309 = arith.addf %273, %308 : vector<2x16x256xf32>
    %310 = vector.extract_strided_slice %2 {offsets = [0, 0, 19], sizes = [2, 16, 237], strides = [1, 1, 1]} : vector<2x16x256xf32> to vector<2x16x237xf32>
    %311 = vector.extract_strided_slice %2 {offsets = [0, 0, 0], sizes = [2, 16, 19], strides = [1, 1, 1]} : vector<2x16x256xf32> to vector<2x16x19xf32>
    %312 = tpu.concatenate %310, %311 in 2 : vector<2x16x237xf32>, vector<2x16x19xf32> -> vector<2x16x256xf32>
    %c34 = arith.constant 34 : index
    %c0_77 = arith.constant 0 : index
    %c0_78 = arith.constant 0 : index
    %313 = vector.load %arg3[%c34, %c0_77, %c0_78] : memref<49x16x256xf32, #tpu.memory_space<vmem>>, vector<1x16x256xf32>
    %314 = vector.shape_cast %313 : vector<1x16x256xf32> to vector<16x256xf32>
    %315 = vector.shape_cast %314 : vector<16x256xf32> to vector<1x16x256xf32>
    %316 = vector.broadcast %315 : vector<1x16x256xf32> to vector<2x16x256xf32>
    %317 = arith.mulf %312, %316 : vector<2x16x256xf32>
    %318 = arith.addf %282, %317 : vector<2x16x256xf32>
    %319 = vector.extract_strided_slice %2 {offsets = [0, 0, 29], sizes = [2, 16, 227], strides = [1, 1, 1]} : vector<2x16x256xf32> to vector<2x16x227xf32>
    %320 = vector.extract_strided_slice %2 {offsets = [0, 0, 0], sizes = [2, 16, 29], strides = [1, 1, 1]} : vector<2x16x256xf32> to vector<2x16x29xf32>
    %321 = tpu.concatenate %319, %320 in 2 : vector<2x16x227xf32>, vector<2x16x29xf32> -> vector<2x16x256xf32>
    %c35 = arith.constant 35 : index
    %c0_79 = arith.constant 0 : index
    %c0_80 = arith.constant 0 : index
    %322 = vector.load %arg3[%c35, %c0_79, %c0_80] : memref<49x16x256xf32, #tpu.memory_space<vmem>>, vector<1x16x256xf32>
    %323 = vector.shape_cast %322 : vector<1x16x256xf32> to vector<16x256xf32>
    %324 = vector.shape_cast %323 : vector<16x256xf32> to vector<1x16x256xf32>
    %325 = vector.broadcast %324 : vector<1x16x256xf32> to vector<2x16x256xf32>
    %326 = arith.mulf %321, %325 : vector<2x16x256xf32>
    %327 = arith.addf %291, %326 : vector<2x16x256xf32>
    %328 = vector.extract_strided_slice %2 {offsets = [0, 0, 30], sizes = [2, 16, 226], strides = [1, 1, 1]} : vector<2x16x256xf32> to vector<2x16x226xf32>
    %329 = vector.extract_strided_slice %2 {offsets = [0, 0, 0], sizes = [2, 16, 30], strides = [1, 1, 1]} : vector<2x16x256xf32> to vector<2x16x30xf32>
    %330 = tpu.concatenate %328, %329 in 2 : vector<2x16x226xf32>, vector<2x16x30xf32> -> vector<2x16x256xf32>
    %c36 = arith.constant 36 : index
    %c0_81 = arith.constant 0 : index
    %c0_82 = arith.constant 0 : index
    %331 = vector.load %arg3[%c36, %c0_81, %c0_82] : memref<49x16x256xf32, #tpu.memory_space<vmem>>, vector<1x16x256xf32>
    %332 = vector.shape_cast %331 : vector<1x16x256xf32> to vector<16x256xf32>
    %333 = vector.shape_cast %332 : vector<16x256xf32> to vector<1x16x256xf32>
    %334 = vector.broadcast %333 : vector<1x16x256xf32> to vector<2x16x256xf32>
    %335 = arith.mulf %330, %334 : vector<2x16x256xf32>
    %336 = arith.addf %300, %335 : vector<2x16x256xf32>
    %337 = vector.extract_strided_slice %2 {offsets = [0, 0, 31], sizes = [2, 16, 225], strides = [1, 1, 1]} : vector<2x16x256xf32> to vector<2x16x225xf32>
    %338 = vector.extract_strided_slice %2 {offsets = [0, 0, 0], sizes = [2, 16, 31], strides = [1, 1, 1]} : vector<2x16x256xf32> to vector<2x16x31xf32>
    %339 = tpu.concatenate %337, %338 in 2 : vector<2x16x225xf32>, vector<2x16x31xf32> -> vector<2x16x256xf32>
    %c37 = arith.constant 37 : index
    %c0_83 = arith.constant 0 : index
    %c0_84 = arith.constant 0 : index
    %340 = vector.load %arg3[%c37, %c0_83, %c0_84] : memref<49x16x256xf32, #tpu.memory_space<vmem>>, vector<1x16x256xf32>
    %341 = vector.shape_cast %340 : vector<1x16x256xf32> to vector<16x256xf32>
    %342 = vector.shape_cast %341 : vector<16x256xf32> to vector<1x16x256xf32>
    %343 = vector.broadcast %342 : vector<1x16x256xf32> to vector<2x16x256xf32>
    %344 = arith.mulf %339, %343 : vector<2x16x256xf32>
    %345 = arith.addf %309, %344 : vector<2x16x256xf32>
    %346 = vector.extract_strided_slice %2 {offsets = [0, 0, 32], sizes = [2, 16, 224], strides = [1, 1, 1]} : vector<2x16x256xf32> to vector<2x16x224xf32>
    %347 = vector.extract_strided_slice %2 {offsets = [0, 0, 0], sizes = [2, 16, 32], strides = [1, 1, 1]} : vector<2x16x256xf32> to vector<2x16x32xf32>
    %348 = tpu.concatenate %346, %347 in 2 : vector<2x16x224xf32>, vector<2x16x32xf32> -> vector<2x16x256xf32>
    %c38 = arith.constant 38 : index
    %c0_85 = arith.constant 0 : index
    %c0_86 = arith.constant 0 : index
    %349 = vector.load %arg3[%c38, %c0_85, %c0_86] : memref<49x16x256xf32, #tpu.memory_space<vmem>>, vector<1x16x256xf32>
    %350 = vector.shape_cast %349 : vector<1x16x256xf32> to vector<16x256xf32>
    %351 = vector.shape_cast %350 : vector<16x256xf32> to vector<1x16x256xf32>
    %352 = vector.broadcast %351 : vector<1x16x256xf32> to vector<2x16x256xf32>
    %353 = arith.mulf %348, %352 : vector<2x16x256xf32>
    %354 = arith.addf %318, %353 : vector<2x16x256xf32>
    %355 = vector.extract_strided_slice %2 {offsets = [0, 0, 33], sizes = [2, 16, 223], strides = [1, 1, 1]} : vector<2x16x256xf32> to vector<2x16x223xf32>
    %356 = vector.extract_strided_slice %2 {offsets = [0, 0, 0], sizes = [2, 16, 33], strides = [1, 1, 1]} : vector<2x16x256xf32> to vector<2x16x33xf32>
    %357 = tpu.concatenate %355, %356 in 2 : vector<2x16x223xf32>, vector<2x16x33xf32> -> vector<2x16x256xf32>
    %c39 = arith.constant 39 : index
    %c0_87 = arith.constant 0 : index
    %c0_88 = arith.constant 0 : index
    %358 = vector.load %arg3[%c39, %c0_87, %c0_88] : memref<49x16x256xf32, #tpu.memory_space<vmem>>, vector<1x16x256xf32>
    %359 = vector.shape_cast %358 : vector<1x16x256xf32> to vector<16x256xf32>
    %360 = vector.shape_cast %359 : vector<16x256xf32> to vector<1x16x256xf32>
    %361 = vector.broadcast %360 : vector<1x16x256xf32> to vector<2x16x256xf32>
    %362 = arith.mulf %357, %361 : vector<2x16x256xf32>
    %363 = arith.addf %327, %362 : vector<2x16x256xf32>
    %364 = vector.extract_strided_slice %2 {offsets = [0, 0, 34], sizes = [2, 16, 222], strides = [1, 1, 1]} : vector<2x16x256xf32> to vector<2x16x222xf32>
    %365 = vector.extract_strided_slice %2 {offsets = [0, 0, 0], sizes = [2, 16, 34], strides = [1, 1, 1]} : vector<2x16x256xf32> to vector<2x16x34xf32>
    %366 = tpu.concatenate %364, %365 in 2 : vector<2x16x222xf32>, vector<2x16x34xf32> -> vector<2x16x256xf32>
    %c40 = arith.constant 40 : index
    %c0_89 = arith.constant 0 : index
    %c0_90 = arith.constant 0 : index
    %367 = vector.load %arg3[%c40, %c0_89, %c0_90] : memref<49x16x256xf32, #tpu.memory_space<vmem>>, vector<1x16x256xf32>
    %368 = vector.shape_cast %367 : vector<1x16x256xf32> to vector<16x256xf32>
    %369 = vector.shape_cast %368 : vector<16x256xf32> to vector<1x16x256xf32>
    %370 = vector.broadcast %369 : vector<1x16x256xf32> to vector<2x16x256xf32>
    %371 = arith.mulf %366, %370 : vector<2x16x256xf32>
    %372 = arith.addf %336, %371 : vector<2x16x256xf32>
    %373 = vector.extract_strided_slice %2 {offsets = [0, 0, 35], sizes = [2, 16, 221], strides = [1, 1, 1]} : vector<2x16x256xf32> to vector<2x16x221xf32>
    %374 = vector.extract_strided_slice %2 {offsets = [0, 0, 0], sizes = [2, 16, 35], strides = [1, 1, 1]} : vector<2x16x256xf32> to vector<2x16x35xf32>
    %375 = tpu.concatenate %373, %374 in 2 : vector<2x16x221xf32>, vector<2x16x35xf32> -> vector<2x16x256xf32>
    %c41 = arith.constant 41 : index
    %c0_91 = arith.constant 0 : index
    %c0_92 = arith.constant 0 : index
    %376 = vector.load %arg3[%c41, %c0_91, %c0_92] : memref<49x16x256xf32, #tpu.memory_space<vmem>>, vector<1x16x256xf32>
    %377 = vector.shape_cast %376 : vector<1x16x256xf32> to vector<16x256xf32>
    %378 = vector.shape_cast %377 : vector<16x256xf32> to vector<1x16x256xf32>
    %379 = vector.broadcast %378 : vector<1x16x256xf32> to vector<2x16x256xf32>
    %380 = arith.mulf %375, %379 : vector<2x16x256xf32>
    %381 = arith.addf %345, %380 : vector<2x16x256xf32>
    %382 = vector.extract_strided_slice %2 {offsets = [0, 0, 45], sizes = [2, 16, 211], strides = [1, 1, 1]} : vector<2x16x256xf32> to vector<2x16x211xf32>
    %383 = vector.extract_strided_slice %2 {offsets = [0, 0, 0], sizes = [2, 16, 45], strides = [1, 1, 1]} : vector<2x16x256xf32> to vector<2x16x45xf32>
    %384 = tpu.concatenate %382, %383 in 2 : vector<2x16x211xf32>, vector<2x16x45xf32> -> vector<2x16x256xf32>
    %c42 = arith.constant 42 : index
    %c0_93 = arith.constant 0 : index
    %c0_94 = arith.constant 0 : index
    %385 = vector.load %arg3[%c42, %c0_93, %c0_94] : memref<49x16x256xf32, #tpu.memory_space<vmem>>, vector<1x16x256xf32>
    %386 = vector.shape_cast %385 : vector<1x16x256xf32> to vector<16x256xf32>
    %387 = vector.shape_cast %386 : vector<16x256xf32> to vector<1x16x256xf32>
    %388 = vector.broadcast %387 : vector<1x16x256xf32> to vector<2x16x256xf32>
    %389 = arith.mulf %384, %388 : vector<2x16x256xf32>
    %390 = arith.addf %354, %389 : vector<2x16x256xf32>
    %391 = vector.extract_strided_slice %2 {offsets = [0, 0, 46], sizes = [2, 16, 210], strides = [1, 1, 1]} : vector<2x16x256xf32> to vector<2x16x210xf32>
    %392 = vector.extract_strided_slice %2 {offsets = [0, 0, 0], sizes = [2, 16, 46], strides = [1, 1, 1]} : vector<2x16x256xf32> to vector<2x16x46xf32>
    %393 = tpu.concatenate %391, %392 in 2 : vector<2x16x210xf32>, vector<2x16x46xf32> -> vector<2x16x256xf32>
    %c43 = arith.constant 43 : index
    %c0_95 = arith.constant 0 : index
    %c0_96 = arith.constant 0 : index
    %394 = vector.load %arg3[%c43, %c0_95, %c0_96] : memref<49x16x256xf32, #tpu.memory_space<vmem>>, vector<1x16x256xf32>
    %395 = vector.shape_cast %394 : vector<1x16x256xf32> to vector<16x256xf32>
    %396 = vector.shape_cast %395 : vector<16x256xf32> to vector<1x16x256xf32>
    %397 = vector.broadcast %396 : vector<1x16x256xf32> to vector<2x16x256xf32>
    %398 = arith.mulf %393, %397 : vector<2x16x256xf32>
    %399 = arith.addf %363, %398 : vector<2x16x256xf32>
    %400 = vector.extract_strided_slice %2 {offsets = [0, 0, 47], sizes = [2, 16, 209], strides = [1, 1, 1]} : vector<2x16x256xf32> to vector<2x16x209xf32>
    %401 = vector.extract_strided_slice %2 {offsets = [0, 0, 0], sizes = [2, 16, 47], strides = [1, 1, 1]} : vector<2x16x256xf32> to vector<2x16x47xf32>
    %402 = tpu.concatenate %400, %401 in 2 : vector<2x16x209xf32>, vector<2x16x47xf32> -> vector<2x16x256xf32>
    %c44 = arith.constant 44 : index
    %c0_97 = arith.constant 0 : index
    %c0_98 = arith.constant 0 : index
    %403 = vector.load %arg3[%c44, %c0_97, %c0_98] : memref<49x16x256xf32, #tpu.memory_space<vmem>>, vector<1x16x256xf32>
    %404 = vector.shape_cast %403 : vector<1x16x256xf32> to vector<16x256xf32>
    %405 = vector.shape_cast %404 : vector<16x256xf32> to vector<1x16x256xf32>
    %406 = vector.broadcast %405 : vector<1x16x256xf32> to vector<2x16x256xf32>
    %407 = arith.mulf %402, %406 : vector<2x16x256xf32>
    %408 = arith.addf %372, %407 : vector<2x16x256xf32>
    %409 = vector.extract_strided_slice %2 {offsets = [0, 0, 48], sizes = [2, 16, 208], strides = [1, 1, 1]} : vector<2x16x256xf32> to vector<2x16x208xf32>
    %410 = vector.extract_strided_slice %2 {offsets = [0, 0, 0], sizes = [2, 16, 48], strides = [1, 1, 1]} : vector<2x16x256xf32> to vector<2x16x48xf32>
    %411 = tpu.concatenate %409, %410 in 2 : vector<2x16x208xf32>, vector<2x16x48xf32> -> vector<2x16x256xf32>
    %c45 = arith.constant 45 : index
    %c0_99 = arith.constant 0 : index
    %c0_100 = arith.constant 0 : index
    %412 = vector.load %arg3[%c45, %c0_99, %c0_100] : memref<49x16x256xf32, #tpu.memory_space<vmem>>, vector<1x16x256xf32>
    %413 = vector.shape_cast %412 : vector<1x16x256xf32> to vector<16x256xf32>
    %414 = vector.shape_cast %413 : vector<16x256xf32> to vector<1x16x256xf32>
    %415 = vector.broadcast %414 : vector<1x16x256xf32> to vector<2x16x256xf32>
    %416 = arith.mulf %411, %415 : vector<2x16x256xf32>
    %417 = arith.addf %381, %416 : vector<2x16x256xf32>
    %418 = vector.extract_strided_slice %2 {offsets = [0, 0, 49], sizes = [2, 16, 207], strides = [1, 1, 1]} : vector<2x16x256xf32> to vector<2x16x207xf32>
    %419 = vector.extract_strided_slice %2 {offsets = [0, 0, 0], sizes = [2, 16, 49], strides = [1, 1, 1]} : vector<2x16x256xf32> to vector<2x16x49xf32>
    %420 = tpu.concatenate %418, %419 in 2 : vector<2x16x207xf32>, vector<2x16x49xf32> -> vector<2x16x256xf32>
    %c46 = arith.constant 46 : index
    %c0_101 = arith.constant 0 : index
    %c0_102 = arith.constant 0 : index
    %421 = vector.load %arg3[%c46, %c0_101, %c0_102] : memref<49x16x256xf32, #tpu.memory_space<vmem>>, vector<1x16x256xf32>
    %422 = vector.shape_cast %421 : vector<1x16x256xf32> to vector<16x256xf32>
    %423 = vector.shape_cast %422 : vector<16x256xf32> to vector<1x16x256xf32>
    %424 = vector.broadcast %423 : vector<1x16x256xf32> to vector<2x16x256xf32>
    %425 = arith.mulf %420, %424 : vector<2x16x256xf32>
    %426 = arith.addf %390, %425 : vector<2x16x256xf32>
    %427 = vector.extract_strided_slice %2 {offsets = [0, 0, 50], sizes = [2, 16, 206], strides = [1, 1, 1]} : vector<2x16x256xf32> to vector<2x16x206xf32>
    %428 = vector.extract_strided_slice %2 {offsets = [0, 0, 0], sizes = [2, 16, 50], strides = [1, 1, 1]} : vector<2x16x256xf32> to vector<2x16x50xf32>
    %429 = tpu.concatenate %427, %428 in 2 : vector<2x16x206xf32>, vector<2x16x50xf32> -> vector<2x16x256xf32>
    %c47 = arith.constant 47 : index
    %c0_103 = arith.constant 0 : index
    %c0_104 = arith.constant 0 : index
    %430 = vector.load %arg3[%c47, %c0_103, %c0_104] : memref<49x16x256xf32, #tpu.memory_space<vmem>>, vector<1x16x256xf32>
    %431 = vector.shape_cast %430 : vector<1x16x256xf32> to vector<16x256xf32>
    %432 = vector.shape_cast %431 : vector<16x256xf32> to vector<1x16x256xf32>
    %433 = vector.broadcast %432 : vector<1x16x256xf32> to vector<2x16x256xf32>
    %434 = arith.mulf %429, %433 : vector<2x16x256xf32>
    %435 = arith.addf %399, %434 : vector<2x16x256xf32>
    %436 = vector.extract_strided_slice %2 {offsets = [0, 0, 51], sizes = [2, 16, 205], strides = [1, 1, 1]} : vector<2x16x256xf32> to vector<2x16x205xf32>
    %437 = vector.extract_strided_slice %2 {offsets = [0, 0, 0], sizes = [2, 16, 51], strides = [1, 1, 1]} : vector<2x16x256xf32> to vector<2x16x51xf32>
    %438 = tpu.concatenate %436, %437 in 2 : vector<2x16x205xf32>, vector<2x16x51xf32> -> vector<2x16x256xf32>
    %c48 = arith.constant 48 : index
    %c0_105 = arith.constant 0 : index
    %c0_106 = arith.constant 0 : index
    %439 = vector.load %arg3[%c48, %c0_105, %c0_106] : memref<49x16x256xf32, #tpu.memory_space<vmem>>, vector<1x16x256xf32>
    %440 = vector.shape_cast %439 : vector<1x16x256xf32> to vector<16x256xf32>
    %441 = vector.shape_cast %440 : vector<16x256xf32> to vector<1x16x256xf32>
    %442 = vector.broadcast %441 : vector<1x16x256xf32> to vector<2x16x256xf32>
    %443 = arith.mulf %438, %442 : vector<2x16x256xf32>
    %444 = arith.addf %408, %443 : vector<2x16x256xf32>
    %445 = arith.addf %444, %417 : vector<2x16x256xf32>
    %446 = arith.addf %426, %435 : vector<2x16x256xf32>
    %447 = arith.addf %445, %446 : vector<2x16x256xf32>
    %cst_107 = arith.constant dense<0.000000e+00> : vector<2x256xf32>
    %448 = vector.multi_reduction <add>, %447, %cst_107 [1] : vector<2x16x256xf32> to vector<2x256xf32>
    %449 = vector.shape_cast %448 : vector<2x256xf32> to vector<2x1x256xf32>
    %450 = arith.negf %449 : vector<2x1x256xf32>
    %451 = math.exp %450 : vector<2x1x256xf32>
    %cst_108 = arith.constant 1.000000e+00 : f32
    %452 = vector.broadcast %cst_108 : f32 to vector<2x1x256xf32>
    %453 = arith.addf %452, %451 : vector<2x1x256xf32>
    %454 = arith.divf %452, %453 : vector<2x1x256xf32>
    %c0_109 = arith.constant 0 : index
    %c0_110 = arith.constant 0 : index
    %c0_111 = arith.constant 0 : index
    %455 = vector.load %arg1[%c0_109, %c0_110, %c0_111] : memref<2x16x256xf32, #tpu.memory_space<vmem>>, vector<2x16x256xf32>
    %456 = vector.broadcast %454 : vector<2x1x256xf32> to vector<2x16x256xf32>
    %457 = arith.mulf %455, %456 : vector<2x16x256xf32>
    %c0_112 = arith.constant 0 : index
    %c0_113 = arith.constant 0 : index
    %c0_114 = arith.constant 0 : index
    %458 = vector.load %arg4[%c0_112, %c0_113, %c0_114] : memref<2x16x256xf32, #tpu.memory_space<vmem>>, vector<2x16x256xf32>
    tpu.vector_store %arg4[%c0_112, %c0_113, %c0_114], %457 {strides = array<i32>} : memref<2x16x256xf32, #tpu.memory_space<vmem>>, vector<2x16x256xf32>,
    return
  }
  func.func @transform_0(%arg0: i32) -> (i32, i32, i32) {
    %c0_i32 = arith.constant 0 : i32
    %c0_i32_0 = arith.constant 0 : i32
    %c0_i32_1 = arith.constant 0 : i32
    return %arg0, %c0_i32, %c0_i32_0 : i32, i32, i32
  }
  func.func @transform_1(%arg0: i32) -> (i32, i32, i32) {
    %c0_i32 = arith.constant 0 : i32
    %c0_i32_0 = arith.constant 0 : i32
    %c0_i32_1 = arith.constant 0 : i32
    return %arg0, %c0_i32, %c0_i32_0 : i32, i32, i32
  }
  func.func @transform_2(%arg0: i32) -> (i32, i32, i32) {
    %c0_i32 = arith.constant 0 : i32
    %c0_i32_0 = arith.constant 0 : i32
    %c0_i32_1 = arith.constant 0 : i32
    %c0_i32_2 = arith.constant 0 : i32
    return %c0_i32, %c0_i32_0, %c0_i32_1 : i32, i32, i32
  }
  func.func @transform_3(%arg0: i32) -> (i32, i32, i32) {
    %c0_i32 = arith.constant 0 : i32
    %c0_i32_0 = arith.constant 0 : i32
    %c0_i32_1 = arith.constant 0 : i32
    return %arg0, %c0_i32, %c0_i32_0 : i32, i32, i32
  }
}

</mosaic_0001>

<llo_original>
// kernel: tpu_custom_call.1
$region0: #{tpu_custom_call.1}
  #allocation0 [shape = 'u32[]', space=smem, size = 0x4, offset = 0x4, fixed_abs, tag = 'smem constant byte address 0x4 - core index']
  #allocation1 [shape = 'u32[72,128]{1,0:T(1,128)}', space=vmem, size = 0x9000, scoped, tag = 'internal scratch']
  %s0 = inlined_call_operand.hbm [shape: f32[2,16,256], index: 0, kind: input, shape index: {}]
  %s1 = inlined_call_operand.hbm [shape: f32[2,16,256], index: 1, kind: input, shape index: {}]
  %s2 = inlined_call_operand.hbm [shape: f32[49,16,256], index: 2, kind: input, shape index: {}]
  %s3 = inlined_call_operand.hbm [shape: f32[2,16,256], index: 3, kind: output, shape index: {}]
  %s4 = sld [smem:[#allocation0]]
  $region34: #{tpu_custom_call.1} parent=0
    _
  %s6 = ssub.s32 1, %s4
  %s7 = scalar_select 0, %s6, %s4
  $region1: #{tpu_custom_call.1} parent=0
    #allocation2 [shape = 'u8[32768]{0}', space=vmem, size = 0x8000, scoped, tag = 'input window, operand 0, single buffered']
    #allocation3 [shape = 's32[1]{0}', space=sflag, size = 0x4, scoped, tag = 'scoped memory for tpu_custom_call.1']
    #allocation4 [shape = 's32[1]{0}', space=sflag, size = 0x4, scoped, tag = 'scoped memory for tpu_custom_call.1']
    #allocation5 [shape = 'u8[32768]{0}', space=vmem, size = 0x8000, scoped, tag = 'input window, operand 1, single buffered']
    #allocation6 [shape = 's32[1]{0}', space=sflag, size = 0x4, scoped, tag = 'scoped memory for tpu_custom_call.1']
    #allocation7 [shape = 'u8[802816]{0}', space=vmem, size = 0xc4000, scoped, tag = 'input window, operand 2, single buffered']
    #allocation8 [shape = 'u8[32768]{0}', space=vmem, size = 0x8000, scoped, tag = 'output window, operand 0, single buffered']
    %8 = vsyncpa [#allocation3], 0
    %9 = vsyncpa [#allocation6], 0
    %10 = vsyncpa [#allocation4], 0
    // Predicated region
    $region2: #{tpu_custom_call.1} parent=1 // pred_check
      _
    $region3: #{tpu_custom_call.1} parent=1 // pred_check_branch
      %12 = sbr.rel (0) target = $region5
    $region4: #{tpu_custom_call.1} parent=1 // pred_region
      %14 = vsyncadd [#allocation3], 0
      %s15 = sshll.u32 %s0, 4
      %s16 = int_to_ptr.hbm [resolvable:$true] %s15
      %s17 = sshll.u32 [#allocation2], 4
      %s18 = int_to_ptr.vmem [resolvable:$true] %s17
      %23 = dma.hbm_to_vmem [thread:$0]  %s16, 1024, %s18, [#allocation3], 256, 256, 16
    $region5: #{tpu_custom_call.1} parent=1 // pred_fallthru
      _
    // Predicated region
    $region6: #{tpu_custom_call.1} parent=1 // pred_check
      _
    $region7: #{tpu_custom_call.1} parent=1 // pred_check_branch
      %25 = sbr.rel (0) target = $region9
    $region8: #{tpu_custom_call.1} parent=1 // pred_region
      %27 = vsyncadd [#allocation6], 0
      %s28 = sshll.u32 %s1, 4
      %s29 = int_to_ptr.hbm [resolvable:$true] %s28
      %s30 = sshll.u32 [#allocation5], 4
      %s31 = int_to_ptr.vmem [resolvable:$true] %s30
      %36 = dma.hbm_to_vmem [thread:$0]  %s29, 1024, %s31, [#allocation6], 256, 256, 16
    $region9: #{tpu_custom_call.1} parent=1 // pred_fallthru
      _
    // Predicated region
    $region10: #{tpu_custom_call.1} parent=1 // pred_check
      _
    $region11: #{tpu_custom_call.1} parent=1 // pred_check_branch
      %38 = sbr.rel (0) target = $region13
    $region12: #{tpu_custom_call.1} parent=1 // pred_region
      %40 = vsyncadd [#allocation6], 0
      %s41 = sshll.u32 %s2, 4
      %s42 = int_to_ptr.hbm [resolvable:$true] %s41
      %s43 = sshll.u32 [#allocation7], 4
      %s44 = int_to_ptr.vmem [resolvable:$true] %s43
      %49 = dma.hbm_to_vmem [thread:$0]  %s42, 25088, %s44, [#allocation6], 256, 256, 16
    $region13: #{tpu_custom_call.1} parent=1 // pred_fallthru
      _
    // Predicated region
    $region14: #{tpu_custom_call.1} parent=1 // pred_check
      _
    $region15: #{tpu_custom_call.1} parent=1 // pred_check_branch
      %51 = sbr.rel (0) target = $region17
    $region16: #{tpu_custom_call.1} parent=1 // pred_region
      %53 = dma.done [#allocation3], 1024
    $region17: #{tpu_custom_call.1} parent=1 // pred_fallthru
      _
    // Predicated region
    $region18: #{tpu_custom_call.1} parent=1 // pred_check
      _
    $region19: #{tpu_custom_call.1} parent=1 // pred_check_branch
      %55 = sbr.rel (0) target = $region21
    $region20: #{tpu_custom_call.1} parent=1 // pred_region
      %57 = dma.done [#allocation6], 1024
    $region21: #{tpu_custom_call.1} parent=1 // pred_fallthru
      _
    // Predicated region
    $region22: #{tpu_custom_call.1} parent=1 // pred_check
      _
    $region23: #{tpu_custom_call.1} parent=1 // pred_check_branch
      %59 = sbr.rel (0) target = $region25
    $region24: #{tpu_custom_call.1} parent=1 // pred_region
      %61 = dma.done [#allocation6], 25088
    $region25: #{tpu_custom_call.1} parent=1 // pred_fallthru
      _
    %v62 = vld [vmem:[#allocation2] sm:$0xff]
    %v63 = vld [vmem:[#allocation2 + $0x8] sm:$0xff]
    %v64 = vld [vmem:[#allocation2 + $0x10] sm:$0xff]
    %v65 = vld [vmem:[#allocation2 + $0x18] sm:$0xff]
    %v66 = vld [vmem:[#allocation2 + $0x20] sm:$0xff]
    %v67 = vld [vmem:[#allocation2 + $0x28] sm:$0xff]
    %v68 = vld [vmem:[#allocation2 + $0x30] sm:$0xff]
    %v69 = vld [vmem:[#allocation2 + $0x38] sm:$0xff]
    %v70 = vld [vmem:[#allocation5] sm:$0xff]
    %v71 = vld [vmem:[#allocation5 + $0x8] sm:$0xff]
    %v72 = vld [vmem:[#allocation5 + $0x10] sm:$0xff]
    %v73 = vld [vmem:[#allocation5 + $0x18] sm:$0xff]
    %v74 = vld [vmem:[#allocation5 + $0x20] sm:$0xff]
    %v75 = vld [vmem:[#allocation5 + $0x28] sm:$0xff]
    %v76 = vld [vmem:[#allocation5 + $0x30] sm:$0xff]
    %v77 = vld [vmem:[#allocation5 + $0x38] sm:$0xff]
    %v78 = vadd.f32 %v62, %v70
    %v79 = vadd.f32 %v63, %v71
    %v80 = vadd.f32 %v64, %v72
    %v81 = vadd.f32 %v65, %v73
    %v82 = vadd.f32 %v66, %v74
    %v83 = vadd.f32 %v67, %v75
    %v84 = vadd.f32 %v68, %v76
    %v85 = vadd.f32 %v69, %v77
    %90 = vrot.lane.b32.xlu0 %v79, 51
    %v91 = vpop.permute.xlu0 %90
    %92 = vrot.lane.b32.xlu0 %v81, 51
    %v93 = vpop.permute.xlu0 %92
    %94 = vrot.lane.b32.xlu0 %v83, 51
    %v95 = vpop.permute.xlu0 %94
    %96 = vrot.lane.b32.xlu0 %v85, 51
    %v97 = vpop.permute.xlu0 %96
    %106 = vrot.lane.b32.xlu0 %v78, 51
    %v107 = vpop.permute.xlu0 %106
    %108 = vrot.lane.b32.xlu0 %v80, 51
    %v109 = vpop.permute.xlu0 %108
    %110 = vrot.lane.b32.xlu0 %v82, 51
    %v111 = vpop.permute.xlu0 %110
    %112 = vrot.lane.b32.xlu0 %v84, 51
    %v113 = vpop.permute.xlu0 %112
    %vm114 = vcmask 416768
    %v115 = vsel %vm114, %v107, %v91
    %v116 = vsel %vm114, %v109, %v93
    %v117 = vsel %vm114, %v111, %v95
    %v118 = vsel %vm114, %v113, %v97
    %v127 = vsel %vm114, %v91, %v107
    %v128 = vsel %vm114, %v93, %v109
    %v129 = vsel %vm114, %v95, %v111
    %v130 = vsel %vm114, %v97, %v113
    %v131 = vld [vmem:[#allocation7] sm:$0xff]
    %v132 = vld [vmem:[#allocation7 + $0x8] sm:$0xff]
    %v133 = vld [vmem:[#allocation7 + $0x10] sm:$0xff]
    %v134 = vld [vmem:[#allocation7 + $0x18] sm:$0xff]
    %v135 = vmul.f32 %v127, %v131
    %v136 = vmul.f32 %v115, %v132
    %v137 = vmul.f32 %v128, %v133
    %v138 = vmul.f32 %v116, %v134
    %v139 = vmul.f32 %v129, %v131
    %v140 = vmul.f32 %v117, %v132
    %v141 = vmul.f32 %v130, %v133
    %v142 = vmul.f32 %v118, %v134
    %v143 = vadd.f32 %v135, 0.0
    %v144 = vadd.f32 %v136, 0.0
    %v145 = vadd.f32 %v137, 0.0
    %v146 = vadd.f32 %v138, 0.0
    %v147 = vadd.f32 %v139, 0.0
    %v148 = vadd.f32 %v140, 0.0
    %v149 = vadd.f32 %v141, 0.0
    %v150 = vadd.f32 %v142, 0.0
    %151 = vrot.lane.b32.xlu0 %v79, 50
    %v152 = vpop.permute.xlu0 %151
    %153 = vrot.lane.b32.xlu0 %v81, 50
    %v154 = vpop.permute.xlu0 %153
    %155 = vrot.lane.b32.xlu0 %v83, 50
    %v156 = vpop.permute.xlu0 %155
    %157 = vrot.lane.b32.xlu0 %v85, 50
    %v158 = vpop.permute.xlu0 %157
    %163 = vrot.lane.b32.xlu0 %v78, 50
    %v164 = vpop.permute.xlu0 %163
    %165 = vrot.lane.b32.xlu0 %v80, 50
    %v166 = vpop.permute.xlu0 %165
    %167 = vrot.lane.b32.xlu0 %v82, 50
    %v168 = vpop.permute.xlu0 %167
    %169 = vrot.lane.b32.xlu0 %v84, 50
    %v170 = vpop.permute.xlu0 %169
    %vm171 = vcmask 408576
    %v172 = vsel %vm171, %v164, %v152
    %v173 = vsel %vm171, %v166, %v154
    %v174 = vsel %vm171, %v168, %v156
    %v175 = vsel %vm171, %v170, %v158
    %v184 = vsel %vm171, %v152, %v164
    %v185 = vsel %vm171, %v154, %v166
    %v186 = vsel %vm171, %v156, %v168
    %v187 = vsel %vm171, %v158, %v170
    %s188 = scalar_lea.vmem [#allocation7], 32
    %v189 = vld [vmem:[%s188] sm:$0xff]
    %v190 = vld [vmem:[%s188 + $0x8] sm:$0xff]
    %v191 = vld [vmem:[%s188 + $0x10] sm:$0xff]
    %v192 = vld [vmem:[%s188 + $0x18] sm:$0xff]
    %v193 = vmul.f32 %v184, %v189
    %v194 = vmul.f32 %v172, %v190
    %v195 = vmul.f32 %v185, %v191
    %v196 = vmul.f32 %v173, %v192
    %v197 = vmul.f32 %v186, %v189
    %v198 = vmul.f32 %v174, %v190
    %v199 = vmul.f32 %v187, %v191
    %v200 = vmul.f32 %v175, %v192
    %v201 = vadd.f32 %v193, 0.0
    %v202 = vadd.f32 %v194, 0.0
    %v203 = vadd.f32 %v195, 0.0
    %v204 = vadd.f32 %v196, 0.0
    %v205 = vadd.f32 %v197, 0.0
    %v206 = vadd.f32 %v198, 0.0
    %v207 = vadd.f32 %v199, 0.0
    %v208 = vadd.f32 %v200, 0.0
    %209 = vrot.lane.b32.xlu0 %v79, 49
    %v210 = vpop.permute.xlu0 %209
    %211 = vrot.lane.b32.xlu0 %v81, 49
    %v212 = vpop.permute.xlu0 %211
    %213 = vrot.lane.b32.xlu0 %v83, 49
    %v214 = vpop.permute.xlu0 %213
    %215 = vrot.lane.b32.xlu0 %v85, 49
    %v216 = vpop.permute.xlu0 %215
    %221 = vrot.lane.b32.xlu0 %v78, 49
    %v222 = vpop.permute.xlu0 %221
    %223 = vrot.lane.b32.xlu0 %v80, 49
    %v224 = vpop.permute.xlu0 %223
    %225 = vrot.lane.b32.xlu0 %v82, 49
    %v226 = vpop.permute.xlu0 %225
    %227 = vrot.lane.b32.xlu0 %v84, 49
    %v228 = vpop.permute.xlu0 %227
    %vm229 = vcmask 400384
    %v230 = vsel %vm229, %v222, %v210
    %v231 = vsel %vm229, %v224, %v212
    %v232 = vsel %vm229, %v226, %v214
    %v233 = vsel %vm229, %v228, %v216
    %v242 = vsel %vm229, %v210, %v222
    %v243 = vsel %vm229, %v212, %v224
    %v244 = vsel %vm229, %v214, %v226
    %v245 = vsel %vm229, %v216, %v228
    %s246 = scalar_lea.vmem [#allocation7], 64
    %v247 = vld [vmem:[%s246] sm:$0xff]
    %v248 = vld [vmem:[%s246 + $0x8] sm:$0xff]
    %v249 = vld [vmem:[%s246 + $0x10] sm:$0xff]
    %v250 = vld [vmem:[%s246 + $0x18] sm:$0xff]
    %v251 = vmul.f32 %v242, %v247
    %v252 = vmul.f32 %v230, %v248
    %v253 = vmul.f32 %v243, %v249
    %v254 = vmul.f32 %v231, %v250
    %v255 = vmul.f32 %v244, %v247
    %v256 = vmul.f32 %v232, %v248
    %v257 = vmul.f32 %v245, %v249
    %v258 = vmul.f32 %v233, %v250
    %v259 = vadd.f32 %v251, 0.0
    %v260 = vadd.f32 %v252, 0.0
    %v261 = vadd.f32 %v253, 0.0
    %v262 = vadd.f32 %v254, 0.0
    %v263 = vadd.f32 %v255, 0.0
    %v264 = vadd.f32 %v256, 0.0
    %v265 = vadd.f32 %v257, 0.0
    %v266 = vadd.f32 %v258, 0.0
    %267 = vrot.lane.b32.xlu0 %v79, 48
    %v268 = vpop.permute.xlu0 %267
    %269 = vrot.lane.b32.xlu0 %v81, 48
    %v270 = vpop.permute.xlu0 %269
    %271 = vrot.lane.b32.xlu0 %v83, 48
    %v272 = vpop.permute.xlu0 %271
    %273 = vrot.lane.b32.xlu0 %v85, 48
    %v274 = vpop.permute.xlu0 %273
    %279 = vrot.lane.b32.xlu0 %v78, 48
    %v280 = vpop.permute.xlu0 %279
    %281 = vrot.lane.b32.xlu0 %v80, 48
    %v282 = vpop.permute.xlu0 %281
    %283 = vrot.lane.b32.xlu0 %v82, 48
    %v284 = vpop.permute.xlu0 %283
    %285 = vrot.lane.b32.xlu0 %v84, 48
    %v286 = vpop.permute.xlu0 %285
    %vm287 = vcmask 392192
    %v288 = vsel %vm287, %v280, %v268
    %v289 = vsel %vm287, %v282, %v270
    %v290 = vsel %vm287, %v284, %v272
    %v291 = vsel %vm287, %v286, %v274
    %v300 = vsel %vm287, %v268, %v280
    %v301 = vsel %vm287, %v270, %v282
    %v302 = vsel %vm287, %v272, %v284
    %v303 = vsel %vm287, %v274, %v286
    %s304 = scalar_lea.vmem [#allocation7], 96
    %v305 = vld [vmem:[%s304] sm:$0xff]
    %v306 = vld [vmem:[%s304 + $0x8] sm:$0xff]
    %v307 = vld [vmem:[%s304 + $0x10] sm:$0xff]
    %v308 = vld [vmem:[%s304 + $0x18] sm:$0xff]
    %v309 = vmul.f32 %v300, %v305
    %v310 = vmul.f32 %v288, %v306
    %v311 = vmul.f32 %v301, %v307
    %v312 = vmul.f32 %v289, %v308
    %v313 = vmul.f32 %v302, %v305
    %v314 = vmul.f32 %v290, %v306
    %v315 = vmul.f32 %v303, %v307
    %v316 = vmul.f32 %v291, %v308
    %v317 = vadd.f32 %v309, 0.0
    %v318 = vadd.f32 %v310, 0.0
    %v319 = vadd.f32 %v311, 0.0
    %v320 = vadd.f32 %v312, 0.0
    %v321 = vadd.f32 %v313, 0.0
    %v322 = vadd.f32 %v314, 0.0
    %v323 = vadd.f32 %v315, 0.0
    %v324 = vadd.f32 %v316, 0.0
    %325 = vrot.lane.b32.xlu0 %v79, 47
    %v326 = vpop.permute.xlu0 %325
    %327 = vrot.lane.b32.xlu0 %v81, 47
    %v328 = vpop.permute.xlu0 %327
    %329 = vrot.lane.b32.xlu0 %v83, 47
    %v330 = vpop.permute.xlu0 %329
    %331 = vrot.lane.b32.xlu0 %v85, 47
    %v332 = vpop.permute.xlu0 %331
    %337 = vrot.lane.b32.xlu0 %v78, 47
    %v338 = vpop.permute.xlu0 %337
    %339 = vrot.lane.b32.xlu0 %v80, 47
    %v340 = vpop.permute.xlu0 %339
    %341 = vrot.lane.b32.xlu0 %v82, 47
    %v342 = vpop.permute.xlu0 %341
    %343 = vrot.lane.b32.xlu0 %v84, 47
    %v344 = vpop.permute.xlu0 %343
    %vm345 = vcmask 384000
    %v346 = vsel %vm345, %v338, %v326
    %v347 = vsel %vm345, %v340, %v328
    %v348 = vsel %vm345, %v342, %v330
    %v349 = vsel %vm345, %v344, %v332
    %v358 = vsel %vm345, %v326, %v338
    %v359 = vsel %vm345, %v328, %v340
    %v360 = vsel %vm345, %v330, %v342
    %v361 = vsel %vm345, %v332, %v344
    %s362 = scalar_lea.vmem [#allocation7], 128
    %v363 = vld [vmem:[%s362] sm:$0xff]
    %v364 = vld [vmem:[%s362 + $0x8] sm:$0xff]
    %v365 = vld [vmem:[%s362 + $0x10] sm:$0xff]
    %v366 = vld [vmem:[%s362 + $0x18] sm:$0xff]
    %v367 = vmul.f32 %v358, %v363
    %v368 = vmul.f32 %v346, %v364
    %v369 = vmul.f32 %v359, %v365
    %v370 = vmul.f32 %v347, %v366
    %v371 = vmul.f32 %v360, %v363
    %v372 = vmul.f32 %v348, %v364
    %v373 = vmul.f32 %v361, %v365
    %v374 = vmul.f32 %v349, %v366
    %v375 = vadd.f32 %v143, %v367
    %v376 = vadd.f32 %v144, %v368
    %v377 = vadd.f32 %v145, %v369
    %v378 = vadd.f32 %v146, %v370
    %v379 = vadd.f32 %v147, %v371
    %v380 = vadd.f32 %v148, %v372
    %v381 = vadd.f32 %v149, %v373
    %v382 = vadd.f32 %v150, %v374
    %383 = vrot.lane.b32.xlu0 %v79, 46
    %v384 = vpop.permute.xlu0 %383
    %385 = vrot.lane.b32.xlu0 %v81, 46
    %v386 = vpop.permute.xlu0 %385
    %387 = vrot.lane.b32.xlu0 %v83, 46
    %v388 = vpop.permute.xlu0 %387
    %389 = vrot.lane.b32.xlu0 %v85, 46
    %v390 = vpop.permute.xlu0 %389
    %395 = vrot.lane.b32.xlu0 %v78, 46
    %v396 = vpop.permute.xlu0 %395
    %397 = vrot.lane.b32.xlu0 %v80, 46
    %v398 = vpop.permute.xlu0 %397
    %399 = vrot.lane.b32.xlu0 %v82, 46
    %v400 = vpop.permute.xlu0 %399
    %401 = vrot.lane.b32.xlu0 %v84, 46
    %v402 = vpop.permute.xlu0 %401
    %vm403 = vcmask 375808
    %v404 = vsel %vm403, %v396, %v384
    %v405 = vsel %vm403, %v398, %v386
    %v406 = vsel %vm403, %v400, %v388
    %v407 = vsel %vm403, %v402, %v390
    %v416 = vsel %vm403, %v384, %v396
    %v417 = vsel %vm403, %v386, %v398
    %v418 = vsel %vm403, %v388, %v400
    %v419 = vsel %vm403, %v390, %v402
    %s420 = scalar_lea.vmem [#allocation7], 160
    %v421 = vld [vmem:[%s420] sm:$0xff]
    %v422 = vld [vmem:[%s420 + $0x8] sm:$0xff]
    %v423 = vld [vmem:[%s420 + $0x10] sm:$0xff]
    %v424 = vld [vmem:[%s420 + $0x18] sm:$0xff]
    %v425 = vmul.f32 %v416, %v421
    %v426 = vmul.f32 %v404, %v422
    %v427 = vmul.f32 %v417, %v423
    %v428 = vmul.f32 %v405, %v424
    %v429 = vmul.f32 %v418, %v421
    %v430 = vmul.f32 %v406, %v422
    %v431 = vmul.f32 %v419, %v423
    %v432 = vmul.f32 %v407, %v424
    %v433 = vadd.f32 %v201, %v425
    %v434 = vadd.f32 %v202, %v426
    %v435 = vadd.f32 %v203, %v427
    %v436 = vadd.f32 %v204, %v428
    %v437 = vadd.f32 %v205, %v429
    %v438 = vadd.f32 %v206, %v430
    %v439 = vadd.f32 %v207, %v431
    %v440 = vadd.f32 %v208, %v432
    %441 = vrot.lane.b32.xlu0 %v79, 45
    %v442 = vpop.permute.xlu0 %441
    %443 = vrot.lane.b32.xlu0 %v81, 45
    %v444 = vpop.permute.xlu0 %443
    %445 = vrot.lane.b32.xlu0 %v83, 45
    %v446 = vpop.permute.xlu0 %445
    %447 = vrot.lane.b32.xlu0 %v85, 45
    %v448 = vpop.permute.xlu0 %447
    %453 = vrot.lane.b32.xlu0 %v78, 45
    %v454 = vpop.permute.xlu0 %453
    %455 = vrot.lane.b32.xlu0 %v80, 45
    %v456 = vpop.permute.xlu0 %455
    %457 = vrot.lane.b32.xlu0 %v82, 45
    %v458 = vpop.permute.xlu0 %457
    %459 = vrot.lane.b32.xlu0 %v84, 45
    %v460 = vpop.permute.xlu0 %459
    %vm461 = vcmask 367616
    %v462 = vsel %vm461, %v454, %v442
    %v463 = vsel %vm461, %v456, %v444
    %v464 = vsel %vm461, %v458, %v446
    %v465 = vsel %vm461, %v460, %v448
    %v474 = vsel %vm461, %v442, %v454
    %v475 = vsel %vm461, %v444, %v456
    %v476 = vsel %vm461, %v446, %v458
    %v477 = vsel %vm461, %v448, %v460
    %s478 = scalar_lea.vmem [#allocation7], 192
    %v479 = vld [vmem:[%s478] sm:$0xff]
    %v480 = vld [vmem:[%s478 + $0x8] sm:$0xff]
    %v481 = vld [vmem:[%s478 + $0x10] sm:$0xff]
    %v482 = vld [vmem:[%s478 + $0x18] sm:$0xff]
    %v483 = vmul.f32 %v474, %v479
    %v484 = vmul.f32 %v462, %v480
    %v485 = vmul.f32 %v475, %v481
    %v486 = vmul.f32 %v463, %v482
    %v487 = vmul.f32 %v476, %v479
    %v488 = vmul.f32 %v464, %v480
    %v489 = vmul.f32 %v477, %v481
    %v490 = vmul.f32 %v465, %v482
    %v491 = vadd.f32 %v259, %v483
    %v492 = vadd.f32 %v260, %v484
    %v493 = vadd.f32 %v261, %v485
    %v494 = vadd.f32 %v262, %v486
    %v495 = vadd.f32 %v263, %v487
    %v496 = vadd.f32 %v264, %v488
    %v497 = vadd.f32 %v265, %v489
    %v498 = vadd.f32 %v266, %v490
    %499 = vrot.lane.b32.xlu0 %v79, 35
    %v500 = vpop.permute.xlu0 %499
    %501 = vrot.lane.b32.xlu0 %v81, 35
    %v502 = vpop.permute.xlu0 %501
    %503 = vrot.lane.b32.xlu0 %v83, 35
    %v504 = vpop.permute.xlu0 %503
    %505 = vrot.lane.b32.xlu0 %v85, 35
    %v506 = vpop.permute.xlu0 %505
    %511 = vrot.lane.b32.xlu0 %v78, 35
    %v512 = vpop.permute.xlu0 %511
    %513 = vrot.lane.b32.xlu0 %v80, 35
    %v514 = vpop.permute.xlu0 %513
    %515 = vrot.lane.b32.xlu0 %v82, 35
    %v516 = vpop.permute.xlu0 %515
    %517 = vrot.lane.b32.xlu0 %v84, 35
    %v518 = vpop.permute.xlu0 %517
    %vm519 = vcmask 285696
    %v520 = vsel %vm519, %v512, %v500
    %v521 = vsel %vm519, %v514, %v502
    %v522 = vsel %vm519, %v516, %v504
    %v523 = vsel %vm519, %v518, %v506
    %v532 = vsel %vm519, %v500, %v512
    %v533 = vsel %vm519, %v502, %v514
    %v534 = vsel %vm519, %v504, %v516
    %v535 = vsel %vm519, %v506, %v518
    %s536 = scalar_lea.vmem [#allocation7], 224
    %v537 = vld [vmem:[%s536] sm:$0xff]
    %v538 = vld [vmem:[%s536 + $0x8] sm:$0xff]
    %v539 = vld [vmem:[%s536 + $0x10] sm:$0xff]
    %v540 = vld [vmem:[%s536 + $0x18] sm:$0xff]
    %v541 = vmul.f32 %v532, %v537
    %v542 = vmul.f32 %v520, %v538
    %v543 = vmul.f32 %v533, %v539
    %v544 = vmul.f32 %v521, %v540
    %v545 = vmul.f32 %v534, %v537
    %v546 = vmul.f32 %v522, %v538
    %v547 = vmul.f32 %v535, %v539
    %v548 = vmul.f32 %v523, %v540
    %v549 = vadd.f32 %v317, %v541
    %v550 = vadd.f32 %v318, %v542
    %v551 = vadd.f32 %v319, %v543
    %v552 = vadd.f32 %v320, %v544
    %v553 = vadd.f32 %v321, %v545
    %v554 = vadd.f32 %v322, %v546
    %v555 = vadd.f32 %v323, %v547
    %v556 = vadd.f32 %v324, %v548
    %557 = vrot.lane.b32.xlu0 %v79, 34
    %v558 = vpop.permute.xlu0 %557
    %559 = vrot.lane.b32.xlu0 %v81, 34
    %v560 = vpop.permute.xlu0 %559
    %561 = vrot.lane.b32.xlu0 %v83, 34
    %v562 = vpop.permute.xlu0 %561
    %563 = vrot.lane.b32.xlu0 %v85, 34
    %v564 = vpop.permute.xlu0 %563
    %569 = vrot.lane.b32.xlu0 %v78, 34
    %v570 = vpop.permute.xlu0 %569
    %571 = vrot.lane.b32.xlu0 %v80, 34
    %v572 = vpop.permute.xlu0 %571
    %573 = vrot.lane.b32.xlu0 %v82, 34
    %v574 = vpop.permute.xlu0 %573
    %575 = vrot.lane.b32.xlu0 %v84, 34
    %v576 = vpop.permute.xlu0 %575
    %vm577 = vcmask 277504
    %v578 = vsel %vm577, %v570, %v558
    %v579 = vsel %vm577, %v572, %v560
    %v580 = vsel %vm577, %v574, %v562
    %v581 = vsel %vm577, %v576, %v564
    %v590 = vsel %vm577, %v558, %v570
    %v591 = vsel %vm577, %v560, %v572
    %v592 = vsel %vm577, %v562, %v574
    %v593 = vsel %vm577, %v564, %v576
    %s594 = scalar_lea.vmem [#allocation7], 256
    %v595 = vld [vmem:[%s594] sm:$0xff]
    %v596 = vld [vmem:[%s594 + $0x8] sm:$0xff]
    %v597 = vld [vmem:[%s594 + $0x10] sm:$0xff]
    %v598 = vld [vmem:[%s594 + $0x18] sm:$0xff]
    %v599 = vmul.f32 %v590, %v595
    %v600 = vmul.f32 %v578, %v596
    %v601 = vmul.f32 %v591, %v597
    %v602 = vmul.f32 %v579, %v598
    %v603 = vmul.f32 %v592, %v595
    %v604 = vmul.f32 %v580, %v596
    %v605 = vmul.f32 %v593, %v597
    %v606 = vmul.f32 %v581, %v598
    %v607 = vadd.f32 %v375, %v599
    %v608 = vadd.f32 %v376, %v600
    %v609 = vadd.f32 %v377, %v601
    %v610 = vadd.f32 %v378, %v602
    %v611 = vadd.f32 %v379, %v603
    %v612 = vadd.f32 %v380, %v604
    %v613 = vadd.f32 %v381, %v605
    %v614 = vadd.f32 %v382, %v606
    %615 = vrot.lane.b32.xlu0 %v79, 33
    %v616 = vpop.permute.xlu0 %615
    %617 = vrot.lane.b32.xlu0 %v81, 33
    %v618 = vpop.permute.xlu0 %617
    %619 = vrot.lane.b32.xlu0 %v83, 33
    %v620 = vpop.permute.xlu0 %619
    %621 = vrot.lane.b32.xlu0 %v85, 33
    %v622 = vpop.permute.xlu0 %621
    %627 = vrot.lane.b32.xlu0 %v78, 33
    %v628 = vpop.permute.xlu0 %627
    %629 = vrot.lane.b32.xlu0 %v80, 33
    %v630 = vpop.permute.xlu0 %629
    %631 = vrot.lane.b32.xlu0 %v82, 33
    %v632 = vpop.permute.xlu0 %631
    %633 = vrot.lane.b32.xlu0 %v84, 33
    %v634 = vpop.permute.xlu0 %633
    %vm635 = vcmask 269312
    %v636 = vsel %vm635, %v628, %v616
    %v637 = vsel %vm635, %v630, %v618
    %v638 = vsel %vm635, %v632, %v620
    %v639 = vsel %vm635, %v634, %v622
    %v648 = vsel %vm635, %v616, %v628
    %v649 = vsel %vm635, %v618, %v630
    %v650 = vsel %vm635, %v620, %v632
    %v651 = vsel %vm635, %v622, %v634
    %s652 = scalar_lea.vmem [#allocation7], 288
    %v653 = vld [vmem:[%s652] sm:$0xff]
    %v654 = vld [vmem:[%s652 + $0x8] sm:$0xff]
    %v655 = vld [vmem:[%s652 + $0x10] sm:$0xff]
    %v656 = vld [vmem:[%s652 + $0x18] sm:$0xff]
    %v657 = vmul.f32 %v648, %v653
    %v658 = vmul.f32 %v636, %v654
    %v659 = vmul.f32 %v649, %v655
    %v660 = vmul.f32 %v637, %v656
    %v661 = vmul.f32 %v650, %v653
    %v662 = vmul.f32 %v638, %v654
    %v663 = vmul.f32 %v651, %v655
    %v664 = vmul.f32 %v639, %v656
    %v665 = vadd.f32 %v433, %v657
    %v666 = vadd.f32 %v434, %v658
    %v667 = vadd.f32 %v435, %v659
    %v668 = vadd.f32 %v436, %v660
    %v669 = vadd.f32 %v437, %v661
    %v670 = vadd.f32 %v438, %v662
    %v671 = vadd.f32 %v439, %v663
    %v672 = vadd.f32 %v440, %v664
    %673 = vrot.lane.b32.xlu0 %v79, 32
    %v674 = vpop.permute.xlu0 %673
    %675 = vrot.lane.b32.xlu0 %v81, 32
    %v676 = vpop.permute.xlu0 %675
    %677 = vrot.lane.b32.xlu0 %v83, 32
    %v678 = vpop.permute.xlu0 %677
    %679 = vrot.lane.b32.xlu0 %v85, 32
    %v680 = vpop.permute.xlu0 %679
    %685 = vrot.lane.b32.xlu0 %v78, 32
    %v686 = vpop.permute.xlu0 %685
    %687 = vrot.lane.b32.xlu0 %v80, 32
    %v688 = vpop.permute.xlu0 %687
    %689 = vrot.lane.b32.xlu0 %v82, 32
    %v690 = vpop.permute.xlu0 %689
    %691 = vrot.lane.b32.xlu0 %v84, 32
    %v692 = vpop.permute.xlu0 %691
    %vm693 = vcmask 261120
    %v694 = vsel %vm693, %v686, %v674
    %v695 = vsel %vm693, %v688, %v676
    %v696 = vsel %vm693, %v690, %v678
    %v697 = vsel %vm693, %v692, %v680
    %v706 = vsel %vm693, %v674, %v686
    %v707 = vsel %vm693, %v676, %v688
    %v708 = vsel %vm693, %v678, %v690
    %v709 = vsel %vm693, %v680, %v692
    %s710 = scalar_lea.vmem [#allocation7], 320
    %v711 = vld [vmem:[%s710] sm:$0xff]
    %v712 = vld [vmem:[%s710 + $0x8] sm:$0xff]
    %v713 = vld [vmem:[%s710 + $0x10] sm:$0xff]
    %v714 = vld [vmem:[%s710 + $0x18] sm:$0xff]
    %v715 = vmul.f32 %v706, %v711
    %v716 = vmul.f32 %v694, %v712
    %v717 = vmul.f32 %v707, %v713
    %v718 = vmul.f32 %v695, %v714
    %v719 = vmul.f32 %v708, %v711
    %v720 = vmul.f32 %v696, %v712
    %v721 = vmul.f32 %v709, %v713
    %v722 = vmul.f32 %v697, %v714
    %v723 = vadd.f32 %v491, %v715
    %v724 = vadd.f32 %v492, %v716
    %v725 = vadd.f32 %v493, %v717
    %v726 = vadd.f32 %v494, %v718
    %v727 = vadd.f32 %v495, %v719
    %v728 = vadd.f32 %v496, %v720
    %v729 = vadd.f32 %v497, %v721
    %v730 = vadd.f32 %v498, %v722
    %731 = vrot.lane.b32.xlu0 %v79, 31
    %v732 = vpop.permute.xlu0 %731
    %733 = vrot.lane.b32.xlu0 %v81, 31
    %v734 = vpop.permute.xlu0 %733
    %735 = vrot.lane.b32.xlu0 %v83, 31
    %v736 = vpop.permute.xlu0 %735
    %737 = vrot.lane.b32.xlu0 %v85, 31
    %v738 = vpop.permute.xlu0 %737
    %743 = vrot.lane.b32.xlu0 %v78, 31
    %v744 = vpop.permute.xlu0 %743
    %745 = vrot.lane.b32.xlu0 %v80, 31
    %v746 = vpop.permute.xlu0 %745
    %747 = vrot.lane.b32.xlu0 %v82, 31
    %v748 = vpop.permute.xlu0 %747
    %749 = vrot.lane.b32.xlu0 %v84, 31
    %v750 = vpop.permute.xlu0 %749
    %vm751 = vcmask 252928
    %v752 = vsel %vm751, %v744, %v732
    %v753 = vsel %vm751, %v746, %v734
    %v754 = vsel %vm751, %v748, %v736
    %v755 = vsel %vm751, %v750, %v738
    %v764 = vsel %vm751, %v732, %v744
    %v765 = vsel %vm751, %v734, %v746
    %v766 = vsel %vm751, %v736, %v748
    %v767 = vsel %vm751, %v738, %v750
    %s768 = scalar_lea.vmem [#allocation7], 352
    %v769 = vld [vmem:[%s768] sm:$0xff]
    %v770 = vld [vmem:[%s768 + $0x8] sm:$0xff]
    %v771 = vld [vmem:[%s768 + $0x10] sm:$0xff]
    %v772 = vld [vmem:[%s768 + $0x18] sm:$0xff]
    %v773 = vmul.f32 %v764, %v769
    %v774 = vmul.f32 %v752, %v770
    %v775 = vmul.f32 %v765, %v771
    %v776 = vmul.f32 %v753, %v772
    %v777 = vmul.f32 %v766, %v769
    %v778 = vmul.f32 %v754, %v770
    %v779 = vmul.f32 %v767, %v771
    %v780 = vmul.f32 %v755, %v772
    %v781 = vadd.f32 %v549, %v773
    %v782 = vadd.f32 %v550, %v774
    %v783 = vadd.f32 %v551, %v775
    %v784 = vadd.f32 %v552, %v776
    %v785 = vadd.f32 %v553, %v777
    %v786 = vadd.f32 %v554, %v778
    %v787 = vadd.f32 %v555, %v779
    %v788 = vadd.f32 %v556, %v780
    %789 = vrot.lane.b32.xlu0 %v79, 30
    %v790 = vpop.permute.xlu0 %789
    %791 = vrot.lane.b32.xlu0 %v81, 30
    %v792 = vpop.permute.xlu0 %791
    %793 = vrot.lane.b32.xlu0 %v83, 30
    %v794 = vpop.permute.xlu0 %793
    %795 = vrot.lane.b32.xlu0 %v85, 30
    %v796 = vpop.permute.xlu0 %795
    %801 = vrot.lane.b32.xlu0 %v78, 30
    %v802 = vpop.permute.xlu0 %801
    %803 = vrot.lane.b32.xlu0 %v80, 30
    %v804 = vpop.permute.xlu0 %803
    %805 = vrot.lane.b32.xlu0 %v82, 30
    %v806 = vpop.permute.xlu0 %805
    %807 = vrot.lane.b32.xlu0 %v84, 30
    %v808 = vpop.permute.xlu0 %807
    %vm809 = vcmask 244736
    %v810 = vsel %vm809, %v802, %v790
    %v811 = vsel %vm809, %v804, %v792
    %v812 = vsel %vm809, %v806, %v794
    %v813 = vsel %vm809, %v808, %v796
    %v822 = vsel %vm809, %v790, %v802
    %v823 = vsel %vm809, %v792, %v804
    %v824 = vsel %vm809, %v794, %v806
    %v825 = vsel %vm809, %v796, %v808
    %s826 = scalar_lea.vmem [#allocation7], 384
    %v827 = vld [vmem:[%s826] sm:$0xff]
    %v828 = vld [vmem:[%s826 + $0x8] sm:$0xff]
    %v829 = vld [vmem:[%s826 + $0x10] sm:$0xff]
    %v830 = vld [vmem:[%s826 + $0x18] sm:$0xff]
    %v831 = vmul.f32 %v822, %v827
    %v832 = vmul.f32 %v810, %v828
    %v833 = vmul.f32 %v823, %v829
    %v834 = vmul.f32 %v811, %v830
    %v835 = vmul.f32 %v824, %v827
    %v836 = vmul.f32 %v812, %v828
    %v837 = vmul.f32 %v825, %v829
    %v838 = vmul.f32 %v813, %v830
    %v839 = vadd.f32 %v607, %v831
    %v840 = vadd.f32 %v608, %v832
    %v841 = vadd.f32 %v609, %v833
    %v842 = vadd.f32 %v610, %v834
    %v843 = vadd.f32 %v611, %v835
    %v844 = vadd.f32 %v612, %v836
    %v845 = vadd.f32 %v613, %v837
    %v846 = vadd.f32 %v614, %v838
    %847 = vrot.lane.b32.xlu0 %v79, 29
    %v848 = vpop.permute.xlu0 %847
    %849 = vrot.lane.b32.xlu0 %v81, 29
    %v850 = vpop.permute.xlu0 %849
    %851 = vrot.lane.b32.xlu0 %v83, 29
    %v852 = vpop.permute.xlu0 %851
    %853 = vrot.lane.b32.xlu0 %v85, 29
    %v854 = vpop.permute.xlu0 %853
    %859 = vrot.lane.b32.xlu0 %v78, 29
    %v860 = vpop.permute.xlu0 %859
    %861 = vrot.lane.b32.xlu0 %v80, 29
    %v862 = vpop.permute.xlu0 %861
    %863 = vrot.lane.b32.xlu0 %v82, 29
    %v864 = vpop.permute.xlu0 %863
    %865 = vrot.lane.b32.xlu0 %v84, 29
    %v866 = vpop.permute.xlu0 %865
    %vm867 = vcmask 236544
    %v868 = vsel %vm867, %v860, %v848
    %v869 = vsel %vm867, %v862, %v850
    %v870 = vsel %vm867, %v864, %v852
    %v871 = vsel %vm867, %v866, %v854
    %v880 = vsel %vm867, %v848, %v860
    %v881 = vsel %vm867, %v850, %v862
    %v882 = vsel %vm867, %v852, %v864
    %v883 = vsel %vm867, %v854, %v866
    %s884 = scalar_lea.vmem [#allocation7], 416
    %v885 = vld [vmem:[%s884] sm:$0xff]
    %v886 = vld [vmem:[%s884 + $0x8] sm:$0xff]
    %v887 = vld [vmem:[%s884 + $0x10] sm:$0xff]
    %v888 = vld [vmem:[%s884 + $0x18] sm:$0xff]
    %v889 = vmul.f32 %v880, %v885
    %v890 = vmul.f32 %v868, %v886
    %v891 = vmul.f32 %v881, %v887
    %v892 = vmul.f32 %v869, %v888
    %v893 = vmul.f32 %v882, %v885
    %v894 = vmul.f32 %v870, %v886
    %v895 = vmul.f32 %v883, %v887
    %v896 = vmul.f32 %v871, %v888
    %v897 = vadd.f32 %v665, %v889
    %v898 = vadd.f32 %v666, %v890
    %v899 = vadd.f32 %v667, %v891
    %v900 = vadd.f32 %v668, %v892
    %v901 = vadd.f32 %v669, %v893
    %v902 = vadd.f32 %v670, %v894
    %v903 = vadd.f32 %v671, %v895
    %v904 = vadd.f32 %v672, %v896
    %905 = vrot.lane.b32.xlu0 %v79, 19
    %v906 = vpop.permute.xlu0 %905
    %907 = vrot.lane.b32.xlu0 %v81, 19
    %v908 = vpop.permute.xlu0 %907
    %909 = vrot.lane.b32.xlu0 %v83, 19
    %v910 = vpop.permute.xlu0 %909
    %911 = vrot.lane.b32.xlu0 %v85, 19
    %v912 = vpop.permute.xlu0 %911
    %917 = vrot.lane.b32.xlu0 %v78, 19
    %v918 = vpop.permute.xlu0 %917
    %919 = vrot.lane.b32.xlu0 %v80, 19
    %v920 = vpop.permute.xlu0 %919
    %921 = vrot.lane.b32.xlu0 %v82, 19
    %v922 = vpop.permute.xlu0 %921
    %923 = vrot.lane.b32.xlu0 %v84, 19
    %v924 = vpop.permute.xlu0 %923
    %vm925 = vcmask 154624
    %v926 = vsel %vm925, %v918, %v906
    %v927 = vsel %vm925, %v920, %v908
    %v928 = vsel %vm925, %v922, %v910
    %v929 = vsel %vm925, %v924, %v912
    %v938 = vsel %vm925, %v906, %v918
    %v939 = vsel %vm925, %v908, %v920
    %v940 = vsel %vm925, %v910, %v922
    %v941 = vsel %vm925, %v912, %v924
    %s942 = scalar_lea.vmem [#allocation7], 448
    %v943 = vld [vmem:[%s942] sm:$0xff]
    %v944 = vld [vmem:[%s942 + $0x8] sm:$0xff]
    %v945 = vld [vmem:[%s942 + $0x10] sm:$0xff]
    %v946 = vld [vmem:[%s942 + $0x18] sm:$0xff]
    %v947 = vmul.f32 %v938, %v943
    %v948 = vmul.f32 %v926, %v944
    %v949 = vmul.f32 %v939, %v945
    %v950 = vmul.f32 %v927, %v946
    %v951 = vmul.f32 %v940, %v943
    %v952 = vmul.f32 %v928, %v944
    %v953 = vmul.f32 %v941, %v945
    %v954 = vmul.f32 %v929, %v946
    %v955 = vadd.f32 %v723, %v947
    %v956 = vadd.f32 %v724, %v948
    %v957 = vadd.f32 %v725, %v949
    %v958 = vadd.f32 %v726, %v950
    %v959 = vadd.f32 %v727, %v951
    %v960 = vadd.f32 %v728, %v952
    %v961 = vadd.f32 %v729, %v953
    %v962 = vadd.f32 %v730, %v954
    %963 = vrot.lane.b32.xlu0 %v79, 18
    %v964 = vpop.permute.xlu0 %963
    %965 = vrot.lane.b32.xlu0 %v81, 18
    %v966 = vpop.permute.xlu0 %965
    %967 = vrot.lane.b32.xlu0 %v83, 18
    %v968 = vpop.permute.xlu0 %967
    %969 = vrot.lane.b32.xlu0 %v85, 18
    %v970 = vpop.permute.xlu0 %969
    %975 = vrot.lane.b32.xlu0 %v78, 18
    %v976 = vpop.permute.xlu0 %975
    %977 = vrot.lane.b32.xlu0 %v80, 18
    %v978 = vpop.permute.xlu0 %977
    %979 = vrot.lane.b32.xlu0 %v82, 18
    %v980 = vpop.permute.xlu0 %979
    %981 = vrot.lane.b32.xlu0 %v84, 18
    %v982 = vpop.permute.xlu0 %981
    %vm983 = vcmask 146432
    %v984 = vsel %vm983, %v976, %v964
    %v985 = vsel %vm983, %v978, %v966
    %v986 = vsel %vm983, %v980, %v968
    %v987 = vsel %vm983, %v982, %v970
    %v996 = vsel %vm983, %v964, %v976
    %v997 = vsel %vm983, %v966, %v978
    %v998 = vsel %vm983, %v968, %v980
    %v999 = vsel %vm983, %v970, %v982
    %s1000 = scalar_lea.vmem [#allocation7], 480
    %v1001 = vld [vmem:[%s1000] sm:$0xff]
    %v1002 = vld [vmem:[%s1000 + $0x8] sm:$0xff]
    %v1003 = vld [vmem:[%s1000 + $0x10] sm:$0xff]
    %v1004 = vld [vmem:[%s1000 + $0x18] sm:$0xff]
    %v1005 = vmul.f32 %v996, %v1001
    %v1006 = vmul.f32 %v984, %v1002
    %v1007 = vmul.f32 %v997, %v1003
    %v1008 = vmul.f32 %v985, %v1004
    %v1009 = vmul.f32 %v998, %v1001
    %v1010 = vmul.f32 %v986, %v1002
    %v1011 = vmul.f32 %v999, %v1003
    %v1012 = vmul.f32 %v987, %v1004
    %v1013 = vadd.f32 %v781, %v1005
    %v1014 = vadd.f32 %v782, %v1006
    %v1015 = vadd.f32 %v783, %v1007
    %v1016 = vadd.f32 %v784, %v1008
    %v1017 = vadd.f32 %v785, %v1009
    %v1018 = vadd.f32 %v786, %v1010
    %v1019 = vadd.f32 %v787, %v1011
    %v1020 = vadd.f32 %v788, %v1012
    %1021 = vrot.lane.b32.xlu0 %v79, 17
    %v1022 = vpop.permute.xlu0 %1021
    %1023 = vrot.lane.b32.xlu0 %v81, 17
    %v1024 = vpop.permute.xlu0 %1023
    %1025 = vrot.lane.b32.xlu0 %v83, 17
    %v1026 = vpop.permute.xlu0 %1025
    %1027 = vrot.lane.b32.xlu0 %v85, 17
    %v1028 = vpop.permute.xlu0 %1027
    %1033 = vrot.lane.b32.xlu0 %v78, 17
    %v1034 = vpop.permute.xlu0 %1033
    %1035 = vrot.lane.b32.xlu0 %v80, 17
    %v1036 = vpop.permute.xlu0 %1035
    %1037 = vrot.lane.b32.xlu0 %v82, 17
    %v1038 = vpop.permute.xlu0 %1037
    %1039 = vrot.lane.b32.xlu0 %v84, 17
    %v1040 = vpop.permute.xlu0 %1039
    %vm1041 = vcmask 138240
    %v1042 = vsel %vm1041, %v1034, %v1022
    %v1043 = vsel %vm1041, %v1036, %v1024
    %v1044 = vsel %vm1041, %v1038, %v1026
    %v1045 = vsel %vm1041, %v1040, %v1028
    %v1054 = vsel %vm1041, %v1022, %v1034
    %v1055 = vsel %vm1041, %v1024, %v1036
    %v1056 = vsel %vm1041, %v1026, %v1038
    %v1057 = vsel %vm1041, %v1028, %v1040
    %s1058 = scalar_lea.vmem [#allocation7], 512
    %v1059 = vld [vmem:[%s1058] sm:$0xff]
    %v1060 = vld [vmem:[%s1058 + $0x8] sm:$0xff]
    %v1061 = vld [vmem:[%s1058 + $0x10] sm:$0xff]
    %v1062 = vld [vmem:[%s1058 + $0x18] sm:$0xff]
    %v1063 = vmul.f32 %v1054, %v1059
    %v1064 = vmul.f32 %v1042, %v1060
    %v1065 = vmul.f32 %v1055, %v1061
    %v1066 = vmul.f32 %v1043, %v1062
    %v1067 = vmul.f32 %v1056, %v1059
    %v1068 = vmul.f32 %v1044, %v1060
    %v1069 = vmul.f32 %v1057, %v1061
    %v1070 = vmul.f32 %v1045, %v1062
    %v1071 = vadd.f32 %v839, %v1063
    %v1072 = vadd.f32 %v840, %v1064
    %v1073 = vadd.f32 %v841, %v1065
    %v1074 = vadd.f32 %v842, %v1066
    %v1075 = vadd.f32 %v843, %v1067
    %v1076 = vadd.f32 %v844, %v1068
    %v1077 = vadd.f32 %v845, %v1069
    %v1078 = vadd.f32 %v846, %v1070
    %1079 = vrot.lane.b32.xlu0 %v79, 16
    %v1080 = vpop.permute.xlu0 %1079
    %1081 = vrot.lane.b32.xlu0 %v81, 16
    %v1082 = vpop.permute.xlu0 %1081
    %1083 = vrot.lane.b32.xlu0 %v83, 16
    %v1084 = vpop.permute.xlu0 %1083
    %1085 = vrot.lane.b32.xlu0 %v85, 16
    %v1086 = vpop.permute.xlu0 %1085
    %1091 = vrot.lane.b32.xlu0 %v78, 16
    %v1092 = vpop.permute.xlu0 %1091
    %1093 = vrot.lane.b32.xlu0 %v80, 16
    %v1094 = vpop.permute.xlu0 %1093
    %1095 = vrot.lane.b32.xlu0 %v82, 16
    %v1096 = vpop.permute.xlu0 %1095
    %1097 = vrot.lane.b32.xlu0 %v84, 16
    %v1098 = vpop.permute.xlu0 %1097
    %vm1099 = vcmask 130048
    %v1100 = vsel %vm1099, %v1092, %v1080
    %v1101 = vsel %vm1099, %v1094, %v1082
    %v1102 = vsel %vm1099, %v1096, %v1084
    %v1103 = vsel %vm1099, %v1098, %v1086
    %v1112 = vsel %vm1099, %v1080, %v1092
    %v1113 = vsel %vm1099, %v1082, %v1094
    %v1114 = vsel %vm1099, %v1084, %v1096
    %v1115 = vsel %vm1099, %v1086, %v1098
    %s1116 = scalar_lea.vmem [#allocation7], 544
    %v1117 = vld [vmem:[%s1116] sm:$0xff]
    %v1118 = vld [vmem:[%s1116 + $0x8] sm:$0xff]
    %v1119 = vld [vmem:[%s1116 + $0x10] sm:$0xff]
    %v1120 = vld [vmem:[%s1116 + $0x18] sm:$0xff]
    %v1121 = vmul.f32 %v1112, %v1117
    %v1122 = vmul.f32 %v1100, %v1118
    %v1123 = vmul.f32 %v1113, %v1119
    %v1124 = vmul.f32 %v1101, %v1120
    %v1125 = vmul.f32 %v1114, %v1117
    %v1126 = vmul.f32 %v1102, %v1118
    %v1127 = vmul.f32 %v1115, %v1119
    %v1128 = vmul.f32 %v1103, %v1120
    %v1129 = vadd.f32 %v897, %v1121
    %v1130 = vadd.f32 %v898, %v1122
    %v1131 = vadd.f32 %v899, %v1123
    %v1132 = vadd.f32 %v900, %v1124
    %v1133 = vadd.f32 %v901, %v1125
    %v1134 = vadd.f32 %v902, %v1126
    %v1135 = vadd.f32 %v903, %v1127
    %v1136 = vadd.f32 %v904, %v1128
    %1137 = vrot.lane.b32.xlu0 %v79, 15
    %v1138 = vpop.permute.xlu0 %1137
    %1139 = vrot.lane.b32.xlu0 %v81, 15
    %v1140 = vpop.permute.xlu0 %1139
    %1141 = vrot.lane.b32.xlu0 %v83, 15
    %v1142 = vpop.permute.xlu0 %1141
    %1143 = vrot.lane.b32.xlu0 %v85, 15
    %v1144 = vpop.permute.xlu0 %1143
    %1149 = vrot.lane.b32.xlu0 %v78, 15
    %v1150 = vpop.permute.xlu0 %1149
    %1151 = vrot.lane.b32.xlu0 %v80, 15
    %v1152 = vpop.permute.xlu0 %1151
    %1153 = vrot.lane.b32.xlu0 %v82, 15
    %v1154 = vpop.permute.xlu0 %1153
    %1155 = vrot.lane.b32.xlu0 %v84, 15
    %v1156 = vpop.permute.xlu0 %1155
    %vm1157 = vcmask 121856
    %v1158 = vsel %vm1157, %v1150, %v1138
    %v1159 = vsel %vm1157, %v1152, %v1140
    %v1160 = vsel %vm1157, %v1154, %v1142
    %v1161 = vsel %vm1157, %v1156, %v1144
    %v1170 = vsel %vm1157, %v1138, %v1150
    %v1171 = vsel %vm1157, %v1140, %v1152
    %v1172 = vsel %vm1157, %v1142, %v1154
    %v1173 = vsel %vm1157, %v1144, %v1156
    %s1174 = scalar_lea.vmem [#allocation7], 576
    %v1175 = vld [vmem:[%s1174] sm:$0xff]
    %v1176 = vld [vmem:[%s1174 + $0x8] sm:$0xff]
    %v1177 = vld [vmem:[%s1174 + $0x10] sm:$0xff]
    %v1178 = vld [vmem:[%s1174 + $0x18] sm:$0xff]
    %v1179 = vmul.f32 %v1170, %v1175
    %v1180 = vmul.f32 %v1158, %v1176
    %v1181 = vmul.f32 %v1171, %v1177
    %v1182 = vmul.f32 %v1159, %v1178
    %v1183 = vmul.f32 %v1172, %v1175
    %v1184 = vmul.f32 %v1160, %v1176
    %v1185 = vmul.f32 %v1173, %v1177
    %v1186 = vmul.f32 %v1161, %v1178
    %v1187 = vadd.f32 %v955, %v1179
    %v1188 = vadd.f32 %v956, %v1180
    %v1189 = vadd.f32 %v957, %v1181
    %v1190 = vadd.f32 %v958, %v1182
    %v1191 = vadd.f32 %v959, %v1183
    %v1192 = vadd.f32 %v960, %v1184
    %v1193 = vadd.f32 %v961, %v1185
    %v1194 = vadd.f32 %v962, %v1186
    %1195 = vrot.lane.b32.xlu0 %v79, 14
    %v1196 = vpop.permute.xlu0 %1195
    %1197 = vrot.lane.b32.xlu0 %v81, 14
    %v1198 = vpop.permute.xlu0 %1197
    %1199 = vrot.lane.b32.xlu0 %v83, 14
    %v1200 = vpop.permute.xlu0 %1199
    %1201 = vrot.lane.b32.xlu0 %v85, 14
    %v1202 = vpop.permute.xlu0 %1201
    %1207 = vrot.lane.b32.xlu0 %v78, 14
    %v1208 = vpop.permute.xlu0 %1207
    %1209 = vrot.lane.b32.xlu0 %v80, 14
    %v1210 = vpop.permute.xlu0 %1209
    %1211 = vrot.lane.b32.xlu0 %v82, 14
    %v1212 = vpop.permute.xlu0 %1211
    %1213 = vrot.lane.b32.xlu0 %v84, 14
    %v1214 = vpop.permute.xlu0 %1213
    %vm1215 = vcmask 113664
    %v1216 = vsel %vm1215, %v1208, %v1196
    %v1217 = vsel %vm1215, %v1210, %v1198
    %v1218 = vsel %vm1215, %v1212, %v1200
    %v1219 = vsel %vm1215, %v1214, %v1202
    %v1228 = vsel %vm1215, %v1196, %v1208
    %v1229 = vsel %vm1215, %v1198, %v1210
    %v1230 = vsel %vm1215, %v1200, %v1212
    %v1231 = vsel %vm1215, %v1202, %v1214
    %s1232 = scalar_lea.vmem [#allocation7], 608
    %v1233 = vld [vmem:[%s1232] sm:$0xff]
    %v1234 = vld [vmem:[%s1232 + $0x8] sm:$0xff]
    %v1235 = vld [vmem:[%s1232 + $0x10] sm:$0xff]
    %v1236 = vld [vmem:[%s1232 + $0x18] sm:$0xff]
    %v1237 = vmul.f32 %v1228, %v1233
    %v1238 = vmul.f32 %v1216, %v1234
    %v1239 = vmul.f32 %v1229, %v1235
    %v1240 = vmul.f32 %v1217, %v1236
    %v1241 = vmul.f32 %v1230, %v1233
    %v1242 = vmul.f32 %v1218, %v1234
    %v1243 = vmul.f32 %v1231, %v1235
    %v1244 = vmul.f32 %v1219, %v1236
    %v1245 = vadd.f32 %v1013, %v1237
    %v1246 = vadd.f32 %v1014, %v1238
    %v1247 = vadd.f32 %v1015, %v1239
    %v1248 = vadd.f32 %v1016, %v1240
    %v1249 = vadd.f32 %v1017, %v1241
    %v1250 = vadd.f32 %v1018, %v1242
    %v1251 = vadd.f32 %v1019, %v1243
    %v1252 = vadd.f32 %v1020, %v1244
    %1253 = vrot.lane.b32.xlu0 %v79, 13
    %v1254 = vpop.permute.xlu0 %1253
    %1255 = vrot.lane.b32.xlu0 %v81, 13
    %v1256 = vpop.permute.xlu0 %1255
    %1257 = vrot.lane.b32.xlu0 %v83, 13
    %v1258 = vpop.permute.xlu0 %1257
    %1259 = vrot.lane.b32.xlu0 %v85, 13
    %v1260 = vpop.permute.xlu0 %1259
    %1265 = vrot.lane.b32.xlu0 %v78, 13
    %v1266 = vpop.permute.xlu0 %1265
    %1267 = vrot.lane.b32.xlu0 %v80, 13
    %v1268 = vpop.permute.xlu0 %1267
    %1269 = vrot.lane.b32.xlu0 %v82, 13
    %v1270 = vpop.permute.xlu0 %1269
    %1271 = vrot.lane.b32.xlu0 %v84, 13
    %v1272 = vpop.permute.xlu0 %1271
    %vm1273 = vcmask 105472
    %v1274 = vsel %vm1273, %v1266, %v1254
    %v1275 = vsel %vm1273, %v1268, %v1256
    %v1276 = vsel %vm1273, %v1270, %v1258
    %v1277 = vsel %vm1273, %v1272, %v1260
    %v1286 = vsel %vm1273, %v1254, %v1266
    %v1287 = vsel %vm1273, %v1256, %v1268
    %v1288 = vsel %vm1273, %v1258, %v1270
    %v1289 = vsel %vm1273, %v1260, %v1272
    %s1290 = scalar_lea.vmem [#allocation7], 640
    %v1291 = vld [vmem:[%s1290] sm:$0xff]
    %v1292 = vld [vmem:[%s1290 + $0x8] sm:$0xff]
    %v1293 = vld [vmem:[%s1290 + $0x10] sm:$0xff]
    %v1294 = vld [vmem:[%s1290 + $0x18] sm:$0xff]
    %v1295 = vmul.f32 %v1286, %v1291
    %v1296 = vmul.f32 %v1274, %v1292
    %v1297 = vmul.f32 %v1287, %v1293
    %v1298 = vmul.f32 %v1275, %v1294
    %v1299 = vmul.f32 %v1288, %v1291
    %v1300 = vmul.f32 %v1276, %v1292
    %v1301 = vmul.f32 %v1289, %v1293
    %v1302 = vmul.f32 %v1277, %v1294
    %v1303 = vadd.f32 %v1071, %v1295
    %v1304 = vadd.f32 %v1072, %v1296
    %v1305 = vadd.f32 %v1073, %v1297
    %v1306 = vadd.f32 %v1074, %v1298
    %v1307 = vadd.f32 %v1075, %v1299
    %v1308 = vadd.f32 %v1076, %v1300
    %v1309 = vadd.f32 %v1077, %v1301
    %v1310 = vadd.f32 %v1078, %v1302
    %1311 = vrot.lane.b32.xlu0 %v79, 3
    %v1312 = vpop.permute.xlu0 %1311
    %1313 = vrot.lane.b32.xlu0 %v81, 3
    %v1314 = vpop.permute.xlu0 %1313
    %1315 = vrot.lane.b32.xlu0 %v83, 3
    %v1316 = vpop.permute.xlu0 %1315
    %1317 = vrot.lane.b32.xlu0 %v85, 3
    %v1318 = vpop.permute.xlu0 %1317
    %1323 = vrot.lane.b32.xlu0 %v78, 3
    %v1324 = vpop.permute.xlu0 %1323
    %1325 = vrot.lane.b32.xlu0 %v80, 3
    %v1326 = vpop.permute.xlu0 %1325
    %1327 = vrot.lane.b32.xlu0 %v82, 3
    %v1328 = vpop.permute.xlu0 %1327
    %1329 = vrot.lane.b32.xlu0 %v84, 3
    %v1330 = vpop.permute.xlu0 %1329
    %vm1331 = vcmask 23552
    %v1332 = vsel %vm1331, %v1324, %v1312
    %v1333 = vsel %vm1331, %v1326, %v1314
    %v1334 = vsel %vm1331, %v1328, %v1316
    %v1335 = vsel %vm1331, %v1330, %v1318
    %v1344 = vsel %vm1331, %v1312, %v1324
    %v1345 = vsel %vm1331, %v1314, %v1326
    %v1346 = vsel %vm1331, %v1316, %v1328
    %v1347 = vsel %vm1331, %v1318, %v1330
    %s1348 = scalar_lea.vmem [#allocation7], 672
    %v1349 = vld [vmem:[%s1348] sm:$0xff]
    %v1350 = vld [vmem:[%s1348 + $0x8] sm:$0xff]
    %v1351 = vld [vmem:[%s1348 + $0x10] sm:$0xff]
    %v1352 = vld [vmem:[%s1348 + $0x18] sm:$0xff]
    %v1353 = vmul.f32 %v1344, %v1349
    %v1354 = vmul.f32 %v1332, %v1350
    %v1355 = vmul.f32 %v1345, %v1351
    %v1356 = vmul.f32 %v1333, %v1352
    %v1357 = vmul.f32 %v1346, %v1349
    %v1358 = vmul.f32 %v1334, %v1350
    %v1359 = vmul.f32 %v1347, %v1351
    %v1360 = vmul.f32 %v1335, %v1352
    %v1361 = vadd.f32 %v1129, %v1353
    %v1362 = vadd.f32 %v1130, %v1354
    %v1363 = vadd.f32 %v1131, %v1355
    %v1364 = vadd.f32 %v1132, %v1356
    %v1365 = vadd.f32 %v1133, %v1357
    %v1366 = vadd.f32 %v1134, %v1358
    %v1367 = vadd.f32 %v1135, %v1359
    %v1368 = vadd.f32 %v1136, %v1360
    %1369 = vrot.lane.b32.xlu0 %v79, 2
    %v1370 = vpop.permute.xlu0 %1369
    %1371 = vrot.lane.b32.xlu0 %v81, 2
    %v1372 = vpop.permute.xlu0 %1371
    %1373 = vrot.lane.b32.xlu0 %v83, 2
    %v1374 = vpop.permute.xlu0 %1373
    %1375 = vrot.lane.b32.xlu0 %v85, 2
    %v1376 = vpop.permute.xlu0 %1375
    %1381 = vrot.lane.b32.xlu0 %v78, 2
    %v1382 = vpop.permute.xlu0 %1381
    %1383 = vrot.lane.b32.xlu0 %v80, 2
    %v1384 = vpop.permute.xlu0 %1383
    %1385 = vrot.lane.b32.xlu0 %v82, 2
    %v1386 = vpop.permute.xlu0 %1385
    %1387 = vrot.lane.b32.xlu0 %v84, 2
    %v1388 = vpop.permute.xlu0 %1387
    %vm1389 = vcmask 15360
    %v1390 = vsel %vm1389, %v1382, %v1370
    %v1391 = vsel %vm1389, %v1384, %v1372
    %v1392 = vsel %vm1389, %v1386, %v1374
    %v1393 = vsel %vm1389, %v1388, %v1376
    %v1402 = vsel %vm1389, %v1370, %v1382
    %v1403 = vsel %vm1389, %v1372, %v1384
    %v1404 = vsel %vm1389, %v1374, %v1386
    %v1405 = vsel %vm1389, %v1376, %v1388
    %s1406 = scalar_lea.vmem [#allocation7], 704
    %v1407 = vld [vmem:[%s1406] sm:$0xff]
    %v1408 = vld [vmem:[%s1406 + $0x8] sm:$0xff]
    %v1409 = vld [vmem:[%s1406 + $0x10] sm:$0xff]
    %v1410 = vld [vmem:[%s1406 + $0x18] sm:$0xff]
    %v1411 = vmul.f32 %v1402, %v1407
    %v1412 = vmul.f32 %v1390, %v1408
    %v1413 = vmul.f32 %v1403, %v1409
    %v1414 = vmul.f32 %v1391, %v1410
    %v1415 = vmul.f32 %v1404, %v1407
    %v1416 = vmul.f32 %v1392, %v1408
    %v1417 = vmul.f32 %v1405, %v1409
    %v1418 = vmul.f32 %v1393, %v1410
    %v1419 = vadd.f32 %v1187, %v1411
    %v1420 = vadd.f32 %v1188, %v1412
    %v1421 = vadd.f32 %v1189, %v1413
    %v1422 = vadd.f32 %v1190, %v1414
    %v1423 = vadd.f32 %v1191, %v1415
    %v1424 = vadd.f32 %v1192, %v1416
    %v1425 = vadd.f32 %v1193, %v1417
    %v1426 = vadd.f32 %v1194, %v1418
    %1427 = vrot.lane.b32.xlu0 %v79, 1
    %v1428 = vpop.permute.xlu0 %1427
    %1429 = vrot.lane.b32.xlu0 %v81, 1
    %v1430 = vpop.permute.xlu0 %1429
    %1431 = vrot.lane.b32.xlu0 %v83, 1
    %v1432 = vpop.permute.xlu0 %1431
    %1433 = vrot.lane.b32.xlu0 %v85, 1
    %v1434 = vpop.permute.xlu0 %1433
    %1439 = vrot.lane.b32.xlu0 %v78, 1
    %v1440 = vpop.permute.xlu0 %1439
    %1441 = vrot.lane.b32.xlu0 %v80, 1
    %v1442 = vpop.permute.xlu0 %1441
    %1443 = vrot.lane.b32.xlu0 %v82, 1
    %v1444 = vpop.permute.xlu0 %1443
    %1445 = vrot.lane.b32.xlu0 %v84, 1
    %v1446 = vpop.permute.xlu0 %1445
    %vm1447 = vcmask 7168
    %v1448 = vsel %vm1447, %v1440, %v1428
    %v1449 = vsel %vm1447, %v1442, %v1430
    %v1450 = vsel %vm1447, %v1444, %v1432
    %v1451 = vsel %vm1447, %v1446, %v1434
    %v1460 = vsel %vm1447, %v1428, %v1440
    %v1461 = vsel %vm1447, %v1430, %v1442
    %v1462 = vsel %vm1447, %v1432, %v1444
    %v1463 = vsel %vm1447, %v1434, %v1446
    %s1464 = scalar_lea.vmem [#allocation7], 736
    %v1465 = vld [vmem:[%s1464] sm:$0xff]
    %v1466 = vld [vmem:[%s1464 + $0x8] sm:$0xff]
    %v1467 = vld [vmem:[%s1464 + $0x10] sm:$0xff]
    %v1468 = vld [vmem:[%s1464 + $0x18] sm:$0xff]
    %v1469 = vmul.f32 %v1460, %v1465
    %v1470 = vmul.f32 %v1448, %v1466
    %v1471 = vmul.f32 %v1461, %v1467
    %v1472 = vmul.f32 %v1449, %v1468
    %v1473 = vmul.f32 %v1462, %v1465
    %v1474 = vmul.f32 %v1450, %v1466
    %v1475 = vmul.f32 %v1463, %v1467
    %v1476 = vmul.f32 %v1451, %v1468
    %v1477 = vadd.f32 %v1245, %v1469
    %v1478 = vadd.f32 %v1246, %v1470
    %v1479 = vadd.f32 %v1247, %v1471
    %v1480 = vadd.f32 %v1248, %v1472
    %v1481 = vadd.f32 %v1249, %v1473
    %v1482 = vadd.f32 %v1250, %v1474
    %v1483 = vadd.f32 %v1251, %v1475
    %v1484 = vadd.f32 %v1252, %v1476
    %s1485 = scalar_lea.vmem [#allocation7], 768
    %v1486 = vld [vmem:[%s1485] sm:$0xff]
    %v1487 = vld [vmem:[%s1485 + $0x8] sm:$0xff]
    %v1488 = vld [vmem:[%s1485 + $0x10] sm:$0xff]
    %v1489 = vld [vmem:[%s1485 + $0x18] sm:$0xff]
    %v1490 = vmul.f32 %v78, %v1486
    %v1491 = vmul.f32 %v79, %v1487
    %v1492 = vmul.f32 %v80, %v1488
    %v1493 = vmul.f32 %v81, %v1489
    %v1494 = vmul.f32 %v82, %v1486
    %v1495 = vmul.f32 %v83, %v1487
    %v1496 = vmul.f32 %v84, %v1488
    %v1497 = vmul.f32 %v85, %v1489
    %v1498 = vadd.f32 %v1303, %v1490
    %v1499 = vadd.f32 %v1304, %v1491
    %v1500 = vadd.f32 %v1305, %v1492
    %v1501 = vadd.f32 %v1306, %v1493
    %v1502 = vadd.f32 %v1307, %v1494
    %v1503 = vadd.f32 %v1308, %v1495
    %v1504 = vadd.f32 %v1309, %v1496
    %v1505 = vadd.f32 %v1310, %v1497
    %1506 = vrot.lane.b32.xlu0 %v78, 127
    %v1507 = vpop.permute.xlu0 %1506
    %1508 = vrot.lane.b32.xlu0 %v79, 127
    %v1509 = vpop.permute.xlu0 %1508
    %1510 = vrot.lane.b32.xlu0 %v80, 127
    %v1511 = vpop.permute.xlu0 %1510
    %1512 = vrot.lane.b32.xlu0 %v81, 127
    %v1513 = vpop.permute.xlu0 %1512
    %1514 = vrot.lane.b32.xlu0 %v82, 127
    %v1515 = vpop.permute.xlu0 %1514
    %1516 = vrot.lane.b32.xlu0 %v83, 127
    %v1517 = vpop.permute.xlu0 %1516
    %1518 = vrot.lane.b32.xlu0 %v84, 127
    %v1519 = vpop.permute.xlu0 %1518
    %1520 = vrot.lane.b32.xlu0 %v85, 127
    %v1521 = vpop.permute.xlu0 %1520
    %vm1522 = vcmask 1039360
    %v1523 = vsel %vm1522, %v1507, %v1509
    %v1524 = vsel %vm1522, %v1511, %v1513
    %v1525 = vsel %vm1522, %v1515, %v1517
    %v1526 = vsel %vm1522, %v1519, %v1521
    %v1539 = vsel %vm1522, %v1509, %v1507
    %v1540 = vsel %vm1522, %v1513, %v1511
    %v1541 = vsel %vm1522, %v1517, %v1515
    %v1542 = vsel %vm1522, %v1521, %v1519
    %s1543 = scalar_lea.vmem [#allocation7], 800
    %v1544 = vld [vmem:[%s1543] sm:$0xff]
    %v1545 = vld [vmem:[%s1543 + $0x8] sm:$0xff]
    %v1546 = vld [vmem:[%s1543 + $0x10] sm:$0xff]
    %v1547 = vld [vmem:[%s1543 + $0x18] sm:$0xff]
    %v1548 = vmul.f32 %v1523, %v1544
    %v1549 = vmul.f32 %v1539, %v1545
    %v1550 = vmul.f32 %v1524, %v1546
    %v1551 = vmul.f32 %v1540, %v1547
    %v1552 = vmul.f32 %v1525, %v1544
    %v1553 = vmul.f32 %v1541, %v1545
    %v1554 = vmul.f32 %v1526, %v1546
    %v1555 = vmul.f32 %v1542, %v1547
    %v1556 = vadd.f32 %v1361, %v1548
    %v1557 = vadd.f32 %v1362, %v1549
    %v1558 = vadd.f32 %v1363, %v1550
    %v1559 = vadd.f32 %v1364, %v1551
    %v1560 = vadd.f32 %v1365, %v1552
    %v1561 = vadd.f32 %v1366, %v1553
    %v1562 = vadd.f32 %v1367, %v1554
    %v1563 = vadd.f32 %v1368, %v1555
    %1564 = vrot.lane.b32.xlu0 %v78, 126
    %v1565 = vpop.permute.xlu0 %1564
    %1566 = vrot.lane.b32.xlu0 %v79, 126
    %v1567 = vpop.permute.xlu0 %1566
    %1568 = vrot.lane.b32.xlu0 %v80, 126
    %v1569 = vpop.permute.xlu0 %1568
    %1570 = vrot.lane.b32.xlu0 %v81, 126
    %v1571 = vpop.permute.xlu0 %1570
    %1572 = vrot.lane.b32.xlu0 %v82, 126
    %v1573 = vpop.permute.xlu0 %1572
    %1574 = vrot.lane.b32.xlu0 %v83, 126
    %v1575 = vpop.permute.xlu0 %1574
    %1576 = vrot.lane.b32.xlu0 %v84, 126
    %v1577 = vpop.permute.xlu0 %1576
    %1578 = vrot.lane.b32.xlu0 %v85, 126
    %v1579 = vpop.permute.xlu0 %1578
    %vm1580 = vcmask 1031168
    %v1581 = vsel %vm1580, %v1565, %v1567
    %v1582 = vsel %vm1580, %v1569, %v1571
    %v1583 = vsel %vm1580, %v1573, %v1575
    %v1584 = vsel %vm1580, %v1577, %v1579
    %v1597 = vsel %vm1580, %v1567, %v1565
    %v1598 = vsel %vm1580, %v1571, %v1569
    %v1599 = vsel %vm1580, %v1575, %v1573
    %v1600 = vsel %vm1580, %v1579, %v1577
    %s1601 = scalar_lea.vmem [#allocation7], 832
    %v1602 = vld [vmem:[%s1601] sm:$0xff]
    %v1603 = vld [vmem:[%s1601 + $0x8] sm:$0xff]
    %v1604 = vld [vmem:[%s1601 + $0x10] sm:$0xff]
    %v1605 = vld [vmem:[%s1601 + $0x18] sm:$0xff]
    %v1606 = vmul.f32 %v1581, %v1602
    %v1607 = vmul.f32 %v1597, %v1603
    %v1608 = vmul.f32 %v1582, %v1604
    %v1609 = vmul.f32 %v1598, %v1605
    %v1610 = vmul.f32 %v1583, %v1602
    %v1611 = vmul.f32 %v1599, %v1603
    %v1612 = vmul.f32 %v1584, %v1604
    %v1613 = vmul.f32 %v1600, %v1605
    %v1614 = vadd.f32 %v1419, %v1606
    %v1615 = vadd.f32 %v1420, %v1607
    %v1616 = vadd.f32 %v1421, %v1608
    %v1617 = vadd.f32 %v1422, %v1609
    %v1618 = vadd.f32 %v1423, %v1610
    %v1619 = vadd.f32 %v1424, %v1611
    %v1620 = vadd.f32 %v1425, %v1612
    %v1621 = vadd.f32 %v1426, %v1613
    %1622 = vrot.lane.b32.xlu0 %v78, 125
    %v1623 = vpop.permute.xlu0 %1622
    %1624 = vrot.lane.b32.xlu0 %v79, 125
    %v1625 = vpop.permute.xlu0 %1624
    %1626 = vrot.lane.b32.xlu0 %v80, 125
    %v1627 = vpop.permute.xlu0 %1626
    %1628 = vrot.lane.b32.xlu0 %v81, 125
    %v1629 = vpop.permute.xlu0 %1628
    %1630 = vrot.lane.b32.xlu0 %v82, 125
    %v1631 = vpop.permute.xlu0 %1630
    %1632 = vrot.lane.b32.xlu0 %v83, 125
    %v1633 = vpop.permute.xlu0 %1632
    %1634 = vrot.lane.b32.xlu0 %v84, 125
    %v1635 = vpop.permute.xlu0 %1634
    %1636 = vrot.lane.b32.xlu0 %v85, 125
    %v1637 = vpop.permute.xlu0 %1636
    %vm1638 = vcmask 1022976
    %v1639 = vsel %vm1638, %v1623, %v1625
    %v1640 = vsel %vm1638, %v1627, %v1629
    %v1641 = vsel %vm1638, %v1631, %v1633
    %v1642 = vsel %vm1638, %v1635, %v1637
    %v1655 = vsel %vm1638, %v1625, %v1623
    %v1656 = vsel %vm1638, %v1629, %v1627
    %v1657 = vsel %vm1638, %v1633, %v1631
    %v1658 = vsel %vm1638, %v1637, %v1635
    %s1659 = scalar_lea.vmem [#allocation7], 864
    %v1660 = vld [vmem:[%s1659] sm:$0xff]
    %v1661 = vld [vmem:[%s1659 + $0x8] sm:$0xff]
    %v1662 = vld [vmem:[%s1659 + $0x10] sm:$0xff]
    %v1663 = vld [vmem:[%s1659 + $0x18] sm:$0xff]
    %v1664 = vmul.f32 %v1639, %v1660
    %v1665 = vmul.f32 %v1655, %v1661
    %v1666 = vmul.f32 %v1640, %v1662
    %v1667 = vmul.f32 %v1656, %v1663
    %v1668 = vmul.f32 %v1641, %v1660
    %v1669 = vmul.f32 %v1657, %v1661
    %v1670 = vmul.f32 %v1642, %v1662
    %v1671 = vmul.f32 %v1658, %v1663
    %v1672 = vadd.f32 %v1477, %v1664
    %v1673 = vadd.f32 %v1478, %v1665
    %v1674 = vadd.f32 %v1479, %v1666
    %v1675 = vadd.f32 %v1480, %v1667
    %v1676 = vadd.f32 %v1481, %v1668
    %v1677 = vadd.f32 %v1482, %v1669
    %v1678 = vadd.f32 %v1483, %v1670
    %v1679 = vadd.f32 %v1484, %v1671
    %1680 = vrot.lane.b32.xlu0 %v78, 115
    %v1681 = vpop.permute.xlu0 %1680
    %1682 = vrot.lane.b32.xlu0 %v79, 115
    %v1683 = vpop.permute.xlu0 %1682
    %1684 = vrot.lane.b32.xlu0 %v80, 115
    %v1685 = vpop.permute.xlu0 %1684
    %1686 = vrot.lane.b32.xlu0 %v81, 115
    %v1687 = vpop.permute.xlu0 %1686
    %1688 = vrot.lane.b32.xlu0 %v82, 115
    %v1689 = vpop.permute.xlu0 %1688
    %1690 = vrot.lane.b32.xlu0 %v83, 115
    %v1691 = vpop.permute.xlu0 %1690
    %1692 = vrot.lane.b32.xlu0 %v84, 115
    %v1693 = vpop.permute.xlu0 %1692
    %1694 = vrot.lane.b32.xlu0 %v85, 115
    %v1695 = vpop.permute.xlu0 %1694
    %vm1696 = vcmask 941056
    %v1697 = vsel %vm1696, %v1681, %v1683
    %v1698 = vsel %vm1696, %v1685, %v1687
    %v1699 = vsel %vm1696, %v1689, %v1691
    %v1700 = vsel %vm1696, %v1693, %v1695
    %v1713 = vsel %vm1696, %v1683, %v1681
    %v1714 = vsel %vm1696, %v1687, %v1685
    %v1715 = vsel %vm1696, %v1691, %v1689
    %v1716 = vsel %vm1696, %v1695, %v1693
    %s1717 = scalar_lea.vmem [#allocation7], 896
    %v1718 = vld [vmem:[%s1717] sm:$0xff]
    %v1719 = vld [vmem:[%s1717 + $0x8] sm:$0xff]
    %v1720 = vld [vmem:[%s1717 + $0x10] sm:$0xff]
    %v1721 = vld [vmem:[%s1717 + $0x18] sm:$0xff]
    %v1722 = vmul.f32 %v1697, %v1718
    %v1723 = vmul.f32 %v1713, %v1719
    %v1724 = vmul.f32 %v1698, %v1720
    %v1725 = vmul.f32 %v1714, %v1721
    %v1726 = vmul.f32 %v1699, %v1718
    %v1727 = vmul.f32 %v1715, %v1719
    %v1728 = vmul.f32 %v1700, %v1720
    %v1729 = vmul.f32 %v1716, %v1721
    %v1730 = vadd.f32 %v1498, %v1722
    %v1731 = vadd.f32 %v1499, %v1723
    %v1732 = vadd.f32 %v1500, %v1724
    %v1733 = vadd.f32 %v1501, %v1725
    %v1734 = vadd.f32 %v1502, %v1726
    %v1735 = vadd.f32 %v1503, %v1727
    %v1736 = vadd.f32 %v1504, %v1728
    %v1737 = vadd.f32 %v1505, %v1729
    %1738 = vrot.lane.b32.xlu0 %v78, 114
    %v1739 = vpop.permute.xlu0 %1738
    %1740 = vrot.lane.b32.xlu0 %v79, 114
    %v1741 = vpop.permute.xlu0 %1740
    %1742 = vrot.lane.b32.xlu0 %v80, 114
    %v1743 = vpop.permute.xlu0 %1742
    %1744 = vrot.lane.b32.xlu0 %v81, 114
    %v1745 = vpop.permute.xlu0 %1744
    %1746 = vrot.lane.b32.xlu0 %v82, 114
    %v1747 = vpop.permute.xlu0 %1746
    %1748 = vrot.lane.b32.xlu0 %v83, 114
    %v1749 = vpop.permute.xlu0 %1748
    %1750 = vrot.lane.b32.xlu0 %v84, 114
    %v1751 = vpop.permute.xlu0 %1750
    %1752 = vrot.lane.b32.xlu0 %v85, 114
    %v1753 = vpop.permute.xlu0 %1752
    %vm1754 = vcmask 932864
    %v1755 = vsel %vm1754, %v1739, %v1741
    %v1756 = vsel %vm1754, %v1743, %v1745
    %v1757 = vsel %vm1754, %v1747, %v1749
    %v1758 = vsel %vm1754, %v1751, %v1753
    %v1771 = vsel %vm1754, %v1741, %v1739
    %v1772 = vsel %vm1754, %v1745, %v1743
    %v1773 = vsel %vm1754, %v1749, %v1747
    %v1774 = vsel %vm1754, %v1753, %v1751
    %s1775 = scalar_lea.vmem [#allocation7], 928
    %v1776 = vld [vmem:[%s1775] sm:$0xff]
    %v1777 = vld [vmem:[%s1775 + $0x8] sm:$0xff]
    %v1778 = vld [vmem:[%s1775 + $0x10] sm:$0xff]
    %v1779 = vld [vmem:[%s1775 + $0x18] sm:$0xff]
    %v1780 = vmul.f32 %v1755, %v1776
    %v1781 = vmul.f32 %v1771, %v1777
    %v1782 = vmul.f32 %v1756, %v1778
    %v1783 = vmul.f32 %v1772, %v1779
    %v1784 = vmul.f32 %v1757, %v1776
    %v1785 = vmul.f32 %v1773, %v1777
    %v1786 = vmul.f32 %v1758, %v1778
    %v1787 = vmul.f32 %v1774, %v1779
    %v1788 = vadd.f32 %v1556, %v1780
    %v1789 = vadd.f32 %v1557, %v1781
    %v1790 = vadd.f32 %v1558, %v1782
    %v1791 = vadd.f32 %v1559, %v1783
    %v1792 = vadd.f32 %v1560, %v1784
    %v1793 = vadd.f32 %v1561, %v1785
    %v1794 = vadd.f32 %v1562, %v1786
    %v1795 = vadd.f32 %v1563, %v1787
    %1796 = vrot.lane.b32.xlu0 %v78, 113
    %v1797 = vpop.permute.xlu0 %1796
    %1798 = vrot.lane.b32.xlu0 %v79, 113
    %v1799 = vpop.permute.xlu0 %1798
    %1800 = vrot.lane.b32.xlu0 %v80, 113
    %v1801 = vpop.permute.xlu0 %1800
    %1802 = vrot.lane.b32.xlu0 %v81, 113
    %v1803 = vpop.permute.xlu0 %1802
    %1804 = vrot.lane.b32.xlu0 %v82, 113
    %v1805 = vpop.permute.xlu0 %1804
    %1806 = vrot.lane.b32.xlu0 %v83, 113
    %v1807 = vpop.permute.xlu0 %1806
    %1808 = vrot.lane.b32.xlu0 %v84, 113
    %v1809 = vpop.permute.xlu0 %1808
    %1810 = vrot.lane.b32.xlu0 %v85, 113
    %v1811 = vpop.permute.xlu0 %1810
    %vm1812 = vcmask 924672
    %v1813 = vsel %vm1812, %v1797, %v1799
    %v1814 = vsel %vm1812, %v1801, %v1803
    %v1815 = vsel %vm1812, %v1805, %v1807
    %v1816 = vsel %vm1812, %v1809, %v1811
    %v1829 = vsel %vm1812, %v1799, %v1797
    %v1830 = vsel %vm1812, %v1803, %v1801
    %v1831 = vsel %vm1812, %v1807, %v1805
    %v1832 = vsel %vm1812, %v1811, %v1809
    %s1833 = scalar_lea.vmem [#allocation7], 960
    %v1834 = vld [vmem:[%s1833] sm:$0xff]
    %v1835 = vld [vmem:[%s1833 + $0x8] sm:$0xff]
    %v1836 = vld [vmem:[%s1833 + $0x10] sm:$0xff]
    %v1837 = vld [vmem:[%s1833 + $0x18] sm:$0xff]
    %v1838 = vmul.f32 %v1813, %v1834
    %v1839 = vmul.f32 %v1829, %v1835
    %v1840 = vmul.f32 %v1814, %v1836
    %v1841 = vmul.f32 %v1830, %v1837
    %v1842 = vmul.f32 %v1815, %v1834
    %v1843 = vmul.f32 %v1831, %v1835
    %v1844 = vmul.f32 %v1816, %v1836
    %v1845 = vmul.f32 %v1832, %v1837
    %v1846 = vadd.f32 %v1614, %v1838
    %v1847 = vadd.f32 %v1615, %v1839
    %v1848 = vadd.f32 %v1616, %v1840
    %v1849 = vadd.f32 %v1617, %v1841
    %v1850 = vadd.f32 %v1618, %v1842
    %v1851 = vadd.f32 %v1619, %v1843
    %v1852 = vadd.f32 %v1620, %v1844
    %v1853 = vadd.f32 %v1621, %v1845
    %1854 = vrot.lane.b32.xlu0 %v78, 112
    %v1855 = vpop.permute.xlu0 %1854
    %1856 = vrot.lane.b32.xlu0 %v79, 112
    %v1857 = vpop.permute.xlu0 %1856
    %1858 = vrot.lane.b32.xlu0 %v80, 112
    %v1859 = vpop.permute.xlu0 %1858
    %1860 = vrot.lane.b32.xlu0 %v81, 112
    %v1861 = vpop.permute.xlu0 %1860
    %1862 = vrot.lane.b32.xlu0 %v82, 112
    %v1863 = vpop.permute.xlu0 %1862
    %1864 = vrot.lane.b32.xlu0 %v83, 112
    %v1865 = vpop.permute.xlu0 %1864
    %1866 = vrot.lane.b32.xlu0 %v84, 112
    %v1867 = vpop.permute.xlu0 %1866
    %1868 = vrot.lane.b32.xlu0 %v85, 112
    %v1869 = vpop.permute.xlu0 %1868
    %vm1870 = vcmask 916480
    %v1871 = vsel %vm1870, %v1855, %v1857
    %v1872 = vsel %vm1870, %v1859, %v1861
    %v1873 = vsel %vm1870, %v1863, %v1865
    %v1874 = vsel %vm1870, %v1867, %v1869
    %v1887 = vsel %vm1870, %v1857, %v1855
    %v1888 = vsel %vm1870, %v1861, %v1859
    %v1889 = vsel %vm1870, %v1865, %v1863
    %v1890 = vsel %vm1870, %v1869, %v1867
    %s1891 = scalar_lea.vmem [#allocation7], 992
    %v1892 = vld [vmem:[%s1891] sm:$0xff]
    %v1893 = vld [vmem:[%s1891 + $0x8] sm:$0xff]
    %v1894 = vld [vmem:[%s1891 + $0x10] sm:$0xff]
    %v1895 = vld [vmem:[%s1891 + $0x18] sm:$0xff]
    %v1896 = vmul.f32 %v1871, %v1892
    %v1897 = vmul.f32 %v1887, %v1893
    %v1898 = vmul.f32 %v1872, %v1894
    %v1899 = vmul.f32 %v1888, %v1895
    %v1900 = vmul.f32 %v1873, %v1892
    %v1901 = vmul.f32 %v1889, %v1893
    %v1902 = vmul.f32 %v1874, %v1894
    %v1903 = vmul.f32 %v1890, %v1895
    %v1904 = vadd.f32 %v1672, %v1896
    %v1905 = vadd.f32 %v1673, %v1897
    %v1906 = vadd.f32 %v1674, %v1898
    %v1907 = vadd.f32 %v1675, %v1899
    %v1908 = vadd.f32 %v1676, %v1900
    %v1909 = vadd.f32 %v1677, %v1901
    %v1910 = vadd.f32 %v1678, %v1902
    %v1911 = vadd.f32 %v1679, %v1903
    %1912 = vrot.lane.b32.xlu0 %v78, 111
    %v1913 = vpop.permute.xlu0 %1912
    %1914 = vrot.lane.b32.xlu0 %v79, 111
    %v1915 = vpop.permute.xlu0 %1914
    %1916 = vrot.lane.b32.xlu0 %v80, 111
    %v1917 = vpop.permute.xlu0 %1916
    %1918 = vrot.lane.b32.xlu0 %v81, 111
    %v1919 = vpop.permute.xlu0 %1918
    %1920 = vrot.lane.b32.xlu0 %v82, 111
    %v1921 = vpop.permute.xlu0 %1920
    %1922 = vrot.lane.b32.xlu0 %v83, 111
    %v1923 = vpop.permute.xlu0 %1922
    %1924 = vrot.lane.b32.xlu0 %v84, 111
    %v1925 = vpop.permute.xlu0 %1924
    %1926 = vrot.lane.b32.xlu0 %v85, 111
    %v1927 = vpop.permute.xlu0 %1926
    %vm1928 = vcmask 908288
    %v1929 = vsel %vm1928, %v1913, %v1915
    %v1930 = vsel %vm1928, %v1917, %v1919
    %v1931 = vsel %vm1928, %v1921, %v1923
    %v1932 = vsel %vm1928, %v1925, %v1927
    %v1945 = vsel %vm1928, %v1915, %v1913
    %v1946 = vsel %vm1928, %v1919, %v1917
    %v1947 = vsel %vm1928, %v1923, %v1921
    %v1948 = vsel %vm1928, %v1927, %v1925
    %s1949 = scalar_lea.vmem [#allocation7], 1024
    %v1950 = vld [vmem:[%s1949] sm:$0xff]
    %v1951 = vld [vmem:[%s1949 + $0x8] sm:$0xff]
    %v1952 = vld [vmem:[%s1949 + $0x10] sm:$0xff]
    %v1953 = vld [vmem:[%s1949 + $0x18] sm:$0xff]
    %v1954 = vmul.f32 %v1929, %v1950
    %v1955 = vmul.f32 %v1945, %v1951
    %v1956 = vmul.f32 %v1930, %v1952
    %v1957 = vmul.f32 %v1946, %v1953
    %v1958 = vmul.f32 %v1931, %v1950
    %v1959 = vmul.f32 %v1947, %v1951
    %v1960 = vmul.f32 %v1932, %v1952
    %v1961 = vmul.f32 %v1948, %v1953
    %v1962 = vadd.f32 %v1730, %v1954
    %v1963 = vadd.f32 %v1731, %v1955
    %v1964 = vadd.f32 %v1732, %v1956
    %v1965 = vadd.f32 %v1733, %v1957
    %v1966 = vadd.f32 %v1734, %v1958
    %v1967 = vadd.f32 %v1735, %v1959
    %v1968 = vadd.f32 %v1736, %v1960
    %v1969 = vadd.f32 %v1737, %v1961
    %1970 = vrot.lane.b32.xlu0 %v78, 110
    %v1971 = vpop.permute.xlu0 %1970
    %1972 = vrot.lane.b32.xlu0 %v79, 110
    %v1973 = vpop.permute.xlu0 %1972
    %1974 = vrot.lane.b32.xlu0 %v80, 110
    %v1975 = vpop.permute.xlu0 %1974
    %1976 = vrot.lane.b32.xlu0 %v81, 110
    %v1977 = vpop.permute.xlu0 %1976
    %1978 = vrot.lane.b32.xlu0 %v82, 110
    %v1979 = vpop.permute.xlu0 %1978
    %1980 = vrot.lane.b32.xlu0 %v83, 110
    %v1981 = vpop.permute.xlu0 %1980
    %1982 = vrot.lane.b32.xlu0 %v84, 110
    %v1983 = vpop.permute.xlu0 %1982
    %1984 = vrot.lane.b32.xlu0 %v85, 110
    %v1985 = vpop.permute.xlu0 %1984
    %vm1986 = vcmask 900096
    %v1987 = vsel %vm1986, %v1971, %v1973
    %v1988 = vsel %vm1986, %v1975, %v1977
    %v1989 = vsel %vm1986, %v1979, %v1981
    %v1990 = vsel %vm1986, %v1983, %v1985
    %v2003 = vsel %vm1986, %v1973, %v1971
    %v2004 = vsel %vm1986, %v1977, %v1975
    %v2005 = vsel %vm1986, %v1981, %v1979
    %v2006 = vsel %vm1986, %v1985, %v1983
    %s2007 = scalar_lea.vmem [#allocation7], 1056
    %v2008 = vld [vmem:[%s2007] sm:$0xff]
    %v2009 = vld [vmem:[%s2007 + $0x8] sm:$0xff]
    %v2010 = vld [vmem:[%s2007 + $0x10] sm:$0xff]
    %v2011 = vld [vmem:[%s2007 + $0x18] sm:$0xff]
    %v2012 = vmul.f32 %v1987, %v2008
    %v2013 = vmul.f32 %v2003, %v2009
    %v2014 = vmul.f32 %v1988, %v2010
    %v2015 = vmul.f32 %v2004, %v2011
    %v2016 = vmul.f32 %v1989, %v2008
    %v2017 = vmul.f32 %v2005, %v2009
    %v2018 = vmul.f32 %v1990, %v2010
    %v2019 = vmul.f32 %v2006, %v2011
    %v2020 = vadd.f32 %v1788, %v2012
    %v2021 = vadd.f32 %v1789, %v2013
    %v2022 = vadd.f32 %v1790, %v2014
    %v2023 = vadd.f32 %v1791, %v2015
    %v2024 = vadd.f32 %v1792, %v2016
    %v2025 = vadd.f32 %v1793, %v2017
    %v2026 = vadd.f32 %v1794, %v2018
    %v2027 = vadd.f32 %v1795, %v2019
    %2028 = vrot.lane.b32.xlu0 %v78, 109
    %v2029 = vpop.permute.xlu0 %2028
    %2030 = vrot.lane.b32.xlu0 %v79, 109
    %v2031 = vpop.permute.xlu0 %2030
    %2032 = vrot.lane.b32.xlu0 %v80, 109
    %v2033 = vpop.permute.xlu0 %2032
    %2034 = vrot.lane.b32.xlu0 %v81, 109
    %v2035 = vpop.permute.xlu0 %2034
    %2036 = vrot.lane.b32.xlu0 %v82, 109
    %v2037 = vpop.permute.xlu0 %2036
    %2038 = vrot.lane.b32.xlu0 %v83, 109
    %v2039 = vpop.permute.xlu0 %2038
    %2040 = vrot.lane.b32.xlu0 %v84, 109
    %v2041 = vpop.permute.xlu0 %2040
    %2042 = vrot.lane.b32.xlu0 %v85, 109
    %v2043 = vpop.permute.xlu0 %2042
    %vm2044 = vcmask 891904
    %v2045 = vsel %vm2044, %v2029, %v2031
    %v2046 = vsel %vm2044, %v2033, %v2035
    %v2047 = vsel %vm2044, %v2037, %v2039
    %v2048 = vsel %vm2044, %v2041, %v2043
    %v2061 = vsel %vm2044, %v2031, %v2029
    %v2062 = vsel %vm2044, %v2035, %v2033
    %v2063 = vsel %vm2044, %v2039, %v2037
    %v2064 = vsel %vm2044, %v2043, %v2041
    %s2065 = scalar_lea.vmem [#allocation7], 1088
    %v2066 = vld [vmem:[%s2065] sm:$0xff]
    %v2067 = vld [vmem:[%s2065 + $0x8] sm:$0xff]
    %v2068 = vld [vmem:[%s2065 + $0x10] sm:$0xff]
    %v2069 = vld [vmem:[%s2065 + $0x18] sm:$0xff]
    %v2070 = vmul.f32 %v2045, %v2066
    %v2071 = vmul.f32 %v2061, %v2067
    %v2072 = vmul.f32 %v2046, %v2068
    %v2073 = vmul.f32 %v2062, %v2069
    %v2074 = vmul.f32 %v2047, %v2066
    %v2075 = vmul.f32 %v2063, %v2067
    %v2076 = vmul.f32 %v2048, %v2068
    %v2077 = vmul.f32 %v2064, %v2069
    %v2078 = vadd.f32 %v1846, %v2070
    %v2079 = vadd.f32 %v1847, %v2071
    %v2080 = vadd.f32 %v1848, %v2072
    %v2081 = vadd.f32 %v1849, %v2073
    %v2082 = vadd.f32 %v1850, %v2074
    %v2083 = vadd.f32 %v1851, %v2075
    %v2084 = vadd.f32 %v1852, %v2076
    %v2085 = vadd.f32 %v1853, %v2077
    %2086 = vrot.lane.b32.xlu0 %v78, 99
    %v2087 = vpop.permute.xlu0 %2086
    %2088 = vrot.lane.b32.xlu0 %v79, 99
    %v2089 = vpop.permute.xlu0 %2088
    %2090 = vrot.lane.b32.xlu0 %v80, 99
    %v2091 = vpop.permute.xlu0 %2090
    %2092 = vrot.lane.b32.xlu0 %v81, 99
    %v2093 = vpop.permute.xlu0 %2092
    %2094 = vrot.lane.b32.xlu0 %v82, 99
    %v2095 = vpop.permute.xlu0 %2094
    %2096 = vrot.lane.b32.xlu0 %v83, 99
    %v2097 = vpop.permute.xlu0 %2096
    %2098 = vrot.lane.b32.xlu0 %v84, 99
    %v2099 = vpop.permute.xlu0 %2098
    %2100 = vrot.lane.b32.xlu0 %v85, 99
    %v2101 = vpop.permute.xlu0 %2100
    %vm2102 = vcmask 809984
    %v2103 = vsel %vm2102, %v2087, %v2089
    %v2104 = vsel %vm2102, %v2091, %v2093
    %v2105 = vsel %vm2102, %v2095, %v2097
    %v2106 = vsel %vm2102, %v2099, %v2101
    %v2119 = vsel %vm2102, %v2089, %v2087
    %v2120 = vsel %vm2102, %v2093, %v2091
    %v2121 = vsel %vm2102, %v2097, %v2095
    %v2122 = vsel %vm2102, %v2101, %v2099
    %s2123 = scalar_lea.vmem [#allocation7], 1120
    %v2124 = vld [vmem:[%s2123] sm:$0xff]
    %v2125 = vld [vmem:[%s2123 + $0x8] sm:$0xff]
    %v2126 = vld [vmem:[%s2123 + $0x10] sm:$0xff]
    %v2127 = vld [vmem:[%s2123 + $0x18] sm:$0xff]
    %v2128 = vmul.f32 %v2103, %v2124
    %v2129 = vmul.f32 %v2119, %v2125
    %v2130 = vmul.f32 %v2104, %v2126
    %v2131 = vmul.f32 %v2120, %v2127
    %v2132 = vmul.f32 %v2105, %v2124
    %v2133 = vmul.f32 %v2121, %v2125
    %v2134 = vmul.f32 %v2106, %v2126
    %v2135 = vmul.f32 %v2122, %v2127
    %v2136 = vadd.f32 %v1904, %v2128
    %v2137 = vadd.f32 %v1905, %v2129
    %v2138 = vadd.f32 %v1906, %v2130
    %v2139 = vadd.f32 %v1907, %v2131
    %v2140 = vadd.f32 %v1908, %v2132
    %v2141 = vadd.f32 %v1909, %v2133
    %v2142 = vadd.f32 %v1910, %v2134
    %v2143 = vadd.f32 %v1911, %v2135
    %2144 = vrot.lane.b32.xlu0 %v78, 98
    %v2145 = vpop.permute.xlu0 %2144
    %2146 = vrot.lane.b32.xlu0 %v79, 98
    %v2147 = vpop.permute.xlu0 %2146
    %2148 = vrot.lane.b32.xlu0 %v80, 98
    %v2149 = vpop.permute.xlu0 %2148
    %2150 = vrot.lane.b32.xlu0 %v81, 98
    %v2151 = vpop.permute.xlu0 %2150
    %2152 = vrot.lane.b32.xlu0 %v82, 98
    %v2153 = vpop.permute.xlu0 %2152
    %2154 = vrot.lane.b32.xlu0 %v83, 98
    %v2155 = vpop.permute.xlu0 %2154
    %2156 = vrot.lane.b32.xlu0 %v84, 98
    %v2157 = vpop.permute.xlu0 %2156
    %2158 = vrot.lane.b32.xlu0 %v85, 98
    %v2159 = vpop.permute.xlu0 %2158
    %vm2160 = vcmask 801792
    %v2161 = vsel %vm2160, %v2145, %v2147
    %v2162 = vsel %vm2160, %v2149, %v2151
    %v2163 = vsel %vm2160, %v2153, %v2155
    %v2164 = vsel %vm2160, %v2157, %v2159
    %v2177 = vsel %vm2160, %v2147, %v2145
    %v2178 = vsel %vm2160, %v2151, %v2149
    %v2179 = vsel %vm2160, %v2155, %v2153
    %v2180 = vsel %vm2160, %v2159, %v2157
    %s2181 = scalar_lea.vmem [#allocation7], 1152
    %v2182 = vld [vmem:[%s2181] sm:$0xff]
    %v2183 = vld [vmem:[%s2181 + $0x8] sm:$0xff]
    %v2184 = vld [vmem:[%s2181 + $0x10] sm:$0xff]
    %v2185 = vld [vmem:[%s2181 + $0x18] sm:$0xff]
    %v2186 = vmul.f32 %v2161, %v2182
    %v2187 = vmul.f32 %v2177, %v2183
    %v2188 = vmul.f32 %v2162, %v2184
    %v2189 = vmul.f32 %v2178, %v2185
    %v2190 = vmul.f32 %v2163, %v2182
    %v2191 = vmul.f32 %v2179, %v2183
    %v2192 = vmul.f32 %v2164, %v2184
    %v2193 = vmul.f32 %v2180, %v2185
    %v2194 = vadd.f32 %v1962, %v2186
    %v2195 = vadd.f32 %v1963, %v2187
    %v2196 = vadd.f32 %v1964, %v2188
    %v2197 = vadd.f32 %v1965, %v2189
    %v2198 = vadd.f32 %v1966, %v2190
    %v2199 = vadd.f32 %v1967, %v2191
    %v2200 = vadd.f32 %v1968, %v2192
    %v2201 = vadd.f32 %v1969, %v2193
    %2202 = vrot.lane.b32.xlu0 %v78, 97
    %v2203 = vpop.permute.xlu0 %2202
    %2204 = vrot.lane.b32.xlu0 %v79, 97
    %v2205 = vpop.permute.xlu0 %2204
    %2206 = vrot.lane.b32.xlu0 %v80, 97
    %v2207 = vpop.permute.xlu0 %2206
    %2208 = vrot.lane.b32.xlu0 %v81, 97
    %v2209 = vpop.permute.xlu0 %2208
    %2210 = vrot.lane.b32.xlu0 %v82, 97
    %v2211 = vpop.permute.xlu0 %2210
    %2212 = vrot.lane.b32.xlu0 %v83, 97
    %v2213 = vpop.permute.xlu0 %2212
    %2214 = vrot.lane.b32.xlu0 %v84, 97
    %v2215 = vpop.permute.xlu0 %2214
    %2216 = vrot.lane.b32.xlu0 %v85, 97
    %v2217 = vpop.permute.xlu0 %2216
    %vm2218 = vcmask 793600
    %v2219 = vsel %vm2218, %v2203, %v2205
    %v2220 = vsel %vm2218, %v2207, %v2209
    %v2221 = vsel %vm2218, %v2211, %v2213
    %v2222 = vsel %vm2218, %v2215, %v2217
    %v2235 = vsel %vm2218, %v2205, %v2203
    %v2236 = vsel %vm2218, %v2209, %v2207
    %v2237 = vsel %vm2218, %v2213, %v2211
    %v2238 = vsel %vm2218, %v2217, %v2215
    %s2239 = scalar_lea.vmem [#allocation7], 1184
    %v2240 = vld [vmem:[%s2239] sm:$0xff]
    %v2241 = vld [vmem:[%s2239 + $0x8] sm:$0xff]
    %v2242 = vld [vmem:[%s2239 + $0x10] sm:$0xff]
    %v2243 = vld [vmem:[%s2239 + $0x18] sm:$0xff]
    %v2244 = vmul.f32 %v2219, %v2240
    %v2245 = vmul.f32 %v2235, %v2241
    %v2246 = vmul.f32 %v2220, %v2242
    %v2247 = vmul.f32 %v2236, %v2243
    %v2248 = vmul.f32 %v2221, %v2240
    %v2249 = vmul.f32 %v2237, %v2241
    %v2250 = vmul.f32 %v2222, %v2242
    %v2251 = vmul.f32 %v2238, %v2243
    %v2252 = vadd.f32 %v2020, %v2244
    %v2253 = vadd.f32 %v2021, %v2245
    %v2254 = vadd.f32 %v2022, %v2246
    %v2255 = vadd.f32 %v2023, %v2247
    %v2256 = vadd.f32 %v2024, %v2248
    %v2257 = vadd.f32 %v2025, %v2249
    %v2258 = vadd.f32 %v2026, %v2250
    %v2259 = vadd.f32 %v2027, %v2251
    %2260 = vrot.lane.b32.xlu0 %v78, 96
    %v2261 = vpop.permute.xlu0 %2260
    %2262 = vrot.lane.b32.xlu0 %v79, 96
    %v2263 = vpop.permute.xlu0 %2262
    %2264 = vrot.lane.b32.xlu0 %v80, 96
    %v2265 = vpop.permute.xlu0 %2264
    %2266 = vrot.lane.b32.xlu0 %v81, 96
    %v2267 = vpop.permute.xlu0 %2266
    %2268 = vrot.lane.b32.xlu0 %v82, 96
    %v2269 = vpop.permute.xlu0 %2268
    %2270 = vrot.lane.b32.xlu0 %v83, 96
    %v2271 = vpop.permute.xlu0 %2270
    %2272 = vrot.lane.b32.xlu0 %v84, 96
    %v2273 = vpop.permute.xlu0 %2272
    %2274 = vrot.lane.b32.xlu0 %v85, 96
    %v2275 = vpop.permute.xlu0 %2274
    %vm2276 = vcmask 785408
    %v2277 = vsel %vm2276, %v2261, %v2263
    %v2278 = vsel %vm2276, %v2265, %v2267
    %v2279 = vsel %vm2276, %v2269, %v2271
    %v2280 = vsel %vm2276, %v2273, %v2275
    %v2293 = vsel %vm2276, %v2263, %v2261
    %v2294 = vsel %vm2276, %v2267, %v2265
    %v2295 = vsel %vm2276, %v2271, %v2269
    %v2296 = vsel %vm2276, %v2275, %v2273
    %s2297 = scalar_lea.vmem [#allocation7], 1216
    %v2298 = vld [vmem:[%s2297] sm:$0xff]
    %v2299 = vld [vmem:[%s2297 + $0x8] sm:$0xff]
    %v2300 = vld [vmem:[%s2297 + $0x10] sm:$0xff]
    %v2301 = vld [vmem:[%s2297 + $0x18] sm:$0xff]
    %v2302 = vmul.f32 %v2277, %v2298
    %v2303 = vmul.f32 %v2293, %v2299
    %v2304 = vmul.f32 %v2278, %v2300
    %v2305 = vmul.f32 %v2294, %v2301
    %v2306 = vmul.f32 %v2279, %v2298
    %v2307 = vmul.f32 %v2295, %v2299
    %v2308 = vmul.f32 %v2280, %v2300
    %v2309 = vmul.f32 %v2296, %v2301
    %v2310 = vadd.f32 %v2078, %v2302
    %v2311 = vadd.f32 %v2079, %v2303
    %v2312 = vadd.f32 %v2080, %v2304
    %v2313 = vadd.f32 %v2081, %v2305
    %v2314 = vadd.f32 %v2082, %v2306
    %v2315 = vadd.f32 %v2083, %v2307
    %v2316 = vadd.f32 %v2084, %v2308
    %v2317 = vadd.f32 %v2085, %v2309
    %2318 = vrot.lane.b32.xlu0 %v78, 95
    %v2319 = vpop.permute.xlu0 %2318
    %2320 = vrot.lane.b32.xlu0 %v79, 95
    %v2321 = vpop.permute.xlu0 %2320
    %2322 = vrot.lane.b32.xlu0 %v80, 95
    %v2323 = vpop.permute.xlu0 %2322
    %2324 = vrot.lane.b32.xlu0 %v81, 95
    %v2325 = vpop.permute.xlu0 %2324
    %2326 = vrot.lane.b32.xlu0 %v82, 95
    %v2327 = vpop.permute.xlu0 %2326
    %2328 = vrot.lane.b32.xlu0 %v83, 95
    %v2329 = vpop.permute.xlu0 %2328
    %2330 = vrot.lane.b32.xlu0 %v84, 95
    %v2331 = vpop.permute.xlu0 %2330
    %2332 = vrot.lane.b32.xlu0 %v85, 95
    %v2333 = vpop.permute.xlu0 %2332
    %vm2334 = vcmask 777216
    %v2335 = vsel %vm2334, %v2319, %v2321
    %v2336 = vsel %vm2334, %v2323, %v2325
    %v2337 = vsel %vm2334, %v2327, %v2329
    %v2338 = vsel %vm2334, %v2331, %v2333
    %v2351 = vsel %vm2334, %v2321, %v2319
    %v2352 = vsel %vm2334, %v2325, %v2323
    %v2353 = vsel %vm2334, %v2329, %v2327
    %v2354 = vsel %vm2334, %v2333, %v2331
    %s2355 = scalar_lea.vmem [#allocation7], 1248
    %v2356 = vld [vmem:[%s2355] sm:$0xff]
    %v2357 = vld [vmem:[%s2355 + $0x8] sm:$0xff]
    %v2358 = vld [vmem:[%s2355 + $0x10] sm:$0xff]
    %v2359 = vld [vmem:[%s2355 + $0x18] sm:$0xff]
    %v2360 = vmul.f32 %v2335, %v2356
    %v2361 = vmul.f32 %v2351, %v2357
    %v2362 = vmul.f32 %v2336, %v2358
    %v2363 = vmul.f32 %v2352, %v2359
    %v2364 = vmul.f32 %v2337, %v2356
    %v2365 = vmul.f32 %v2353, %v2357
    %v2366 = vmul.f32 %v2338, %v2358
    %v2367 = vmul.f32 %v2354, %v2359
    %v2368 = vadd.f32 %v2136, %v2360
    %v2369 = vadd.f32 %v2137, %v2361
    %v2370 = vadd.f32 %v2138, %v2362
    %v2371 = vadd.f32 %v2139, %v2363
    %v2372 = vadd.f32 %v2140, %v2364
    %v2373 = vadd.f32 %v2141, %v2365
    %v2374 = vadd.f32 %v2142, %v2366
    %v2375 = vadd.f32 %v2143, %v2367
    %2376 = vrot.lane.b32.xlu0 %v78, 94
    %v2377 = vpop.permute.xlu0 %2376
    %2378 = vrot.lane.b32.xlu0 %v79, 94
    %v2379 = vpop.permute.xlu0 %2378
    %2380 = vrot.lane.b32.xlu0 %v80, 94
    %v2381 = vpop.permute.xlu0 %2380
    %2382 = vrot.lane.b32.xlu0 %v81, 94
    %v2383 = vpop.permute.xlu0 %2382
    %2384 = vrot.lane.b32.xlu0 %v82, 94
    %v2385 = vpop.permute.xlu0 %2384
    %2386 = vrot.lane.b32.xlu0 %v83, 94
    %v2387 = vpop.permute.xlu0 %2386
    %2388 = vrot.lane.b32.xlu0 %v84, 94
    %v2389 = vpop.permute.xlu0 %2388
    %2390 = vrot.lane.b32.xlu0 %v85, 94
    %v2391 = vpop.permute.xlu0 %2390
    %vm2392 = vcmask 769024
    %v2393 = vsel %vm2392, %v2377, %v2379
    %v2394 = vsel %vm2392, %v2381, %v2383
    %v2395 = vsel %vm2392, %v2385, %v2387
    %v2396 = vsel %vm2392, %v2389, %v2391
    %v2409 = vsel %vm2392, %v2379, %v2377
    %v2410 = vsel %vm2392, %v2383, %v2381
    %v2411 = vsel %vm2392, %v2387, %v2385
    %v2412 = vsel %vm2392, %v2391, %v2389
    %s2413 = scalar_lea.vmem [#allocation7], 1280
    %v2414 = vld [vmem:[%s2413] sm:$0xff]
    %v2415 = vld [vmem:[%s2413 + $0x8] sm:$0xff]
    %v2416 = vld [vmem:[%s2413 + $0x10] sm:$0xff]
    %v2417 = vld [vmem:[%s2413 + $0x18] sm:$0xff]
    %v2418 = vmul.f32 %v2393, %v2414
    %v2419 = vmul.f32 %v2409, %v2415
    %v2420 = vmul.f32 %v2394, %v2416
    %v2421 = vmul.f32 %v2410, %v2417
    %v2422 = vmul.f32 %v2395, %v2414
    %v2423 = vmul.f32 %v2411, %v2415
    %v2424 = vmul.f32 %v2396, %v2416
    %v2425 = vmul.f32 %v2412, %v2417
    %v2426 = vadd.f32 %v2194, %v2418
    %v2427 = vadd.f32 %v2195, %v2419
    %v2428 = vadd.f32 %v2196, %v2420
    %v2429 = vadd.f32 %v2197, %v2421
    %v2430 = vadd.f32 %v2198, %v2422
    %v2431 = vadd.f32 %v2199, %v2423
    %v2432 = vadd.f32 %v2200, %v2424
    %v2433 = vadd.f32 %v2201, %v2425
    %2434 = vrot.lane.b32.xlu0 %v78, 93
    %v2435 = vpop.permute.xlu0 %2434
    %2436 = vrot.lane.b32.xlu0 %v79, 93
    %v2437 = vpop.permute.xlu0 %2436
    %2438 = vrot.lane.b32.xlu0 %v80, 93
    %v2439 = vpop.permute.xlu0 %2438
    %2440 = vrot.lane.b32.xlu0 %v81, 93
    %v2441 = vpop.permute.xlu0 %2440
    %2442 = vrot.lane.b32.xlu0 %v82, 93
    %v2443 = vpop.permute.xlu0 %2442
    %2444 = vrot.lane.b32.xlu0 %v83, 93
    %v2445 = vpop.permute.xlu0 %2444
    %2446 = vrot.lane.b32.xlu0 %v84, 93
    %v2447 = vpop.permute.xlu0 %2446
    %2448 = vrot.lane.b32.xlu0 %v85, 93
    %v2449 = vpop.permute.xlu0 %2448
    %vm2450 = vcmask 760832
    %v2451 = vsel %vm2450, %v2435, %v2437
    %v2452 = vsel %vm2450, %v2439, %v2441
    %v2453 = vsel %vm2450, %v2443, %v2445
    %v2454 = vsel %vm2450, %v2447, %v2449
    %v2467 = vsel %vm2450, %v2437, %v2435
    %v2468 = vsel %vm2450, %v2441, %v2439
    %v2469 = vsel %vm2450, %v2445, %v2443
    %v2470 = vsel %vm2450, %v2449, %v2447
    %s2471 = scalar_lea.vmem [#allocation7], 1312
    %v2472 = vld [vmem:[%s2471] sm:$0xff]
    %v2473 = vld [vmem:[%s2471 + $0x8] sm:$0xff]
    %v2474 = vld [vmem:[%s2471 + $0x10] sm:$0xff]
    %v2475 = vld [vmem:[%s2471 + $0x18] sm:$0xff]
    %v2476 = vmul.f32 %v2451, %v2472
    %v2477 = vmul.f32 %v2467, %v2473
    %v2478 = vmul.f32 %v2452, %v2474
    %v2479 = vmul.f32 %v2468, %v2475
    %v2480 = vmul.f32 %v2453, %v2472
    %v2481 = vmul.f32 %v2469, %v2473
    %v2482 = vmul.f32 %v2454, %v2474
    %v2483 = vmul.f32 %v2470, %v2475
    %v2484 = vadd.f32 %v2252, %v2476
    %v2485 = vadd.f32 %v2253, %v2477
    %v2486 = vadd.f32 %v2254, %v2478
    %v2487 = vadd.f32 %v2255, %v2479
    %v2488 = vadd.f32 %v2256, %v2480
    %v2489 = vadd.f32 %v2257, %v2481
    %v2490 = vadd.f32 %v2258, %v2482
    %v2491 = vadd.f32 %v2259, %v2483
    %2492 = vrot.lane.b32.xlu0 %v78, 83
    %v2493 = vpop.permute.xlu0 %2492
    %2494 = vrot.lane.b32.xlu0 %v79, 83
    %v2495 = vpop.permute.xlu0 %2494
    %2496 = vrot.lane.b32.xlu0 %v80, 83
    %v2497 = vpop.permute.xlu0 %2496
    %2498 = vrot.lane.b32.xlu0 %v81, 83
    %v2499 = vpop.permute.xlu0 %2498
    %2500 = vrot.lane.b32.xlu0 %v82, 83
    %v2501 = vpop.permute.xlu0 %2500
    %2502 = vrot.lane.b32.xlu0 %v83, 83
    %v2503 = vpop.permute.xlu0 %2502
    %2504 = vrot.lane.b32.xlu0 %v84, 83
    %v2505 = vpop.permute.xlu0 %2504
    %2506 = vrot.lane.b32.xlu0 %v85, 83
    %v2507 = vpop.permute.xlu0 %2506
    %vm2508 = vcmask 678912
    %v2509 = vsel %vm2508, %v2493, %v2495
    %v2510 = vsel %vm2508, %v2497, %v2499
    %v2511 = vsel %vm2508, %v2501, %v2503
    %v2512 = vsel %vm2508, %v2505, %v2507
    %v2525 = vsel %vm2508, %v2495, %v2493
    %v2526 = vsel %vm2508, %v2499, %v2497
    %v2527 = vsel %vm2508, %v2503, %v2501
    %v2528 = vsel %vm2508, %v2507, %v2505
    %s2529 = scalar_lea.vmem [#allocation7], 1344
    %v2530 = vld [vmem:[%s2529] sm:$0xff]
    %v2531 = vld [vmem:[%s2529 + $0x8] sm:$0xff]
    %v2532 = vld [vmem:[%s2529 + $0x10] sm:$0xff]
    %v2533 = vld [vmem:[%s2529 + $0x18] sm:$0xff]
    %v2534 = vmul.f32 %v2509, %v2530
    %v2535 = vmul.f32 %v2525, %v2531
    %v2536 = vmul.f32 %v2510, %v2532
    %v2537 = vmul.f32 %v2526, %v2533
    %v2538 = vmul.f32 %v2511, %v2530
    %v2539 = vmul.f32 %v2527, %v2531
    %v2540 = vmul.f32 %v2512, %v2532
    %v2541 = vmul.f32 %v2528, %v2533
    %v2542 = vadd.f32 %v2310, %v2534
    %v2543 = vadd.f32 %v2311, %v2535
    %v2544 = vadd.f32 %v2312, %v2536
    %v2545 = vadd.f32 %v2313, %v2537
    %v2546 = vadd.f32 %v2314, %v2538
    %v2547 = vadd.f32 %v2315, %v2539
    %v2548 = vadd.f32 %v2316, %v2540
    %v2549 = vadd.f32 %v2317, %v2541
    %2550 = vrot.lane.b32.xlu0 %v78, 82
    %v2551 = vpop.permute.xlu0 %2550
    %2552 = vrot.lane.b32.xlu0 %v79, 82
    %v2553 = vpop.permute.xlu0 %2552
    %2554 = vrot.lane.b32.xlu0 %v80, 82
    %v2555 = vpop.permute.xlu0 %2554
    %2556 = vrot.lane.b32.xlu0 %v81, 82
    %v2557 = vpop.permute.xlu0 %2556
    %2558 = vrot.lane.b32.xlu0 %v82, 82
    %v2559 = vpop.permute.xlu0 %2558
    %2560 = vrot.lane.b32.xlu0 %v83, 82
    %v2561 = vpop.permute.xlu0 %2560
    %2562 = vrot.lane.b32.xlu0 %v84, 82
    %v2563 = vpop.permute.xlu0 %2562
    %2564 = vrot.lane.b32.xlu0 %v85, 82
    %v2565 = vpop.permute.xlu0 %2564
    %vm2566 = vcmask 670720
    %v2567 = vsel %vm2566, %v2551, %v2553
    %v2568 = vsel %vm2566, %v2555, %v2557
    %v2569 = vsel %vm2566, %v2559, %v2561
    %v2570 = vsel %vm2566, %v2563, %v2565
    %v2583 = vsel %vm2566, %v2553, %v2551
    %v2584 = vsel %vm2566, %v2557, %v2555
    %v2585 = vsel %vm2566, %v2561, %v2559
    %v2586 = vsel %vm2566, %v2565, %v2563
    %s2587 = scalar_lea.vmem [#allocation7], 1376
    %v2588 = vld [vmem:[%s2587] sm:$0xff]
    %v2589 = vld [vmem:[%s2587 + $0x8] sm:$0xff]
    %v2590 = vld [vmem:[%s2587 + $0x10] sm:$0xff]
    %v2591 = vld [vmem:[%s2587 + $0x18] sm:$0xff]
    %v2592 = vmul.f32 %v2567, %v2588
    %v2593 = vmul.f32 %v2583, %v2589
    %v2594 = vmul.f32 %v2568, %v2590
    %v2595 = vmul.f32 %v2584, %v2591
    %v2596 = vmul.f32 %v2569, %v2588
    %v2597 = vmul.f32 %v2585, %v2589
    %v2598 = vmul.f32 %v2570, %v2590
    %v2599 = vmul.f32 %v2586, %v2591
    %v2600 = vadd.f32 %v2368, %v2592
    %v2601 = vadd.f32 %v2369, %v2593
    %v2602 = vadd.f32 %v2370, %v2594
    %v2603 = vadd.f32 %v2371, %v2595
    %v2604 = vadd.f32 %v2372, %v2596
    %v2605 = vadd.f32 %v2373, %v2597
    %v2606 = vadd.f32 %v2374, %v2598
    %v2607 = vadd.f32 %v2375, %v2599
    %2608 = vrot.lane.b32.xlu0 %v78, 81
    %v2609 = vpop.permute.xlu0 %2608
    %2610 = vrot.lane.b32.xlu0 %v79, 81
    %v2611 = vpop.permute.xlu0 %2610
    %2612 = vrot.lane.b32.xlu0 %v80, 81
    %v2613 = vpop.permute.xlu0 %2612
    %2614 = vrot.lane.b32.xlu0 %v81, 81
    %v2615 = vpop.permute.xlu0 %2614
    %2616 = vrot.lane.b32.xlu0 %v82, 81
    %v2617 = vpop.permute.xlu0 %2616
    %2618 = vrot.lane.b32.xlu0 %v83, 81
    %v2619 = vpop.permute.xlu0 %2618
    %2620 = vrot.lane.b32.xlu0 %v84, 81
    %v2621 = vpop.permute.xlu0 %2620
    %2622 = vrot.lane.b32.xlu0 %v85, 81
    %v2623 = vpop.permute.xlu0 %2622
    %vm2624 = vcmask 662528
    %v2625 = vsel %vm2624, %v2609, %v2611
    %v2626 = vsel %vm2624, %v2613, %v2615
    %v2627 = vsel %vm2624, %v2617, %v2619
    %v2628 = vsel %vm2624, %v2621, %v2623
    %v2641 = vsel %vm2624, %v2611, %v2609
    %v2642 = vsel %vm2624, %v2615, %v2613
    %v2643 = vsel %vm2624, %v2619, %v2617
    %v2644 = vsel %vm2624, %v2623, %v2621
    %s2645 = scalar_lea.vmem [#allocation7], 1408
    %v2646 = vld [vmem:[%s2645] sm:$0xff]
    %v2647 = vld [vmem:[%s2645 + $0x8] sm:$0xff]
    %v2648 = vld [vmem:[%s2645 + $0x10] sm:$0xff]
    %v2649 = vld [vmem:[%s2645 + $0x18] sm:$0xff]
    %v2650 = vmul.f32 %v2625, %v2646
    %v2651 = vmul.f32 %v2641, %v2647
    %v2652 = vmul.f32 %v2626, %v2648
    %v2653 = vmul.f32 %v2642, %v2649
    %v2654 = vmul.f32 %v2627, %v2646
    %v2655 = vmul.f32 %v2643, %v2647
    %v2656 = vmul.f32 %v2628, %v2648
    %v2657 = vmul.f32 %v2644, %v2649
    %v2658 = vadd.f32 %v2426, %v2650
    %v2659 = vadd.f32 %v2427, %v2651
    %v2660 = vadd.f32 %v2428, %v2652
    %v2661 = vadd.f32 %v2429, %v2653
    %v2662 = vadd.f32 %v2430, %v2654
    %v2663 = vadd.f32 %v2431, %v2655
    %v2664 = vadd.f32 %v2432, %v2656
    %v2665 = vadd.f32 %v2433, %v2657
    %2666 = vrot.lane.b32.xlu0 %v78, 80
    %v2667 = vpop.permute.xlu0 %2666
    %2668 = vrot.lane.b32.xlu0 %v79, 80
    %v2669 = vpop.permute.xlu0 %2668
    %2670 = vrot.lane.b32.xlu0 %v80, 80
    %v2671 = vpop.permute.xlu0 %2670
    %2672 = vrot.lane.b32.xlu0 %v81, 80
    %v2673 = vpop.permute.xlu0 %2672
    %2674 = vrot.lane.b32.xlu0 %v82, 80
    %v2675 = vpop.permute.xlu0 %2674
    %2676 = vrot.lane.b32.xlu0 %v83, 80
    %v2677 = vpop.permute.xlu0 %2676
    %2678 = vrot.lane.b32.xlu0 %v84, 80
    %v2679 = vpop.permute.xlu0 %2678
    %2680 = vrot.lane.b32.xlu0 %v85, 80
    %v2681 = vpop.permute.xlu0 %2680
    %vm2682 = vcmask 654336
    %v2683 = vsel %vm2682, %v2667, %v2669
    %v2684 = vsel %vm2682, %v2671, %v2673
    %v2685 = vsel %vm2682, %v2675, %v2677
    %v2686 = vsel %vm2682, %v2679, %v2681
    %v2699 = vsel %vm2682, %v2669, %v2667
    %v2700 = vsel %vm2682, %v2673, %v2671
    %v2701 = vsel %vm2682, %v2677, %v2675
    %v2702 = vsel %vm2682, %v2681, %v2679
    %s2703 = scalar_lea.vmem [#allocation7], 1440
    %v2704 = vld [vmem:[%s2703] sm:$0xff]
    %v2705 = vld [vmem:[%s2703 + $0x8] sm:$0xff]
    %v2706 = vld [vmem:[%s2703 + $0x10] sm:$0xff]
    %v2707 = vld [vmem:[%s2703 + $0x18] sm:$0xff]
    %v2708 = vmul.f32 %v2683, %v2704
    %v2709 = vmul.f32 %v2699, %v2705
    %v2710 = vmul.f32 %v2684, %v2706
    %v2711 = vmul.f32 %v2700, %v2707
    %v2712 = vmul.f32 %v2685, %v2704
    %v2713 = vmul.f32 %v2701, %v2705
    %v2714 = vmul.f32 %v2686, %v2706
    %v2715 = vmul.f32 %v2702, %v2707
    %v2716 = vadd.f32 %v2484, %v2708
    %v2717 = vadd.f32 %v2485, %v2709
    %v2718 = vadd.f32 %v2486, %v2710
    %v2719 = vadd.f32 %v2487, %v2711
    %v2720 = vadd.f32 %v2488, %v2712
    %v2721 = vadd.f32 %v2489, %v2713
    %v2722 = vadd.f32 %v2490, %v2714
    %v2723 = vadd.f32 %v2491, %v2715
    %2724 = vrot.lane.b32.xlu0 %v78, 79
    %v2725 = vpop.permute.xlu0 %2724
    %2726 = vrot.lane.b32.xlu0 %v79, 79
    %v2727 = vpop.permute.xlu0 %2726
    %2728 = vrot.lane.b32.xlu0 %v80, 79
    %v2729 = vpop.permute.xlu0 %2728
    %2730 = vrot.lane.b32.xlu0 %v81, 79
    %v2731 = vpop.permute.xlu0 %2730
    %2732 = vrot.lane.b32.xlu0 %v82, 79
    %v2733 = vpop.permute.xlu0 %2732
    %2734 = vrot.lane.b32.xlu0 %v83, 79
    %v2735 = vpop.permute.xlu0 %2734
    %2736 = vrot.lane.b32.xlu0 %v84, 79
    %v2737 = vpop.permute.xlu0 %2736
    %2738 = vrot.lane.b32.xlu0 %v85, 79
    %v2739 = vpop.permute.xlu0 %2738
    %vm2740 = vcmask 646144
    %v2741 = vsel %vm2740, %v2725, %v2727
    %v2742 = vsel %vm2740, %v2729, %v2731
    %v2743 = vsel %vm2740, %v2733, %v2735
    %v2744 = vsel %vm2740, %v2737, %v2739
    %v2757 = vsel %vm2740, %v2727, %v2725
    %v2758 = vsel %vm2740, %v2731, %v2729
    %v2759 = vsel %vm2740, %v2735, %v2733
    %v2760 = vsel %vm2740, %v2739, %v2737
    %s2761 = scalar_lea.vmem [#allocation7], 1472
    %v2762 = vld [vmem:[%s2761] sm:$0xff]
    %v2763 = vld [vmem:[%s2761 + $0x8] sm:$0xff]
    %v2764 = vld [vmem:[%s2761 + $0x10] sm:$0xff]
    %v2765 = vld [vmem:[%s2761 + $0x18] sm:$0xff]
    %v2766 = vmul.f32 %v2741, %v2762
    %v2767 = vmul.f32 %v2757, %v2763
    %v2768 = vmul.f32 %v2742, %v2764
    %v2769 = vmul.f32 %v2758, %v2765
    %v2770 = vmul.f32 %v2743, %v2762
    %v2771 = vmul.f32 %v2759, %v2763
    %v2772 = vmul.f32 %v2744, %v2764
    %v2773 = vmul.f32 %v2760, %v2765
    %v2774 = vadd.f32 %v2542, %v2766
    %v2775 = vadd.f32 %v2543, %v2767
    %v2776 = vadd.f32 %v2544, %v2768
    %v2777 = vadd.f32 %v2545, %v2769
    %v2778 = vadd.f32 %v2546, %v2770
    %v2779 = vadd.f32 %v2547, %v2771
    %v2780 = vadd.f32 %v2548, %v2772
    %v2781 = vadd.f32 %v2549, %v2773
    %2782 = vrot.lane.b32.xlu0 %v78, 78
    %v2783 = vpop.permute.xlu0 %2782
    %2784 = vrot.lane.b32.xlu0 %v79, 78
    %v2785 = vpop.permute.xlu0 %2784
    %2786 = vrot.lane.b32.xlu0 %v80, 78
    %v2787 = vpop.permute.xlu0 %2786
    %2788 = vrot.lane.b32.xlu0 %v81, 78
    %v2789 = vpop.permute.xlu0 %2788
    %2790 = vrot.lane.b32.xlu0 %v82, 78
    %v2791 = vpop.permute.xlu0 %2790
    %2792 = vrot.lane.b32.xlu0 %v83, 78
    %v2793 = vpop.permute.xlu0 %2792
    %2794 = vrot.lane.b32.xlu0 %v84, 78
    %v2795 = vpop.permute.xlu0 %2794
    %2796 = vrot.lane.b32.xlu0 %v85, 78
    %v2797 = vpop.permute.xlu0 %2796
    %vm2798 = vcmask 637952
    %v2799 = vsel %vm2798, %v2783, %v2785
    %v2800 = vsel %vm2798, %v2787, %v2789
    %v2801 = vsel %vm2798, %v2791, %v2793
    %v2802 = vsel %vm2798, %v2795, %v2797
    %v2815 = vsel %vm2798, %v2785, %v2783
    %v2816 = vsel %vm2798, %v2789, %v2787
    %v2817 = vsel %vm2798, %v2793, %v2791
    %v2818 = vsel %vm2798, %v2797, %v2795
    %s2819 = scalar_lea.vmem [#allocation7], 1504
    %v2820 = vld [vmem:[%s2819] sm:$0xff]
    %v2821 = vld [vmem:[%s2819 + $0x8] sm:$0xff]
    %v2822 = vld [vmem:[%s2819 + $0x10] sm:$0xff]
    %v2823 = vld [vmem:[%s2819 + $0x18] sm:$0xff]
    %v2824 = vmul.f32 %v2799, %v2820
    %v2825 = vmul.f32 %v2815, %v2821
    %v2826 = vmul.f32 %v2800, %v2822
    %v2827 = vmul.f32 %v2816, %v2823
    %v2828 = vmul.f32 %v2801, %v2820
    %v2829 = vmul.f32 %v2817, %v2821
    %v2830 = vmul.f32 %v2802, %v2822
    %v2831 = vmul.f32 %v2818, %v2823
    %v2832 = vadd.f32 %v2600, %v2824
    %v2833 = vadd.f32 %v2601, %v2825
    %v2834 = vadd.f32 %v2602, %v2826
    %v2835 = vadd.f32 %v2603, %v2827
    %v2836 = vadd.f32 %v2604, %v2828
    %v2837 = vadd.f32 %v2605, %v2829
    %v2838 = vadd.f32 %v2606, %v2830
    %v2839 = vadd.f32 %v2607, %v2831
    %2840 = vrot.lane.b32.xlu0 %v78, 77
    %v2841 = vpop.permute.xlu0 %2840
    %2842 = vrot.lane.b32.xlu0 %v79, 77
    %v2843 = vpop.permute.xlu0 %2842
    %2844 = vrot.lane.b32.xlu0 %v80, 77
    %v2845 = vpop.permute.xlu0 %2844
    %2846 = vrot.lane.b32.xlu0 %v81, 77
    %v2847 = vpop.permute.xlu0 %2846
    %2848 = vrot.lane.b32.xlu0 %v82, 77
    %v2849 = vpop.permute.xlu0 %2848
    %2850 = vrot.lane.b32.xlu0 %v83, 77
    %v2851 = vpop.permute.xlu0 %2850
    %2852 = vrot.lane.b32.xlu0 %v84, 77
    %v2853 = vpop.permute.xlu0 %2852
    %2854 = vrot.lane.b32.xlu0 %v85, 77
    %v2855 = vpop.permute.xlu0 %2854
    %vm2856 = vcmask 629760
    %v2857 = vsel %vm2856, %v2841, %v2843
    %v2858 = vsel %vm2856, %v2845, %v2847
    %v2859 = vsel %vm2856, %v2849, %v2851
    %v2860 = vsel %vm2856, %v2853, %v2855
    %v2873 = vsel %vm2856, %v2843, %v2841
    %v2874 = vsel %vm2856, %v2847, %v2845
    %v2875 = vsel %vm2856, %v2851, %v2849
    %v2876 = vsel %vm2856, %v2855, %v2853
    %s2877 = scalar_lea.vmem [#allocation7], 1536
    %v2878 = vld [vmem:[%s2877] sm:$0xff]
    %v2879 = vld [vmem:[%s2877 + $0x8] sm:$0xff]
    %v2880 = vld [vmem:[%s2877 + $0x10] sm:$0xff]
    %v2881 = vld [vmem:[%s2877 + $0x18] sm:$0xff]
    %v2882 = vmul.f32 %v2857, %v2878
    %v2883 = vmul.f32 %v2873, %v2879
    %v2884 = vmul.f32 %v2858, %v2880
    %v2885 = vmul.f32 %v2874, %v2881
    %v2886 = vmul.f32 %v2859, %v2878
    %v2887 = vmul.f32 %v2875, %v2879
    %v2888 = vmul.f32 %v2860, %v2880
    %v2889 = vmul.f32 %v2876, %v2881
    %v2890 = vadd.f32 %v2658, %v2882
    %v2891 = vadd.f32 %v2659, %v2883
    %v2892 = vadd.f32 %v2660, %v2884
    %v2893 = vadd.f32 %v2661, %v2885
    %v2894 = vadd.f32 %v2662, %v2886
    %v2895 = vadd.f32 %v2663, %v2887
    %v2896 = vadd.f32 %v2664, %v2888
    %v2897 = vadd.f32 %v2665, %v2889
    %v2898 = vadd.f32 %v2890, %v2716
    %v2899 = vadd.f32 %v2891, %v2717
    %v2900 = vadd.f32 %v2892, %v2718
    %v2901 = vadd.f32 %v2893, %v2719
    %v2902 = vadd.f32 %v2894, %v2720
    %v2903 = vadd.f32 %v2895, %v2721
    %v2904 = vadd.f32 %v2896, %v2722
    %v2905 = vadd.f32 %v2897, %v2723
    %v2906 = vadd.f32 %v2774, %v2832
    %v2907 = vadd.f32 %v2775, %v2833
    %v2908 = vadd.f32 %v2776, %v2834
    %v2909 = vadd.f32 %v2777, %v2835
    %v2910 = vadd.f32 %v2778, %v2836
    %v2911 = vadd.f32 %v2779, %v2837
    %v2912 = vadd.f32 %v2780, %v2838
    %v2913 = vadd.f32 %v2781, %v2839
    %v2914 = vadd.f32 %v2898, %v2906
    %v2915 = vadd.f32 %v2899, %v2907
    %v2916 = vadd.f32 %v2900, %v2908
    %v2917 = vadd.f32 %v2901, %v2909
    %v2918 = vadd.f32 %v2902, %v2910
    %v2919 = vadd.f32 %v2903, %v2911
    %v2920 = vadd.f32 %v2904, %v2912
    %v2921 = vadd.f32 %v2905, %v2913
    %v2922 = vadd.f32 %v2914, %v2916
    %v2923 = vrot.slane %v2922, 4
    %v2924 = vadd.f32 %v2922, %v2923
    %v2925 = vrot.slane %v2924, 2
    %v2926 = vadd.f32 %v2924, %v2925
    %v2927 = vrot.slane %v2926, 1
    %v2928 = vadd.f32 %v2926, %v2927
    %v2929 = vadd.f32 %v2915, %v2917
    %v2930 = vrot.slane %v2929, 4
    %v2931 = vadd.f32 %v2929, %v2930
    %v2932 = vrot.slane %v2931, 2
    %v2933 = vadd.f32 %v2931, %v2932
    %v2934 = vrot.slane %v2933, 1
    %v2935 = vadd.f32 %v2933, %v2934
    %v2936 = vadd.f32 %v2918, %v2920
    %v2937 = vrot.slane %v2936, 4
    %v2938 = vadd.f32 %v2936, %v2937
    %v2939 = vrot.slane %v2938, 2
    %v2940 = vadd.f32 %v2938, %v2939
    %v2941 = vrot.slane %v2940, 1
    %v2942 = vadd.f32 %v2940, %v2941
    %v2943 = vadd.f32 %v2919, %v2921
    %v2944 = vrot.slane %v2943, 4
    %v2945 = vadd.f32 %v2943, %v2944
    %v2946 = vrot.slane %v2945, 2
    %v2947 = vadd.f32 %v2945, %v2946
    %v2948 = vrot.slane %v2947, 1
    %v2949 = vadd.f32 %v2947, %v2948
    %v2950 = vxor.u32 %v2928, 2147483648
    %v2951 = vxor.u32 %v2935, 2147483648
    %v2952 = vxor.u32 %v2942, 2147483648
    %v2953 = vxor.u32 %v2949, 2147483648
    %v2954 = vmul.f32 %v2950, 1.442695
    %v2955 = vpow.pop %v2954
    %v2956 = vmul.f32 %v2951, 1.442695
    %v2957 = vpow.pop %v2956
    %v2958 = vmul.f32 %v2952, 1.442695
    %v2959 = vpow.pop %v2958
    %v2960 = vmul.f32 %v2953, 1.442695
    %v2961 = vpow.pop %v2960
    %v2962 = vadd.f32 %v2955, 1.0
    %v2963 = vadd.f32 %v2957, 1.0
    %v2964 = vadd.f32 %v2959, 1.0
    %v2965 = vadd.f32 %v2961, 1.0
    %v2966 = vrcp.pop %v2962
    %v2967 = vmul.f32 %v2962, %v2966
    %v2968 = vsub.f32 1.0, %v2967
    %v2969 = vmul.f32 %v2966, %v2968
    %v2970 = vadd.f32 %v2966, %v2969
    %vm2971 = vweird.f32 %v2962
    %vm2972 = vweird.f32 %v2966
    %vm2973 = vmor %vm2971, %vm2972
    %v2974 = vsel %vm2973, %v2966, %v2970
    %v2975 = vand.u32 2147483647, %v2962
    %vm2976 = vcmp.eq.f32.partialorder %v2975, 8.507059e+37
    %v2977 = vand.u32 %v2962, 2147483648
    %v2978 = vor.u32 1.1754944e-38, %v2977
    %v2979 = vsel %vm2976, %v2978, %v2974
    %v2980 = vmul.f32 1.0, %v2979
    %v2981 = vrcp.pop %v2963
    %v2982 = vmul.f32 %v2963, %v2981
    %v2983 = vsub.f32 1.0, %v2982
    %v2984 = vmul.f32 %v2981, %v2983
    %v2985 = vadd.f32 %v2981, %v2984
    %vm2986 = vweird.f32 %v2963
    %vm2987 = vweird.f32 %v2981
    %vm2988 = vmor %vm2986, %vm2987
    %v2989 = vsel %vm2988, %v2981, %v2985
    %v2990 = vand.u32 2147483647, %v2963
    %vm2991 = vcmp.eq.f32.partialorder %v2990, 8.507059e+37
    %v2992 = vand.u32 %v2963, 2147483648
    %v2993 = vor.u32 1.1754944e-38, %v2992
    %v2994 = vsel %vm2991, %v2993, %v2989
    %v2995 = vmul.f32 1.0, %v2994
    %v2996 = vrcp.pop %v2964
    %v2997 = vmul.f32 %v2964, %v2996
    %v2998 = vsub.f32 1.0, %v2997
    %v2999 = vmul.f32 %v2996, %v2998
    %v3000 = vadd.f32 %v2996, %v2999
    %vm3001 = vweird.f32 %v2964
    %vm3002 = vweird.f32 %v2996
    %vm3003 = vmor %vm3001, %vm3002
    %v3004 = vsel %vm3003, %v2996, %v3000
    %v3005 = vand.u32 2147483647, %v2964
    %vm3006 = vcmp.eq.f32.partialorder %v3005, 8.507059e+37
    %v3007 = vand.u32 %v2964, 2147483648
    %v3008 = vor.u32 1.1754944e-38, %v3007
    %v3009 = vsel %vm3006, %v3008, %v3004
    %v3010 = vmul.f32 1.0, %v3009
    %v3011 = vrcp.pop %v2965
    %v3012 = vmul.f32 %v2965, %v3011
    %v3013 = vsub.f32 1.0, %v3012
    %v3014 = vmul.f32 %v3011, %v3013
    %v3015 = vadd.f32 %v3011, %v3014
    %vm3016 = vweird.f32 %v2965
    %vm3017 = vweird.f32 %v3011
    %vm3018 = vmor %vm3016, %vm3017
    %v3019 = vsel %vm3018, %v3011, %v3015
    %v3020 = vand.u32 2147483647, %v2965
    %vm3021 = vcmp.eq.f32.partialorder %v3020, 8.507059e+37
    %v3022 = vand.u32 %v2965, 2147483648
    %v3023 = vor.u32 1.1754944e-38, %v3022
    %v3024 = vsel %vm3021, %v3023, %v3019
    %v3025 = vmul.f32 1.0, %v3024
    %v3026 = vmul.f32 %v62, %v2980
    %v3027 = vmul.f32 %v63, %v2995
    %v3028 = vmul.f32 %v64, %v2980
    %v3029 = vmul.f32 %v65, %v2995
    %v3030 = vmul.f32 %v66, %v3010
    %v3031 = vmul.f32 %v67, %v3025
    %v3032 = vmul.f32 %v68, %v3010
    %v3033 = vmul.f32 %v69, %v3025
    %3034 = vst [vmem:[#allocation8] sm:$0xff] %v3026
    %3035 = vst [vmem:[#allocation8 + $0x8] sm:$0xff] %v3027
    %3036 = vst [vmem:[#allocation8 + $0x10] sm:$0xff] %v3028
    %3037 = vst [vmem:[#allocation8 + $0x18] sm:$0xff] %v3029
    %3038 = vst [vmem:[#allocation8 + $0x20] sm:$0xff] %v3030
    %3039 = vst [vmem:[#allocation8 + $0x28] sm:$0xff] %v3031
    %3040 = vst [vmem:[#allocation8 + $0x30] sm:$0xff] %v3032
    %3041 = vst [vmem:[#allocation8 + $0x38] sm:$0xff] %v3033
    // Predicated region
    $region26: #{tpu_custom_call.1} parent=1 // pred_check
      _
    $region27: #{tpu_custom_call.1} parent=1 // pred_check_branch
      %3043 = sbr.rel (0) target = $region29
    $region28: #{tpu_custom_call.1} parent=1 // pred_region
      %3045 = vsyncadd [#allocation4], 0
      %s3046 = sshll.u32 [#allocation8], 4
      %s3047 = int_to_ptr.vmem [resolvable:$true] %s3046
      %s3048 = sshll.u32 %s3, 4
      %s3049 = int_to_ptr.hbm [resolvable:$true] %s3048
      %3054 = dma.vmem_to_hbm [thread:$0]  %s3047, 1024, %s3049, [#allocation4], 256, 256, 16
    $region29: #{tpu_custom_call.1} parent=1 // pred_fallthru
      _
    // Predicated region
    $region30: #{tpu_custom_call.1} parent=1 // pred_check
      _
    $region31: #{tpu_custom_call.1} parent=1 // pred_check_branch
      %3056 = sbr.rel (0) target = $region33
    $region32: #{tpu_custom_call.1} parent=1 // pred_region
      %3058 = dma.done [#allocation4], 1024
    $region33: #{tpu_custom_call.1} parent=1 // pred_fallthru
      _
    %3059 = vsyncpa [#allocation3], 1
    %3060 = vsyncpa [#allocation6], 1
    %3061 = vsyncpa [#allocation4], 1

</llo_original>
